<compile_context>
chip_gen: v7x
topology: tpu7x:2x2x1
jax: 0.10.0
libtpu: 0.0.40
codegen_flags: <defaults>
</compile_context>

<pallas_src>
import jax
import jax.numpy as jnp
import numpy as np
from jax import lax
from jax.experimental import pallas as pl
from jax.experimental.pallas import tpu as pltpu


def _round_up(v, m):
    return ((v + m - 1) // m) * m


def _flow_block_kernel(xflat_ref, w1_ref, w2_ref, mask_ref, out_ref, inter_ref):
    """One block of B batch elements, channel-major flat-spatial layout.

    xflat_ref : (1, C, L0)  zero-padded (pad=1) spatial grids, flattened to lanes,
                            per-element stride S_pad (mult. of 128), B elements packed
                            side by side, GUARD zero lanes at both block ends.
                            L0 = B*S_pad + 2*GUARD.
    w1_ref    : (C, 9C)     conv1 weights, tap-major (dy,dx) x in-channel columns.
    w2_ref    : (C, 9C)     conv2 weights, same layout.
    mask_ref  : (1, L1)     1.0 at interior spatial lanes, 0.0 elsewhere
                            (L1 = L0 - 2E, E = W+3).
    out_ref   : (1, B, C, S_pad)  relu(x + channel-padded conv2), per element.
    inter_ref : (1, B, C, S_pad)  conv2 output (pre-activation), per element.
    """
    c = w1_ref.shape[0]
    l0 = xflat_ref.shape[2]
    l1 = mask_ref.shape[1]
    b_elems = out_ref.shape[1]
    s_pad = out_ref.shape[3]
    l2 = b_elems * s_pad
    e = (l0 - l1) // 2               # W + 3 (max tap shift on the flat lane axis)
    guard = (l0 - l2) // 2           # output-domain start offset (multiple of 128)
    wp = e - 1                       # padded row stride (W + 2)

    x = xflat_ref[0].astype(jnp.float32)          # (C, L0)
    mask = mask_ref[...].astype(jnp.float32)      # (1, L1)

    def stacked_patches(src, start, length):
        # (C, Lsrc) -> (9C, length): rows ordered tap-major (dy, dx), channel minor.
        # 3 big row shifts (+/- (W+2)); the +/-1 column shifts are sub-slices of them.
        rows = []
        for dy in range(3):
            lo = start + (dy - 1) * wp - 1
            row = src[:, lo: lo + length + 2]
            for dx in range(3):
                rows.append(row[:, dx: dx + length])
        return jnp.concatenate(rows, axis=0)

    # conv1 (3x3, pad=1): single fused MXU matmul over K = 9*C.
    p1 = stacked_patches(x, e, l1)                                     # (9C, L1)
    acc1 = jnp.dot(w1_ref[...].astype(jnp.float32), p1,
                   preferred_element_type=jnp.float32,
                   precision=lax.Precision.HIGHEST)                    # (C, L1)
    # relu + interior masking == zero-padded relu(conv1(x)) in flat layout.
    inter1 = jnp.maximum(acc1, 0.0) * mask                             # (C, L1)

    # conv2 (3x3, pad=1): same fused matmul on the masked intermediate.
    p2 = stacked_patches(inter1, guard - e, l2)                        # (9C, L2)
    acc2 = jnp.dot(w2_ref[...].astype(jnp.float32), p2,
                   preferred_element_type=jnp.float32,
                   precision=lax.Precision.HIGHEST)                    # (C, L2)

    # Residual add: rows >= P of acc2 are exactly zero (zero-padded w2 rows), which
    # reproduces torch.cat((inter, zeros), dim=1) with no extra work.
    x_center = x[:, guard: guard + l2]                                 # (C, L2)
    out_all = jnp.maximum(x_center + acc2, 0.0)

    # Per-element stores: S_pad is a multiple of 128, so every slice is lane-aligned
    # and every store is a dense, unmasked write.
    for b in range(b_elems):
        lo = b * s_pad
        out_ref[0, b] = out_all[:, lo: lo + s_pad].astype(out_ref.dtype)
        inter_ref[0, b] = acc2[:, lo: lo + s_pad].astype(inter_ref.dtype)


@jax.jit
def flow_block_2d(x_nchw, w1_oihw, w2_oihw):
    """Pallas implementation of FlowBlock2D3x3Tanh.forward (stride=1, bias=False)."""
    n, cin, h, w = x_nchw.shape
    p_out = w1_oihw.shape[0]
    if p_out > cin:
        raise ValueError("FlowBlock2D3x3Tanh requires planes <= in_planes "
                         f"(got planes={p_out}, in_planes={cin}).")

    hp, wp = h + 2, w + 2
    s = hp * wp                           # zero-padded grid, flattened to lanes
    e = wp + 1                            # max flat tap shift
    c_pad = _round_up(cin, 8)             # one sublane tile of channels
    s_pad = _round_up(s, 128)             # lane-dense per-element stride
    guard = _round_up(2 * e, 128)         # >= 2E and a multiple of 128

    # Batch blocking: at most 2 grid steps (both v7x TensorCores stay busy; on
    # v5e/v6e this collapses per-step overhead), capped by a per-step VMEM budget.
    slab = c_pad * s_pad * 4                              # one (C, S_pad) f32 tile
    b_cap = max(1, (8 << 20) // (28 * slab))              # ~8 MiB working set cap
    num_steps = 2 if n >= 2 else 1
    b_elems = min(max(1, -(-n // num_steps)), b_cap)
    num_blocks = -(-n // b_elems)
    n_total = num_blocks * b_elems

    l2 = b_elems * s_pad                  # output domain per grid step
    l0 = l2 + 2 * guard                   # input lanes per grid step
    l1 = l0 - 2 * e                       # conv1 evaluation domain

    # Channel-pad, spatial-pad, flatten onto lanes, pad to S_pad, pack B elements per
    # block, add GUARD zeros at block ends.  (Purely layout plumbing; a few tiny pads.)
    xp = jnp.pad(x_nchw, ((0, n_total - n), (0, c_pad - cin), (1, 1), (1, 1)))
    xflat_e = jnp.pad(xp.reshape(n_total, c_pad, s),
                      ((0, 0), (0, 0), (0, s_pad - s)))                 # (Nt, C, S_pad)
    if b_elems > 1:
        xg = (xflat_e.reshape(num_blocks, b_elems, c_pad, s_pad)
              .transpose(0, 2, 1, 3)
              .reshape(num_blocks, c_pad, l2))
    else:
        xg = xflat_e                                                    # l2 == s_pad
    xflat = jnp.pad(xg, ((0, 0), (0, 0), (guard, guard)))               # (NB, C, L0)

    # Fused tap-major weights: (Cout, 9*Cin), column order (dy, dx, in-channel) to
    # match the kernel's stacked patch rows; zero-padded channels implement the
    # concat-with-zeros and the Cin->c_pad padding for free.
    w1_p = jnp.pad(w1_oihw, ((0, c_pad - p_out), (0, c_pad - cin), (0, 0), (0, 0)))
    w2_p = jnp.pad(w2_oihw, ((0, c_pad - p_out), (0, c_pad - p_out), (0, 0), (0, 0)))
    w1_f = jnp.transpose(w1_p, (0, 2, 3, 1)).reshape(c_pad, 9 * c_pad).astype(jnp.float32)
    w2_f = jnp.transpose(w2_p, (0, 2, 3, 1)).reshape(c_pad, 9 * c_pad).astype(jnp.float32)

    # Interior mask over the conv1 evaluation domain (xflat lanes [e, e + l1)).
    rr = (jnp.arange(hp) >= 1) & (jnp.arange(hp) <= h)
    cc = (jnp.arange(wp) >= 1) & (jnp.arange(wp) <= w)
    interior = jnp.pad((rr[:, None] & cc[None, :]).reshape(-1), (0, s_pad - s))
    interior = jnp.pad(jnp.tile(interior, b_elems), (guard, guard))     # (L0,)
    mask = interior[e: e + l1].astype(jnp.float32).reshape(1, l1)

    out_flat, inter_flat = pl.pallas_call(
        _flow_block_kernel,
        out_shape=(
            jax.ShapeDtypeStruct((num_blocks, b_elems, c_pad, s_pad), x_nchw.dtype),
            jax.ShapeDtypeStruct((num_blocks, b_elems, c_pad, s_pad), x_nchw.dtype),
        ),
        grid=(num_blocks,),
        in_specs=[
            pl.BlockSpec((1, c_pad, l0), lambda g: (g, 0, 0)),
            pl.BlockSpec((c_pad, 9 * c_pad), lambda g: (0, 0)),
            pl.BlockSpec((c_pad, 9 * c_pad), lambda g: (0, 0)),
            pl.BlockSpec((1, l1), lambda g: (0, 0)),
        ],
        out_specs=(
            pl.BlockSpec((1, b_elems, c_pad, s_pad), lambda g: (g, 0, 0, 0)),
            pl.BlockSpec((1, b_elems, c_pad, s_pad), lambda g: (g, 0, 0, 0)),
        ),
        compiler_params=pltpu.CompilerParams(dimension_semantics=("parallel",)),
    )(xflat, w1_f, w2_f, mask)

    # Padded-flat -> NCHW: free reshapes + a single border/channel crop (no transposes).
    out = (out_flat.reshape(n_total, c_pad, s_pad)[:n, :cin, :s]
           .reshape(n, cin, hp, wp)[:, :, 1:-1, 1:-1])
    inter = (inter_flat.reshape(n_total, c_pad, s_pad)[:n, :p_out, :s]
             .reshape(n, p_out, hp, wp)[:, :, 1:-1, 1:-1])
    return out, inter


def _reference(x_nchw, w1_oihw, w2_oihw):
    """Plain-JAX mirror of the PyTorch forward (for correctness checking)."""
    dn = ("NCHW", "OIHW", "NCHW")
    inter = lax.conv_general_dilated(
        x_nchw, w1_oihw, (1, 1), ((1, 1), (1, 1)), dimension_numbers=dn,
        precision=lax.Precision.HIGHEST)
    inter = jnp.maximum(inter, 0.0)
    inter = lax.conv_general_dilated(
        inter, w2_oihw, (1, 1), ((1, 1), (1, 1)), dimension_numbers=dn,
        precision=lax.Precision.HIGHEST)
    out_planes = x_nchw.shape[1] - w1_oihw.shape[0]
    cat = jnp.concatenate([inter, jnp.zeros_like(x_nchw[:, :out_planes])], axis=1)
    out = jnp.maximum(x_nchw + cat, 0.0)
    return out, inter


if __name__ == "__main__":
    # Small, module-consistent shapes: batch=2, in_planes=4, planes=3, spatial 16x16.
    N, IN_PLANES, PLANES, H, W = 2, 4, 3, 16, 16

    key = jax.random.PRNGKey(0)
    kx, k1, k2 = jax.random.split(key, 3)
    x = jax.random.normal(kx, (N, IN_PLANES, H, W), dtype=jnp.float32)
    # Deterministic synthetic weights (Conv2d(in_planes, planes, 3) / Conv2d(planes, planes, 3)).
    w1 = 0.1 * jax.random.normal(k1, (PLANES, IN_PLANES, 3, 3), dtype=jnp.float32)
    w2 = 0.1 * jax.random.normal(k2, (PLANES, PLANES, 3, 3), dtype=jnp.float32)
    # TODO(synk): forward2's .detach() only affects autograd, not the forward values.

    out, inter = flow_block_2d(x, w1, w2)
    jax.block_until_ready((out, inter))

    out_ref, inter_ref = _reference(x, w1, w2)
    np.testing.assert_allclose(np.asarray(out), np.asarray(out_ref), rtol=1e-4, atol=1e-4)
    np.testing.assert_allclose(np.asarray(inter), np.asarray(inter_ref), rtol=1e-4, atol=1e-4)

    print("KERNEL_OK")
</pallas_src>

<mosaic_0001>
module attributes {stable_mosaic.version = 11 : i64} {
  func.func @_flow_block_kernel(%arg0: i32, %arg1: memref<1x8x640xf32, #tpu.memory_space<vmem>>, %arg2: memref<8x72xf32, #tpu.memory_space<vmem>>, %arg3: memref<8x72xf32, #tpu.memory_space<vmem>>, %arg4: memref<1x602xf32, #tpu.memory_space<vmem>>, %arg5: memref<1x1x8x384xf32, #tpu.memory_space<vmem>>, %arg6: memref<1x1x8x384xf32, #tpu.memory_space<vmem>>) attributes {dimension_semantics = [#tpu.dimension_semantics<parallel>], iteration_bounds = array<i64: 2>, scalar_prefetch = 0 : i64, scratch_operands = 0 : i64, tpu.core_type = #tpu.core_type<tc>, window_params = [{transform_indices = @transform_0, window_bounds = array<i64: 1, 8, 640>}, {pipeline_mode = #tpu.pipeline_mode<synchronous>, transform_indices = @transform_1, window_bounds = array<i64: 8, 72>}, {pipeline_mode = #tpu.pipeline_mode<synchronous>, transform_indices = @transform_2, window_bounds = array<i64: 8, 72>}, {pipeline_mode = #tpu.pipeline_mode<synchronous>, transform_indices = @transform_3, window_bounds = array<i64: 1, 602>}, {transform_indices = @transform_4, window_bounds = array<i64: 1, 1, 8, 384>}, {transform_indices = @transform_5, window_bounds = array<i64: 1, 1, 8, 384>}]} {
    %c0 = arith.constant 0 : index
    %c0_0 = arith.constant 0 : index
    %c0_1 = arith.constant 0 : index
    %0 = vector.load %arg1[%c0, %c0_0, %c0_1] : memref<1x8x640xf32, #tpu.memory_space<vmem>>, vector<1x8x640xf32>
    %1 = vector.shape_cast %0 : vector<1x8x640xf32> to vector<8x640xf32>
    %c0_2 = arith.constant 0 : index
    %c0_3 = arith.constant 0 : index
    %2 = vector.load %arg4[%c0_2, %c0_3] : memref<1x602xf32, #tpu.memory_space<vmem>>, vector<1x602xf32>
    %3 = vector.extract_strided_slice %1 {offsets = [0, 0], sizes = [8, 604], strides = [1, 1]} : vector<8x640xf32> to vector<8x604xf32>
    %4 = vector.extract_strided_slice %3 {offsets = [0, 0], sizes = [8, 602], strides = [1, 1]} : vector<8x604xf32> to vector<8x602xf32>
    %5 = vector.extract_strided_slice %3 {offsets = [0, 1], sizes = [8, 602], strides = [1, 1]} : vector<8x604xf32> to vector<8x602xf32>
    %6 = vector.extract_strided_slice %3 {offsets = [0, 2], sizes = [8, 602], strides = [1, 1]} : vector<8x604xf32> to vector<8x602xf32>
    %7 = vector.extract_strided_slice %1 {offsets = [0, 18], sizes = [8, 604], strides = [1, 1]} : vector<8x640xf32> to vector<8x604xf32>
    %8 = vector.extract_strided_slice %7 {offsets = [0, 0], sizes = [8, 602], strides = [1, 1]} : vector<8x604xf32> to vector<8x602xf32>
    %9 = vector.extract_strided_slice %7 {offsets = [0, 1], sizes = [8, 602], strides = [1, 1]} : vector<8x604xf32> to vector<8x602xf32>
    %10 = vector.extract_strided_slice %7 {offsets = [0, 2], sizes = [8, 602], strides = [1, 1]} : vector<8x604xf32> to vector<8x602xf32>
    %11 = vector.extract_strided_slice %1 {offsets = [0, 36], sizes = [8, 604], strides = [1, 1]} : vector<8x640xf32> to vector<8x604xf32>
    %12 = vector.extract_strided_slice %11 {offsets = [0, 0], sizes = [8, 602], strides = [1, 1]} : vector<8x604xf32> to vector<8x602xf32>
    %13 = vector.extract_strided_slice %11 {offsets = [0, 1], sizes = [8, 602], strides = [1, 1]} : vector<8x604xf32> to vector<8x602xf32>
    %14 = vector.extract_strided_slice %11 {offsets = [0, 2], sizes = [8, 602], strides = [1, 1]} : vector<8x604xf32> to vector<8x602xf32>
    %15 = tpu.concatenate %4, %5, %6, %8, %9, %10, %12, %13, %14 in 0 : vector<8x602xf32>, vector<8x602xf32>, vector<8x602xf32>, vector<8x602xf32>, vector<8x602xf32>, vector<8x602xf32>, vector<8x602xf32>, vector<8x602xf32>, vector<8x602xf32> -> vector<72x602xf32>
    %c0_4 = arith.constant 0 : index
    %c0_5 = arith.constant 0 : index
    %16 = vector.load %arg2[%c0_4, %c0_5] : memref<8x72xf32, #tpu.memory_space<vmem>>, vector<8x72xf32>
    %cst = arith.constant dense<0.000000e+00> : vector<8x602xf32>
    %17 = tpu.matmul %16, %15, %cst {dimension_numbers = #tpu.dot_dimension_numbers<[1], [0], [0], [1], [0, 0, 1, 1], [], []>, precision = #tpu.contract_precision<fp32>} : vector<8x72xf32>, vector<72x602xf32>, vector<8x602xf32> -> vector<8x602xf32>
    %cst_6 = arith.constant 0.000000e+00 : f32
    %18 = vector.broadcast %cst_6 : f32 to vector<8x602xf32>
    %19 = arith.maximumf %17, %18 : vector<8x602xf32>
    %20 = vector.broadcast %2 : vector<1x602xf32> to vector<8x602xf32>
    %21 = arith.mulf %19, %20 : vector<8x602xf32>
    %22 = vector.extract_strided_slice %21 {offsets = [0, 90], sizes = [8, 386], strides = [1, 1]} : vector<8x602xf32> to vector<8x386xf32>
    %23 = vector.extract_strided_slice %22 {offsets = [0, 0], sizes = [8, 384], strides = [1, 1]} : vector<8x386xf32> to vector<8x384xf32>
    %24 = vector.extract_strided_slice %22 {offsets = [0, 1], sizes = [8, 384], strides = [1, 1]} : vector<8x386xf32> to vector<8x384xf32>
    %25 = vector.extract_strided_slice %22 {offsets = [0, 2], sizes = [8, 384], strides = [1, 1]} : vector<8x386xf32> to vector<8x384xf32>
    %26 = vector.extract_strided_slice %21 {offsets = [0, 108], sizes = [8, 386], strides = [1, 1]} : vector<8x602xf32> to vector<8x386xf32>
    %27 = vector.extract_strided_slice %26 {offsets = [0, 0], sizes = [8, 384], strides = [1, 1]} : vector<8x386xf32> to vector<8x384xf32>
    %28 = vector.extract_strided_slice %26 {offsets = [0, 1], sizes = [8, 384], strides = [1, 1]} : vector<8x386xf32> to vector<8x384xf32>
    %29 = vector.extract_strided_slice %26 {offsets = [0, 2], sizes = [8, 384], strides = [1, 1]} : vector<8x386xf32> to vector<8x384xf32>
    %30 = vector.extract_strided_slice %21 {offsets = [0, 126], sizes = [8, 386], strides = [1, 1]} : vector<8x602xf32> to vector<8x386xf32>
    %31 = vector.extract_strided_slice %30 {offsets = [0, 0], sizes = [8, 384], strides = [1, 1]} : vector<8x386xf32> to vector<8x384xf32>
    %32 = vector.extract_strided_slice %30 {offsets = [0, 1], sizes = [8, 384], strides = [1, 1]} : vector<8x386xf32> to vector<8x384xf32>
    %33 = vector.extract_strided_slice %30 {offsets = [0, 2], sizes = [8, 384], strides = [1, 1]} : vector<8x386xf32> to vector<8x384xf32>
    %34 = tpu.concatenate %23, %24, %25, %27, %28, %29, %31, %32, %33 in 0 : vector<8x384xf32>, vector<8x384xf32>, vector<8x384xf32>, vector<8x384xf32>, vector<8x384xf32>, vector<8x384xf32>, vector<8x384xf32>, vector<8x384xf32>, vector<8x384xf32> -> vector<72x384xf32>
    %c0_7 = arith.constant 0 : index
    %c0_8 = arith.constant 0 : index
    %35 = vector.load %arg3[%c0_7, %c0_8] : memref<8x72xf32, #tpu.memory_space<vmem>>, vector<8x72xf32>
    %cst_9 = arith.constant dense<0.000000e+00> : vector<8x384xf32>
    %36 = tpu.matmul %35, %34, %cst_9 {dimension_numbers = #tpu.dot_dimension_numbers<[1], [0], [0], [1], [0, 0, 1, 1], [], []>, precision = #tpu.contract_precision<fp32>} : vector<8x72xf32>, vector<72x384xf32>, vector<8x384xf32> -> vector<8x384xf32>
    %37 = vector.extract_strided_slice %1 {offsets = [0, 128], sizes = [8, 384], strides = [1, 1]} : vector<8x640xf32> to vector<8x384xf32>
    %38 = arith.addf %37, %36 : vector<8x384xf32>
    %cst_10 = arith.constant 0.000000e+00 : f32
    %39 = vector.broadcast %cst_10 : f32 to vector<8x384xf32>
    %40 = arith.maximumf %38, %39 : vector<8x384xf32>
    %c0_11 = arith.constant 0 : index
    %c0_12 = arith.constant 0 : index
    %c0_13 = arith.constant 0 : index
    %c0_14 = arith.constant 0 : index
    %41 = vector.load %arg5[%c0_11, %c0_12, %c0_13, %c0_14] : memref<1x1x8x384xf32, #tpu.memory_space<vmem>>, vector<1x1x8x384xf32>
    %42 = vector.shape_cast %41 : vector<1x1x8x384xf32> to vector<8x384xf32>
    %43 = vector.shape_cast %40 : vector<8x384xf32> to vector<1x1x8x384xf32>
    tpu.vector_store %arg5[%c0_11, %c0_12, %c0_13, %c0_14], %43 {strides = array<i32>} : memref<1x1x8x384xf32, #tpu.memory_space<vmem>>, vector<1x1x8x384xf32>,
    %c0_15 = arith.constant 0 : index
    %c0_16 = arith.constant 0 : index
    %c0_17 = arith.constant 0 : index
    %c0_18 = arith.constant 0 : index
    %44 = vector.load %arg6[%c0_15, %c0_16, %c0_17, %c0_18] : memref<1x1x8x384xf32, #tpu.memory_space<vmem>>, vector<1x1x8x384xf32>
    %45 = vector.shape_cast %44 : vector<1x1x8x384xf32> to vector<8x384xf32>
    %46 = vector.shape_cast %36 : vector<8x384xf32> to vector<1x1x8x384xf32>
    tpu.vector_store %arg6[%c0_15, %c0_16, %c0_17, %c0_18], %46 {strides = array<i32>} : memref<1x1x8x384xf32, #tpu.memory_space<vmem>>, vector<1x1x8x384xf32>,
    return
  }
  func.func @transform_0(%arg0: i32) -> (i32, i32, i32) {
    %c0_i32 = arith.constant 0 : i32
    %c0_i32_0 = arith.constant 0 : i32
    %c0_i32_1 = arith.constant 0 : i32
    return %arg0, %c0_i32, %c0_i32_0 : i32, i32, i32
  }
  func.func @transform_1(%arg0: i32) -> (i32, i32) {
    %c0_i32 = arith.constant 0 : i32
    %c0_i32_0 = arith.constant 0 : i32
    %c0_i32_1 = arith.constant 0 : i32
    return %c0_i32, %c0_i32_0 : i32, i32
  }
  func.func @transform_2(%arg0: i32) -> (i32, i32) {
    %c0_i32 = arith.constant 0 : i32
    %c0_i32_0 = arith.constant 0 : i32
    %c0_i32_1 = arith.constant 0 : i32
    return %c0_i32, %c0_i32_0 : i32, i32
  }
  func.func @transform_3(%arg0: i32) -> (i32, i32) {
    %c0_i32 = arith.constant 0 : i32
    %c0_i32_0 = arith.constant 0 : i32
    %c0_i32_1 = arith.constant 0 : i32
    return %c0_i32, %c0_i32_0 : i32, i32
  }
  func.func @transform_4(%arg0: i32) -> (i32, i32, i32, i32) {
    %c0_i32 = arith.constant 0 : i32
    %c0_i32_0 = arith.constant 0 : i32
    %c0_i32_1 = arith.constant 0 : i32
    %c0_i32_2 = arith.constant 0 : i32
    return %arg0, %c0_i32, %c0_i32_0, %c0_i32_1 : i32, i32, i32, i32
  }
  func.func @transform_5(%arg0: i32) -> (i32, i32, i32, i32) {
    %c0_i32 = arith.constant 0 : i32
    %c0_i32_0 = arith.constant 0 : i32
    %c0_i32_1 = arith.constant 0 : i32
    %c0_i32_2 = arith.constant 0 : i32
    return %arg0, %c0_i32, %c0_i32_0, %c0_i32_1 : i32, i32, i32, i32
  }
}

</mosaic_0001>

<llo_original>
// kernel: flow_block_2d.1
$region0: #{flow_block_2d.1}
  #allocation0 [shape = 'u32[]', space=smem, size = 0x4, offset = 0x4, fixed_abs, tag = 'smem constant byte address 0x4 - core index']
  #allocation1 [shape = 'u32[144,128]{1,0:T(1,128)}', space=vmem, size = 0x12000, scoped, tag = 'internal scratch']
  %s0 = inlined_call_operand.vmem [shape: f32[2,8,640], index: 0, kind: input, shape index: {}]
  %s1 = inlined_call_operand.vmem [shape: f32[8,72], index: 1, kind: input, shape index: {}]
  %s2 = inlined_call_operand.vmem [shape: f32[8,72], index: 2, kind: input, shape index: {}]
  %s3 = inlined_call_operand.vmem [shape: f32[1,602], index: 3, kind: input, shape index: {}]
  %s4 = inlined_call_operand.vmem [shape: f32[2,1,8,384], index: 4, kind: output, shape index: {0}]
  %s5 = inlined_call_operand.vmem [shape: f32[2,1,8,384], index: 5, kind: output, shape index: {1}]
  %6 = xla_tuple %s4, %s5
  %s7 = sld [smem:[#allocation0]]
  $region57: #{flow_block_2d.1} parent=0
    _
  %s9 = ssub.s32 1, %s7
  %s10 = scalar_select 0, %s9, %s7
  loop: start=0, step=1, limit=4
  $region2: #{flow_block_2d.1} parent=0 // loop_pre_header
    _
  $region3: #{flow_block_2d.1} parent=0 // loop_header
    %s12 = sphi 0, %s16
    %p13 = scmp.ge.s32.totalorder %s12, 4
    %s22 = sphi 0, %s24
    %s25 = sphi 0, %s22
    %s26 = sphi 0, %s25
    %s42 = sphi 0, %s26
    %s46 = sphi 0, %s46
    %s48 = sphi 0, %s46
    %s49 = sphi 0, %s48
    %s63 = sphi 0, %s49
    %s67 = sphi 0, %s67
    %s69 = sphi 0, %s67
    %s70 = sphi 0, %s69
    %s84 = sphi 0, %s70
    %s88 = sphi 0, %s88
    %s90 = sphi 0, %s88
    %s91 = sphi 0, %s90
    %s105 = sphi 0, %s91
    %s111 = sphi 0, %s113
    %s114 = sphi 0, %s111
    %s115 = sphi 0, %s114
    %s131 = sphi 0, %s115
    %s137 = sphi 0, %s139
    %s140 = sphi 0, %s137
    %s141 = sphi 0, %s140
    %s157 = sphi 0, %s141
  $region4: #{flow_block_2d.1} parent=0 // loop_header_branch
    %15 = sbr.rel (%p13) target = $region8
  $region5: #{flow_block_2d.1} parent=0 // loop_body
    %s17 = ssub.s32 %s12, 1
    %s18 = ssub.s32 %s12, 2
    %s19 = sadd.s32 %s12, 1
    %s20 = ssub.s32 %s12, %s19
    %p21 = scmp.eq.s32.totalorder %s20, 0
    %s23 = sadd.s32 %s22, 1
    %s24 = scalar_select %p21, %s22, %s23
    %p27 = pneg %p21
    %p28 = scmp.eq.s32.totalorder %s12, 1
    %p29 = por %p27, %p28
    %p30 = scmp.ne.s32.totalorder %s22, %s25
    %p31 = scmp.eq.s32.totalorder %s12, 0
    %p32 = por %p30, %p31
    %p33 = scmp.ne.s32.totalorder %s22, %s25
    %p34 = scmp.eq.s32.totalorder %s17, 1
    %p35 = por %p33, %p34
    %p36 = scmp.ne.s32.totalorder %s25, %s26
    %p37 = scmp.eq.s32.totalorder %s17, 0
    %p38 = por %p36, %p37
    %p39 = scmp.ne.s32.totalorder %s25, %s26
    %p40 = scmp.eq.s32.totalorder %s18, 1
    %p41 = por %p39, %p40
    %p43 = scmp.ne.s32.totalorder %s26, %s42
    %p44 = scmp.eq.s32.totalorder %s18, 0
    %p45 = por %p43, %p44
    %s47 = sadd.s32 %s46, 1
    %p50 = scmp.eq.s32.totalorder %s12, 1
    %p51 = scmp.ne.s32.totalorder %s46, %s48
    %p52 = scmp.eq.s32.totalorder %s12, 0
    %p53 = por %p51, %p52
    %p54 = scmp.ne.s32.totalorder %s46, %s48
    %p55 = scmp.eq.s32.totalorder %s17, 1
    %p56 = por %p54, %p55
    %p57 = scmp.ne.s32.totalorder %s48, %s49
    %p58 = scmp.eq.s32.totalorder %s17, 0
    %p59 = por %p57, %p58
    %p60 = scmp.ne.s32.totalorder %s48, %s49
    %p61 = scmp.eq.s32.totalorder %s18, 1
    %p62 = por %p60, %p61
    %p64 = scmp.ne.s32.totalorder %s49, %s63
    %p65 = scmp.eq.s32.totalorder %s18, 0
    %p66 = por %p64, %p65
    %s68 = sadd.s32 %s67, 1
    %p71 = scmp.eq.s32.totalorder %s12, 1
    %p72 = scmp.ne.s32.totalorder %s67, %s69
    %p73 = scmp.eq.s32.totalorder %s12, 0
    %p74 = por %p72, %p73
    %p75 = scmp.ne.s32.totalorder %s67, %s69
    %p76 = scmp.eq.s32.totalorder %s17, 1
    %p77 = por %p75, %p76
    %p78 = scmp.ne.s32.totalorder %s69, %s70
    %p79 = scmp.eq.s32.totalorder %s17, 0
    %p80 = por %p78, %p79
    %p81 = scmp.ne.s32.totalorder %s69, %s70
    %p82 = scmp.eq.s32.totalorder %s18, 1
    %p83 = por %p81, %p82
    %p85 = scmp.ne.s32.totalorder %s70, %s84
    %p86 = scmp.eq.s32.totalorder %s18, 0
    %p87 = por %p85, %p86
    %s89 = sadd.s32 %s88, 1
    %p92 = scmp.eq.s32.totalorder %s12, 1
    %p93 = scmp.ne.s32.totalorder %s88, %s90
    %p94 = scmp.eq.s32.totalorder %s12, 0
    %p95 = por %p93, %p94
    %p96 = scmp.ne.s32.totalorder %s88, %s90
    %p97 = scmp.eq.s32.totalorder %s17, 1
    %p98 = por %p96, %p97
    %p99 = scmp.ne.s32.totalorder %s90, %s91
    %p100 = scmp.eq.s32.totalorder %s17, 0
    %p101 = por %p99, %p100
    %p102 = scmp.ne.s32.totalorder %s90, %s91
    %p103 = scmp.eq.s32.totalorder %s18, 1
    %p104 = por %p102, %p103
    %p106 = scmp.ne.s32.totalorder %s91, %s105
    %p107 = scmp.eq.s32.totalorder %s18, 0
    %p108 = por %p106, %p107
    %s109 = ssub.s32 %s12, %s19
    %p110 = scmp.eq.s32.totalorder %s109, 0
    %s112 = sadd.s32 %s111, 1
    %s113 = scalar_select %p110, %s111, %s112
    %p116 = pneg %p110
    %p117 = scmp.eq.s32.totalorder %s12, 1
    %p118 = por %p116, %p117
    %p119 = scmp.ne.s32.totalorder %s111, %s114
    %p120 = scmp.eq.s32.totalorder %s12, 0
    %p121 = por %p119, %p120
    %p122 = scmp.ne.s32.totalorder %s111, %s114
    %p123 = scmp.eq.s32.totalorder %s17, 1
    %p124 = por %p122, %p123
    %p125 = scmp.ne.s32.totalorder %s114, %s115
    %p126 = scmp.eq.s32.totalorder %s17, 0
    %p127 = por %p125, %p126
    %p128 = scmp.ne.s32.totalorder %s114, %s115
    %p129 = scmp.eq.s32.totalorder %s18, 1
    %p130 = por %p128, %p129
    %p132 = scmp.ne.s32.totalorder %s115, %s131
    %p133 = scmp.eq.s32.totalorder %s18, 0
    %p134 = por %p132, %p133
    %s135 = ssub.s32 %s12, %s19
    %p136 = scmp.eq.s32.totalorder %s135, 0
    %s138 = sadd.s32 %s137, 1
    %s139 = scalar_select %p136, %s137, %s138
    %p142 = pneg %p136
    %p143 = scmp.eq.s32.totalorder %s12, 1
    %p144 = por %p142, %p143
    %p145 = scmp.ne.s32.totalorder %s137, %s140
    %p146 = scmp.eq.s32.totalorder %s12, 0
    %p147 = por %p145, %p146
    %p148 = scmp.ne.s32.totalorder %s137, %s140
    %p149 = scmp.eq.s32.totalorder %s17, 1
    %p150 = por %p148, %p149
    %p151 = scmp.ne.s32.totalorder %s140, %s141
    %p152 = scmp.eq.s32.totalorder %s17, 0
    %p153 = por %p151, %p152
    %p154 = scmp.ne.s32.totalorder %s140, %s141
    %p155 = scmp.eq.s32.totalorder %s18, 1
    %p156 = por %p154, %p155
    %p158 = scmp.ne.s32.totalorder %s141, %s157
    %p159 = scmp.eq.s32.totalorder %s18, 0
    %p160 = por %p158, %p159
    %p161 = scmp.le.s32.totalorder 1, %s12
    %p162 = scmp.lt.s32.totalorder %s12, 3
    %p163 = pnand %p161, %p162
    %p164 = pneg %p163
    // Predicated region
    $region9: #{flow_block_2d.1} parent=5 // pred_check
      _
    $region10: #{flow_block_2d.1} parent=5 // pred_check_branch
      %166 = sbr.rel (%p163) target = $region12
    $region11: #{flow_block_2d.1} parent=5 // pred_region
      %s167 = ssub.s32 %s12, 1
      // Predicated region
      $region13: #{flow_block_2d.1} parent=11 // pred_check
        %p168 = pneg %p59
      $region14: #{flow_block_2d.1} parent=11 // pred_check_branch
        %170 = sbr.rel (%p168) target = $region16
      $region15: #{flow_block_2d.1} parent=11 // pred_region
        _
      $region16: #{flow_block_2d.1} parent=11 // pred_fallthru
        _
      // Predicated region
      $region17: #{flow_block_2d.1} parent=11 // pred_check
        %p171 = pneg %p80
      $region18: #{flow_block_2d.1} parent=11 // pred_check_branch
        %173 = sbr.rel (%p171) target = $region20
      $region19: #{flow_block_2d.1} parent=11 // pred_region
        _
      $region20: #{flow_block_2d.1} parent=11 // pred_fallthru
        _
      // Predicated region
      $region21: #{flow_block_2d.1} parent=11 // pred_check
        %p174 = pneg %p101
      $region22: #{flow_block_2d.1} parent=11 // pred_check_branch
        %176 = sbr.rel (%p174) target = $region24
      $region23: #{flow_block_2d.1} parent=11 // pred_region
        _
      $region24: #{flow_block_2d.1} parent=11 // pred_fallthru
        _
    $region12: #{flow_block_2d.1} parent=5 // pred_fallthru
      _
    %p177 = scmp.lt.s32.totalorder %s12, 2
    // Predicated region
    $region25: #{flow_block_2d.1} parent=5 // pred_check
      %p178 = pneg %p177
    $region26: #{flow_block_2d.1} parent=5 // pred_check_branch
      %180 = sbr.rel (%p178) target = $region28
    $region27: #{flow_block_2d.1} parent=5 // pred_region
      // Predicated region
      $region29: #{flow_block_2d.1} parent=27 // pred_check
        %p181 = pneg %p32
      $region30: #{flow_block_2d.1} parent=27 // pred_check_branch
        %183 = sbr.rel (%p181) target = $region32
      $region31: #{flow_block_2d.1} parent=27 // pred_region
        %p184 = scmp.lt.s32.totalorder %s12, 1
        %s185 = scalar_select %p184, %s12, 1
        %s186 = smul.addr %s185, 5
        %s187 = smul.addr %s186, 8
        %s188 = scalar_lea.vmem %s0, %s187
      $region32: #{flow_block_2d.1} parent=27 // pred_fallthru
        _
    $region28: #{flow_block_2d.1} parent=5 // pred_fallthru
      _
    %p189 = scmp.le.s32.totalorder 1, %s12
    %p190 = scmp.lt.s32.totalorder %s12, 3
    %p191 = pnand %p189, %p190
    %p192 = pneg %p191
    // Predicated region
    $region33: #{flow_block_2d.1} parent=5 // pred_check
      _
    $region34: #{flow_block_2d.1} parent=5 // pred_check_branch
      %194 = sbr.rel (%p191) target = $region36
    $region35: #{flow_block_2d.1} parent=5 // pred_region
      %s195 = ssub.s32 %s12, 1
      %p196 = scmp.lt.s32.totalorder %s17, 1
      %s197 = scalar_select %p196, %s17, 1
      %s198 = smul.addr %s197, 5
      %s199 = smul.addr %s198, 8
      %s200 = scalar_lea.vmem %s0, %s199
      %p201 = pneg %p38
      %p202 = pneg %p35
      %p203 = pneg %p59
      %p204 = pneg %p56
      %p205 = pneg %p80
      %p206 = pneg %p77
      %p207 = pneg %p101
      %p208 = pneg %p98
      %p209 = pneg %p127
      %p210 = pneg %p124
      %p211 = scmp.lt.s32.totalorder %s17, 1
      %s212 = scalar_select %p211, %s17, 1
      %s213 = smul.addr %s212, 3
      %s214 = smul.addr %s213, 8
      %s215 = scalar_lea.vmem %s4, %s214
      %p216 = pneg %p153
      %p217 = pneg %p150
      %p218 = scmp.lt.s32.totalorder %s17, 1
      %s219 = scalar_select %p218, %s17, 1
      %s220 = smul.addr %s219, 3
      %s221 = smul.addr %s220, 8
      %s222 = scalar_lea.vmem %s5, %s221
      %p223 = scmp.lt.s32.totalorder %s17, 1
      %s224 = scalar_select %p223, %s17, 1
      %s225 = smul.addr %s224, 5
      %s226 = smul.addr %s225, 8
      %s227 = scalar_lea.vmem %s0, %s226
      %p228 = scmp.lt.s32.totalorder %s17, 1
      %s229 = scalar_select %p228, %s17, 1
      %s230 = smul.addr %s229, 3
      %s231 = smul.addr %s230, 8
      %s232 = scalar_lea.vmem %s4, %s231
      %p233 = scmp.lt.s32.totalorder %s17, 1
      %s234 = scalar_select %p233, %s17, 1
      %s235 = smul.addr %s234, 3
      %s236 = smul.addr %s235, 8
      %s237 = scalar_lea.vmem %s5, %s236
      %v238 = vld [vmem:[%s227] sm:$0xff]
      %v239 = vld [vmem:[%s227 + $0x8] sm:$0xff]
      %v240 = vld [vmem:[%s227 + $0x10] sm:$0xff]
      %v241 = vld [vmem:[%s227 + $0x18] sm:$0xff]
      %v242 = vld [vmem:[%s227 + $0x20] sm:$0xff]
      %v243 = vld [vmem:[%s3] sm:$0x1f]
      %249 = vrot.lane.b32.xlu0 %v238, 127
      %v250 = vpop.permute.xlu0 %249
      %251 = vrot.lane.b32.xlu0 %v239, 127
      %v252 = vpop.permute.xlu0 %251
      %253 = vrot.lane.b32.xlu0 %v240, 127
      %v254 = vpop.permute.xlu0 %253
      %255 = vrot.lane.b32.xlu0 %v241, 127
      %v256 = vpop.permute.xlu0 %255
      %257 = vrot.lane.b32.xlu0 %v242, 127
      %v258 = vpop.permute.xlu0 %257
      %vm259 = vcmask 1039360
      %v260 = vsel %vm259, %v250, %v252
      %v261 = vsel %vm259, %v252, %v254
      %v262 = vsel %vm259, %v254, %v256
      %v263 = vsel %vm259, %v256, %v258
      %268 = vrot.lane.b32.xlu0 %v238, 126
      %v269 = vpop.permute.xlu0 %268
      %270 = vrot.lane.b32.xlu0 %v239, 126
      %v271 = vpop.permute.xlu0 %270
      %272 = vrot.lane.b32.xlu0 %v240, 126
      %v273 = vpop.permute.xlu0 %272
      %274 = vrot.lane.b32.xlu0 %v241, 126
      %v275 = vpop.permute.xlu0 %274
      %276 = vrot.lane.b32.xlu0 %v242, 126
      %v277 = vpop.permute.xlu0 %276
      %vm278 = vcmask 1031168
      %v279 = vsel %vm278, %v269, %v271
      %v280 = vsel %vm278, %v271, %v273
      %v281 = vsel %vm278, %v273, %v275
      %v282 = vsel %vm278, %v275, %v277
      %287 = vrot.lane.b32.xlu0 %v238, 110
      %v288 = vpop.permute.xlu0 %287
      %289 = vrot.lane.b32.xlu0 %v239, 110
      %v290 = vpop.permute.xlu0 %289
      %291 = vrot.lane.b32.xlu0 %v240, 110
      %v292 = vpop.permute.xlu0 %291
      %293 = vrot.lane.b32.xlu0 %v241, 110
      %v294 = vpop.permute.xlu0 %293
      %295 = vrot.lane.b32.xlu0 %v242, 110
      %v296 = vpop.permute.xlu0 %295
      %vm297 = vcmask 900096
      %v298 = vsel %vm297, %v288, %v290
      %v299 = vsel %vm297, %v290, %v292
      %v300 = vsel %vm297, %v292, %v294
      %v301 = vsel %vm297, %v294, %v296
      %306 = vrot.lane.b32.xlu0 %v238, 109
      %v307 = vpop.permute.xlu0 %306
      %308 = vrot.lane.b32.xlu0 %v239, 109
      %v309 = vpop.permute.xlu0 %308
      %310 = vrot.lane.b32.xlu0 %v240, 109
      %v311 = vpop.permute.xlu0 %310
      %312 = vrot.lane.b32.xlu0 %v241, 109
      %v313 = vpop.permute.xlu0 %312
      %314 = vrot.lane.b32.xlu0 %v242, 109
      %v315 = vpop.permute.xlu0 %314
      %vm316 = vcmask 891904
      %v317 = vsel %vm316, %v307, %v309
      %v318 = vsel %vm316, %v309, %v311
      %v319 = vsel %vm316, %v311, %v313
      %v320 = vsel %vm316, %v313, %v315
      %325 = vrot.lane.b32.xlu0 %v238, 108
      %v326 = vpop.permute.xlu0 %325
      %327 = vrot.lane.b32.xlu0 %v239, 108
      %v328 = vpop.permute.xlu0 %327
      %329 = vrot.lane.b32.xlu0 %v240, 108
      %v330 = vpop.permute.xlu0 %329
      %331 = vrot.lane.b32.xlu0 %v241, 108
      %v332 = vpop.permute.xlu0 %331
      %333 = vrot.lane.b32.xlu0 %v242, 108
      %v334 = vpop.permute.xlu0 %333
      %vm335 = vcmask 883712
      %v336 = vsel %vm335, %v326, %v328
      %v337 = vsel %vm335, %v328, %v330
      %v338 = vsel %vm335, %v330, %v332
      %v339 = vsel %vm335, %v332, %v334
      %344 = vrot.lane.b32.xlu0 %v238, 92
      %v345 = vpop.permute.xlu0 %344
      %346 = vrot.lane.b32.xlu0 %v239, 92
      %v347 = vpop.permute.xlu0 %346
      %348 = vrot.lane.b32.xlu0 %v240, 92
      %v349 = vpop.permute.xlu0 %348
      %350 = vrot.lane.b32.xlu0 %v241, 92
      %v351 = vpop.permute.xlu0 %350
      %352 = vrot.lane.b32.xlu0 %v242, 92
      %v353 = vpop.permute.xlu0 %352
      %vm354 = vcmask 752640
      %v355 = vsel %vm354, %v345, %v347
      %v356 = vsel %vm354, %v347, %v349
      %v357 = vsel %vm354, %v349, %v351
      %v358 = vsel %vm354, %v351, %v353
      %363 = vrot.lane.b32.xlu0 %v238, 91
      %v364 = vpop.permute.xlu0 %363
      %365 = vrot.lane.b32.xlu0 %v239, 91
      %v366 = vpop.permute.xlu0 %365
      %367 = vrot.lane.b32.xlu0 %v240, 91
      %v368 = vpop.permute.xlu0 %367
      %369 = vrot.lane.b32.xlu0 %v241, 91
      %v370 = vpop.permute.xlu0 %369
      %371 = vrot.lane.b32.xlu0 %v242, 91
      %v372 = vpop.permute.xlu0 %371
      %vm373 = vcmask 744448
      %v374 = vsel %vm373, %v364, %v366
      %v375 = vsel %vm373, %v366, %v368
      %v376 = vsel %vm373, %v368, %v370
      %v377 = vsel %vm373, %v370, %v372
      %382 = vrot.lane.b32.xlu0 %v238, 90
      %v383 = vpop.permute.xlu0 %382
      %384 = vrot.lane.b32.xlu0 %v239, 90
      %v385 = vpop.permute.xlu0 %384
      %386 = vrot.lane.b32.xlu0 %v240, 90
      %v387 = vpop.permute.xlu0 %386
      %388 = vrot.lane.b32.xlu0 %v241, 90
      %v389 = vpop.permute.xlu0 %388
      %390 = vrot.lane.b32.xlu0 %v242, 90
      %v391 = vpop.permute.xlu0 %390
      %vm392 = vcmask 736256
      %v393 = vsel %vm392, %v383, %v385
      %v394 = vsel %vm392, %v385, %v387
      %v395 = vsel %vm392, %v387, %v389
      %v396 = vsel %vm392, %v389, %v391
      %v401 = vld [vmem:[%s1] sm:$0xff]
      %vm402 = vcmask 588800
      %v404 = vsel %vm402, %v401, 0
      %v406 = vand.u32 %v239, 4294901760
      %407 = vmatprep.subr.mxu0 %v406
      %v408 = vand.u32 %v238, 4294901760
      %409 = vmatpush1.msra.mxu0 %v408
      %v410 = vand.u32 %v261, 4294901760
      %411 = vmatprep.subr.mxu0 %v410
      %v412 = vand.u32 %v260, 4294901760
      %413 = vmatpush1.msra.mxu0 %v412
      %v414 = vand.u32 %v280, 4294901760
      %415 = vmatprep.subr.mxu0 %v414
      %v416 = vand.u32 %v279, 4294901760
      %417 = vmatpush1.msra.mxu0 %v416
      %v418 = vand.u32 %v299, 4294901760
      %419 = vmatprep.subr.mxu0 %v418
      %v420 = vand.u32 %v298, 4294901760
      %421 = vmatpush1.msra.mxu0 %v420
      %v422 = vand.u32 %v318, 4294901760
      %423 = vmatprep.subr.mxu0 %v422
      %v424 = vand.u32 %v317, 4294901760
      %425 = vmatpush1.msra.mxu0 %v424
      %v426 = vand.u32 %v337, 4294901760
      %427 = vmatprep.subr.mxu0 %v426
      %v428 = vand.u32 %v336, 4294901760
      %429 = vmatpush1.msra.mxu0 %v428
      %v430 = vand.u32 %v356, 4294901760
      %431 = vmatprep.subr.mxu0 %v430
      %v432 = vand.u32 %v355, 4294901760
      %433 = vmatpush1.msra.mxu0 %v432
      %v434 = vand.u32 %v375, 4294901760
      %435 = vmatprep.subr.mxu0 %v434
      %v436 = vand.u32 %v374, 4294901760
      %437 = vmatpush1.msra.mxu0 %v436
      %v438 = vand.u32 %v394, 4294901760
      %439 = vmatprep.subr.mxu0 %v438
      %v440 = vand.u32 %v393, 4294901760
      %441 = vmatpush1.msra.mxu0 %v440
      %442 = vmatprep.subr.mxu0 0.0
      %443 = vmatpush1.msra.mxu0 0.0
      %444 = vmatprep.subr.mxu0 0.0
      %445 = vmatpush1.msra.mxu0 0.0
      %446 = vmatprep.subr.mxu0 0.0
      %447 = vmatpush1.msra.mxu0 0.0
      %448 = vmatprep.subr.mxu0 0.0
      %449 = vmatpush1.msra.mxu0 0.0
      %450 = vmatprep.subr.mxu0 0.0
      %451 = vmatpush1.msra.mxu0 0.0
      %452 = vmatprep.subr.mxu0 0.0
      %453 = vmatpush1.msra.mxu0 0.0
      %454 = vmatprep.subr.mxu0 0.0
      %455 = vmatpush1.msra.mxu0 0.0
      %456 = vmatprep.subr.mxu0 0.0
      %457 = vmatpush1.msra.mxu0 0.0
      %458 = vmatprep.subr.mxu0 0.0
      %459 = vmatpush1.msra.mxu0 0.0
      %460 = vmatprep.subr.mxu0 0.0
      %461 = vmatpush1.msra.mxu0 0.0
      %462 = vmatprep.subr.mxu0 0.0
      %463 = vmatpush1.msra.mxu0 0.0
      %464 = vmatprep.subr.mxu0 0.0
      %465 = vmatpush1.msra.mxu0 0.0
      %466 = vmatprep.subr.mxu0 0.0
      %467 = vmatpush1.msra.mxu0 0.0
      %468 = vmatprep.subr.mxu0 0.0
      %469 = vmatpush1.msra.mxu0 0.0
      %470 = vmatprep.subr.mxu0 0.0
      %471 = vmatpush1.msra.mxu0 0.0
      %472 = vmatprep.subr.mxu0 0.0
      %473 = vmatpush1.msra.mxu0 0.0
      %474 = vmatprep.subr.mxu0 0.0
      %475 = vmatpush1.msra.mxu0 0.0
      %476 = vmatprep.subr.mxu0 0.0
      %477 = vmatpush1.msra.mxu0 0.0
      %478 = vmatprep.subr.mxu0 0.0
      %479 = vmatpush1.msra.mxu0 0.0
      %480 = vmatprep.subr.mxu0 0.0
      %481 = vmatpush1.msra.mxu0 0.0
      %482 = vmatprep.subr.mxu0 0.0
      %483 = vmatpush1.msra.mxu0 0.0
      %484 = vmatprep.subr.mxu0 0.0
      %485 = vmatpush1.msra.mxu0 0.0
      %486 = vmatprep.subr.mxu0 0.0
      %487 = vmatpush1.msra.mxu0 0.0
      %488 = vmatprep.mubr.f32.mxu0 0.0
      %v489 = vand.u32 %v404, 4294901760
      %v490 = vsub.f32 %v404, %v489
      %v491 = vand.u32 %v490, 4294901760
      %v492 = vsub.f32 %v490, %v491
      %v493 = vand.u32 %v492, 4294901760
      %494 = vmatmul.mubr.f32.gmra.mrb[0].mxu0 %v493
      %v495 = vpop.f32.mrb[0].mxu0
      %v496 = vadd.f32 0.0, %v495
      %v497 = vpop.f32.mrb[0].mxu0
      %v498 = vadd.f32 0.0, %v497
      %499 = vdwg.mxu0
      %v500 = vand.u32 %v239, 4294901760
      %v501 = vsub.f32 %v239, %v500
      %v502 = vand.u32 %v501, 4294901760
      %v503 = vsub.f32 %v501, %v502
      %v504 = vand.u32 %v503, 4294901760
      %505 = vmatprep.subr.mxu0 %v504
      %v506 = vand.u32 %v238, 4294901760
      %v507 = vsub.f32 %v238, %v506
      %v508 = vand.u32 %v507, 4294901760
      %v509 = vsub.f32 %v507, %v508
      %v510 = vand.u32 %v509, 4294901760
      %511 = vmatpush1.msra.mxu0 %v510
      %v512 = vand.u32 %v261, 4294901760
      %v513 = vsub.f32 %v261, %v512
      %v514 = vand.u32 %v513, 4294901760
      %v515 = vsub.f32 %v513, %v514
      %v516 = vand.u32 %v515, 4294901760
      %517 = vmatprep.subr.mxu0 %v516
      %v518 = vand.u32 %v260, 4294901760
      %v519 = vsub.f32 %v260, %v518
      %v520 = vand.u32 %v519, 4294901760
      %v521 = vsub.f32 %v519, %v520
      %v522 = vand.u32 %v521, 4294901760
      %523 = vmatpush1.msra.mxu0 %v522
      %v524 = vand.u32 %v280, 4294901760
      %v525 = vsub.f32 %v280, %v524
      %v526 = vand.u32 %v525, 4294901760
      %v527 = vsub.f32 %v525, %v526
      %v528 = vand.u32 %v527, 4294901760
      %529 = vmatprep.subr.mxu0 %v528
      %v530 = vand.u32 %v279, 4294901760
      %v531 = vsub.f32 %v279, %v530
      %v532 = vand.u32 %v531, 4294901760
      %v533 = vsub.f32 %v531, %v532
      %v534 = vand.u32 %v533, 4294901760
      %535 = vmatpush1.msra.mxu0 %v534
      %v536 = vand.u32 %v299, 4294901760
      %v537 = vsub.f32 %v299, %v536
      %v538 = vand.u32 %v537, 4294901760
      %v539 = vsub.f32 %v537, %v538
      %v540 = vand.u32 %v539, 4294901760
      %541 = vmatprep.subr.mxu0 %v540
      %v542 = vand.u32 %v298, 4294901760
      %v543 = vsub.f32 %v298, %v542
      %v544 = vand.u32 %v543, 4294901760
      %v545 = vsub.f32 %v543, %v544
      %v546 = vand.u32 %v545, 4294901760
      %547 = vmatpush1.msra.mxu0 %v546
      %v548 = vand.u32 %v318, 4294901760
      %v549 = vsub.f32 %v318, %v548
      %v550 = vand.u32 %v549, 4294901760
      %v551 = vsub.f32 %v549, %v550
      %v552 = vand.u32 %v551, 4294901760
      %553 = vmatprep.subr.mxu0 %v552
      %v554 = vand.u32 %v317, 4294901760
      %v555 = vsub.f32 %v317, %v554
      %v556 = vand.u32 %v555, 4294901760
      %v557 = vsub.f32 %v555, %v556
      %v558 = vand.u32 %v557, 4294901760
      %559 = vmatpush1.msra.mxu0 %v558
      %v560 = vand.u32 %v337, 4294901760
      %v561 = vsub.f32 %v337, %v560
      %v562 = vand.u32 %v561, 4294901760
      %v563 = vsub.f32 %v561, %v562
      %v564 = vand.u32 %v563, 4294901760
      %565 = vmatprep.subr.mxu0 %v564
      %v566 = vand.u32 %v336, 4294901760
      %v567 = vsub.f32 %v336, %v566
      %v568 = vand.u32 %v567, 4294901760
      %v569 = vsub.f32 %v567, %v568
      %v570 = vand.u32 %v569, 4294901760
      %571 = vmatpush1.msra.mxu0 %v570
      %v572 = vand.u32 %v356, 4294901760
      %v573 = vsub.f32 %v356, %v572
      %v574 = vand.u32 %v573, 4294901760
      %v575 = vsub.f32 %v573, %v574
      %v576 = vand.u32 %v575, 4294901760
      %577 = vmatprep.subr.mxu0 %v576
      %v578 = vand.u32 %v355, 4294901760
      %v579 = vsub.f32 %v355, %v578
      %v580 = vand.u32 %v579, 4294901760
      %v581 = vsub.f32 %v579, %v580
      %v582 = vand.u32 %v581, 4294901760
      %583 = vmatpush1.msra.mxu0 %v582
      %v584 = vand.u32 %v375, 4294901760
      %v585 = vsub.f32 %v375, %v584
      %v586 = vand.u32 %v585, 4294901760
      %v587 = vsub.f32 %v585, %v586
      %v588 = vand.u32 %v587, 4294901760
      %589 = vmatprep.subr.mxu0 %v588
      %v590 = vand.u32 %v374, 4294901760
      %v591 = vsub.f32 %v374, %v590
      %v592 = vand.u32 %v591, 4294901760
      %v593 = vsub.f32 %v591, %v592
      %v594 = vand.u32 %v593, 4294901760
      %595 = vmatpush1.msra.mxu0 %v594
      %v596 = vand.u32 %v394, 4294901760
      %v597 = vsub.f32 %v394, %v596
      %v598 = vand.u32 %v597, 4294901760
      %v599 = vsub.f32 %v597, %v598
      %v600 = vand.u32 %v599, 4294901760
      %601 = vmatprep.subr.mxu0 %v600
      %v602 = vand.u32 %v393, 4294901760
      %v603 = vsub.f32 %v393, %v602
      %v604 = vand.u32 %v603, 4294901760
      %v605 = vsub.f32 %v603, %v604
      %v606 = vand.u32 %v605, 4294901760
      %607 = vmatpush1.msra.mxu0 %v606
      %608 = vmatprep.subr.mxu0 0.0
      %609 = vmatpush1.msra.mxu0 0.0
      %610 = vmatprep.subr.mxu0 0.0
      %611 = vmatpush1.msra.mxu0 0.0
      %612 = vmatprep.subr.mxu0 0.0
      %613 = vmatpush1.msra.mxu0 0.0
      %614 = vmatprep.subr.mxu0 0.0
      %615 = vmatpush1.msra.mxu0 0.0
      %616 = vmatprep.subr.mxu0 0.0
      %617 = vmatpush1.msra.mxu0 0.0
      %618 = vmatprep.subr.mxu0 0.0
      %619 = vmatpush1.msra.mxu0 0.0
      %620 = vmatprep.subr.mxu0 0.0
      %621 = vmatpush1.msra.mxu0 0.0
      %622 = vmatprep.subr.mxu0 0.0
      %623 = vmatpush1.msra.mxu0 0.0
      %624 = vmatprep.subr.mxu0 0.0
      %625 = vmatpush1.msra.mxu0 0.0
      %626 = vmatprep.subr.mxu0 0.0
      %627 = vmatpush1.msra.mxu0 0.0
      %628 = vmatprep.subr.mxu0 0.0
      %629 = vmatpush1.msra.mxu0 0.0
      %630 = vmatprep.subr.mxu0 0.0
      %631 = vmatpush1.msra.mxu0 0.0
      %632 = vmatprep.subr.mxu0 0.0
      %633 = vmatpush1.msra.mxu0 0.0
      %634 = vmatprep.subr.mxu0 0.0
      %635 = vmatpush1.msra.mxu0 0.0
      %636 = vmatprep.subr.mxu0 0.0
      %637 = vmatpush1.msra.mxu0 0.0
      %638 = vmatprep.subr.mxu0 0.0
      %639 = vmatpush1.msra.mxu0 0.0
      %640 = vmatprep.subr.mxu0 0.0
      %641 = vmatpush1.msra.mxu0 0.0
      %642 = vmatprep.subr.mxu0 0.0
      %643 = vmatpush1.msra.mxu0 0.0
      %644 = vmatprep.subr.mxu0 0.0
      %645 = vmatpush1.msra.mxu0 0.0
      %646 = vmatprep.subr.mxu0 0.0
      %647 = vmatpush1.msra.mxu0 0.0
      %648 = vmatprep.subr.mxu0 0.0
      %649 = vmatpush1.msra.mxu0 0.0
      %650 = vmatprep.subr.mxu0 0.0
      %651 = vmatpush1.msra.mxu0 0.0
      %652 = vmatprep.subr.mxu0 0.0
      %653 = vmatpush1.msra.mxu0 0.0
      %654 = vmatprep.mubr.f32.mxu0 0.0
      %v655 = vand.u32 %v404, 4294901760
      %656 = vmatmul.mubr.f32.gmra.mrb[0].mxu0 %v655
      %v657 = vpop.f32.mrb[0].mxu0
      %v658 = vadd.f32 %v496, %v657
      %v659 = vpop.f32.mrb[0].mxu0
      %v660 = vadd.f32 %v498, %v659
      %661 = vdwg.mxu0
      %v662 = vand.u32 %v239, 4294901760
      %v663 = vsub.f32 %v239, %v662
      %664 = vmatprep.subr.mxu0 %v663
      %v665 = vand.u32 %v238, 4294901760
      %v666 = vsub.f32 %v238, %v665
      %667 = vmatpush1.msra.mxu0 %v666
      %v668 = vand.u32 %v261, 4294901760
      %v669 = vsub.f32 %v261, %v668
      %670 = vmatprep.subr.mxu0 %v669
      %v671 = vand.u32 %v260, 4294901760
      %v672 = vsub.f32 %v260, %v671
      %673 = vmatpush1.msra.mxu0 %v672
      %v674 = vand.u32 %v280, 4294901760
      %v675 = vsub.f32 %v280, %v674
      %676 = vmatprep.subr.mxu0 %v675
      %v677 = vand.u32 %v279, 4294901760
      %v678 = vsub.f32 %v279, %v677
      %679 = vmatpush1.msra.mxu0 %v678
      %v680 = vand.u32 %v299, 4294901760
      %v681 = vsub.f32 %v299, %v680
      %682 = vmatprep.subr.mxu0 %v681
      %v683 = vand.u32 %v298, 4294901760
      %v684 = vsub.f32 %v298, %v683
      %685 = vmatpush1.msra.mxu0 %v684
      %v686 = vand.u32 %v318, 4294901760
      %v687 = vsub.f32 %v318, %v686
      %688 = vmatprep.subr.mxu0 %v687
      %v689 = vand.u32 %v317, 4294901760
      %v690 = vsub.f32 %v317, %v689
      %691 = vmatpush1.msra.mxu0 %v690
      %v692 = vand.u32 %v337, 4294901760
      %v693 = vsub.f32 %v337, %v692
      %694 = vmatprep.subr.mxu0 %v693
      %v695 = vand.u32 %v336, 4294901760
      %v696 = vsub.f32 %v336, %v695
      %697 = vmatpush1.msra.mxu0 %v696
      %v698 = vand.u32 %v356, 4294901760
      %v699 = vsub.f32 %v356, %v698
      %700 = vmatprep.subr.mxu0 %v699
      %v701 = vand.u32 %v355, 4294901760
      %v702 = vsub.f32 %v355, %v701
      %703 = vmatpush1.msra.mxu0 %v702
      %v704 = vand.u32 %v375, 4294901760
      %v705 = vsub.f32 %v375, %v704
      %706 = vmatprep.subr.mxu0 %v705
      %v707 = vand.u32 %v374, 4294901760
      %v708 = vsub.f32 %v374, %v707
      %709 = vmatpush1.msra.mxu0 %v708
      %v710 = vand.u32 %v394, 4294901760
      %v711 = vsub.f32 %v394, %v710
      %712 = vmatprep.subr.mxu0 %v711
      %v713 = vand.u32 %v393, 4294901760
      %v714 = vsub.f32 %v393, %v713
      %715 = vmatpush1.msra.mxu0 %v714
      %716 = vmatprep.subr.mxu0 0.0
      %717 = vmatpush1.msra.mxu0 0.0
      %718 = vmatprep.subr.mxu0 0.0
      %719 = vmatpush1.msra.mxu0 0.0
      %720 = vmatprep.subr.mxu0 0.0
      %721 = vmatpush1.msra.mxu0 0.0
      %722 = vmatprep.subr.mxu0 0.0
      %723 = vmatpush1.msra.mxu0 0.0
      %724 = vmatprep.subr.mxu0 0.0
      %725 = vmatpush1.msra.mxu0 0.0
      %726 = vmatprep.subr.mxu0 0.0
      %727 = vmatpush1.msra.mxu0 0.0
      %728 = vmatprep.subr.mxu0 0.0
      %729 = vmatpush1.msra.mxu0 0.0
      %730 = vmatprep.subr.mxu0 0.0
      %731 = vmatpush1.msra.mxu0 0.0
      %732 = vmatprep.subr.mxu0 0.0
      %733 = vmatpush1.msra.mxu0 0.0
      %734 = vmatprep.subr.mxu0 0.0
      %735 = vmatpush1.msra.mxu0 0.0
      %736 = vmatprep.subr.mxu0 0.0
      %737 = vmatpush1.msra.mxu0 0.0
      %738 = vmatprep.subr.mxu0 0.0
      %739 = vmatpush1.msra.mxu0 0.0
      %740 = vmatprep.subr.mxu0 0.0
      %741 = vmatpush1.msra.mxu0 0.0
      %742 = vmatprep.subr.mxu0 0.0
      %743 = vmatpush1.msra.mxu0 0.0
      %744 = vmatprep.subr.mxu0 0.0
      %745 = vmatpush1.msra.mxu0 0.0
      %746 = vmatprep.subr.mxu0 0.0
      %747 = vmatpush1.msra.mxu0 0.0
      %748 = vmatprep.subr.mxu0 0.0
      %749 = vmatpush1.msra.mxu0 0.0
      %750 = vmatprep.subr.mxu0 0.0
      %751 = vmatpush1.msra.mxu0 0.0
      %752 = vmatprep.subr.mxu0 0.0
      %753 = vmatpush1.msra.mxu0 0.0
      %754 = vmatprep.subr.mxu0 0.0
      %755 = vmatpush1.msra.mxu0 0.0
      %756 = vmatprep.subr.mxu0 0.0
      %757 = vmatpush1.msra.mxu0 0.0
      %758 = vmatprep.subr.mxu0 0.0
      %759 = vmatpush1.msra.mxu0 0.0
      %760 = vmatprep.subr.mxu0 0.0
      %761 = vmatpush1.msra.mxu0 0.0
      %762 = vmatprep.mubr.f32.mxu0 0.0
      %v763 = vand.u32 %v404, 4294901760
      %v764 = vsub.f32 %v404, %v763
      %765 = vmatmul.mubr.f32.gmra.mrb[0].mxu0 %v764
      %v766 = vpop.f32.mrb[0].mxu0
      %v767 = vadd.f32 %v658, %v766
      %v768 = vpop.f32.mrb[0].mxu0
      %v769 = vadd.f32 %v660, %v768
      %770 = vdwg.mxu0
      %v771 = vand.u32 %v239, 4294901760
      %772 = vmatprep.subr.mxu0 %v771
      %v773 = vand.u32 %v238, 4294901760
      %774 = vmatpush1.msra.mxu0 %v773
      %v775 = vand.u32 %v261, 4294901760
      %776 = vmatprep.subr.mxu0 %v775
      %v777 = vand.u32 %v260, 4294901760
      %778 = vmatpush1.msra.mxu0 %v777
      %v779 = vand.u32 %v280, 4294901760
      %780 = vmatprep.subr.mxu0 %v779
      %v781 = vand.u32 %v279, 4294901760
      %782 = vmatpush1.msra.mxu0 %v781
      %v783 = vand.u32 %v299, 4294901760
      %784 = vmatprep.subr.mxu0 %v783
      %v785 = vand.u32 %v298, 4294901760
      %786 = vmatpush1.msra.mxu0 %v785
      %v787 = vand.u32 %v318, 4294901760
      %788 = vmatprep.subr.mxu0 %v787
      %v789 = vand.u32 %v317, 4294901760
      %790 = vmatpush1.msra.mxu0 %v789
      %v791 = vand.u32 %v337, 4294901760
      %792 = vmatprep.subr.mxu0 %v791
      %v793 = vand.u32 %v336, 4294901760
      %794 = vmatpush1.msra.mxu0 %v793
      %v795 = vand.u32 %v356, 4294901760
      %796 = vmatprep.subr.mxu0 %v795
      %v797 = vand.u32 %v355, 4294901760
      %798 = vmatpush1.msra.mxu0 %v797
      %v799 = vand.u32 %v375, 4294901760
      %800 = vmatprep.subr.mxu0 %v799
      %v801 = vand.u32 %v374, 4294901760
      %802 = vmatpush1.msra.mxu0 %v801
      %v803 = vand.u32 %v394, 4294901760
      %804 = vmatprep.subr.mxu0 %v803
      %v805 = vand.u32 %v393, 4294901760
      %806 = vmatpush1.msra.mxu0 %v805
      %807 = vmatprep.subr.mxu0 0.0
      %808 = vmatpush1.msra.mxu0 0.0
      %809 = vmatprep.subr.mxu0 0.0
      %810 = vmatpush1.msra.mxu0 0.0
      %811 = vmatprep.subr.mxu0 0.0
      %812 = vmatpush1.msra.mxu0 0.0
      %813 = vmatprep.subr.mxu0 0.0
      %814 = vmatpush1.msra.mxu0 0.0
      %815 = vmatprep.subr.mxu0 0.0
      %816 = vmatpush1.msra.mxu0 0.0
      %817 = vmatprep.subr.mxu0 0.0
      %818 = vmatpush1.msra.mxu0 0.0
      %819 = vmatprep.subr.mxu0 0.0
      %820 = vmatpush1.msra.mxu0 0.0
      %821 = vmatprep.subr.mxu0 0.0
      %822 = vmatpush1.msra.mxu0 0.0
      %823 = vmatprep.subr.mxu0 0.0
      %824 = vmatpush1.msra.mxu0 0.0
      %825 = vmatprep.subr.mxu0 0.0
      %826 = vmatpush1.msra.mxu0 0.0
      %827 = vmatprep.subr.mxu0 0.0
      %828 = vmatpush1.msra.mxu0 0.0
      %829 = vmatprep.subr.mxu0 0.0
      %830 = vmatpush1.msra.mxu0 0.0
      %831 = vmatprep.subr.mxu0 0.0
      %832 = vmatpush1.msra.mxu0 0.0
      %833 = vmatprep.subr.mxu0 0.0
      %834 = vmatpush1.msra.mxu0 0.0
      %835 = vmatprep.subr.mxu0 0.0
      %836 = vmatpush1.msra.mxu0 0.0
      %837 = vmatprep.subr.mxu0 0.0
      %838 = vmatpush1.msra.mxu0 0.0
      %839 = vmatprep.subr.mxu0 0.0
      %840 = vmatpush1.msra.mxu0 0.0
      %841 = vmatprep.subr.mxu0 0.0
      %842 = vmatpush1.msra.mxu0 0.0
      %843 = vmatprep.subr.mxu0 0.0
      %844 = vmatpush1.msra.mxu0 0.0
      %845 = vmatprep.subr.mxu0 0.0
      %846 = vmatpush1.msra.mxu0 0.0
      %847 = vmatprep.subr.mxu0 0.0
      %848 = vmatpush1.msra.mxu0 0.0
      %849 = vmatprep.subr.mxu0 0.0
      %850 = vmatpush1.msra.mxu0 0.0
      %851 = vmatprep.subr.mxu0 0.0
      %852 = vmatpush1.msra.mxu0 0.0
      %853 = vmatprep.mubr.f32.mxu0 0.0
      %v854 = vand.u32 %v404, 4294901760
      %v855 = vsub.f32 %v404, %v854
      %v856 = vand.u32 %v855, 4294901760
      %857 = vmatmul.mubr.f32.gmra.mrb[0].mxu0 %v856
      %v858 = vpop.f32.mrb[0].mxu0
      %v859 = vadd.f32 %v767, %v858
      %v860 = vpop.f32.mrb[0].mxu0
      %v861 = vadd.f32 %v769, %v860
      %862 = vdwg.mxu0
      %v863 = vand.u32 %v239, 4294901760
      %v864 = vsub.f32 %v239, %v863
      %v865 = vand.u32 %v864, 4294901760
      %866 = vmatprep.subr.mxu0 %v865
      %v867 = vand.u32 %v238, 4294901760
      %v868 = vsub.f32 %v238, %v867
      %v869 = vand.u32 %v868, 4294901760
      %870 = vmatpush1.msra.mxu0 %v869
      %v871 = vand.u32 %v261, 4294901760
      %v872 = vsub.f32 %v261, %v871
      %v873 = vand.u32 %v872, 4294901760
      %874 = vmatprep.subr.mxu0 %v873
      %v875 = vand.u32 %v260, 4294901760
      %v876 = vsub.f32 %v260, %v875
      %v877 = vand.u32 %v876, 4294901760
      %878 = vmatpush1.msra.mxu0 %v877
      %v879 = vand.u32 %v280, 4294901760
      %v880 = vsub.f32 %v280, %v879
      %v881 = vand.u32 %v880, 4294901760
      %882 = vmatprep.subr.mxu0 %v881
      %v883 = vand.u32 %v279, 4294901760
      %v884 = vsub.f32 %v279, %v883
      %v885 = vand.u32 %v884, 4294901760
      %886 = vmatpush1.msra.mxu0 %v885
      %v887 = vand.u32 %v299, 4294901760
      %v888 = vsub.f32 %v299, %v887
      %v889 = vand.u32 %v888, 4294901760
      %890 = vmatprep.subr.mxu0 %v889
      %v891 = vand.u32 %v298, 4294901760
      %v892 = vsub.f32 %v298, %v891
      %v893 = vand.u32 %v892, 4294901760
      %894 = vmatpush1.msra.mxu0 %v893
      %v895 = vand.u32 %v318, 4294901760
      %v896 = vsub.f32 %v318, %v895
      %v897 = vand.u32 %v896, 4294901760
      %898 = vmatprep.subr.mxu0 %v897
      %v899 = vand.u32 %v317, 4294901760
      %v900 = vsub.f32 %v317, %v899
      %v901 = vand.u32 %v900, 4294901760
      %902 = vmatpush1.msra.mxu0 %v901
      %v903 = vand.u32 %v337, 4294901760
      %v904 = vsub.f32 %v337, %v903
      %v905 = vand.u32 %v904, 4294901760
      %906 = vmatprep.subr.mxu0 %v905
      %v907 = vand.u32 %v336, 4294901760
      %v908 = vsub.f32 %v336, %v907
      %v909 = vand.u32 %v908, 4294901760
      %910 = vmatpush1.msra.mxu0 %v909
      %v911 = vand.u32 %v356, 4294901760
      %v912 = vsub.f32 %v356, %v911
      %v913 = vand.u32 %v912, 4294901760
      %914 = vmatprep.subr.mxu0 %v913
      %v915 = vand.u32 %v355, 4294901760
      %v916 = vsub.f32 %v355, %v915
      %v917 = vand.u32 %v916, 4294901760
      %918 = vmatpush1.msra.mxu0 %v917
      %v919 = vand.u32 %v375, 4294901760
      %v920 = vsub.f32 %v375, %v919
      %v921 = vand.u32 %v920, 4294901760
      %922 = vmatprep.subr.mxu0 %v921
      %v923 = vand.u32 %v374, 4294901760
      %v924 = vsub.f32 %v374, %v923
      %v925 = vand.u32 %v924, 4294901760
      %926 = vmatpush1.msra.mxu0 %v925
      %v927 = vand.u32 %v394, 4294901760
      %v928 = vsub.f32 %v394, %v927
      %v929 = vand.u32 %v928, 4294901760
      %930 = vmatprep.subr.mxu0 %v929
      %v931 = vand.u32 %v393, 4294901760
      %v932 = vsub.f32 %v393, %v931
      %v933 = vand.u32 %v932, 4294901760
      %934 = vmatpush1.msra.mxu0 %v933
      %935 = vmatprep.subr.mxu0 0.0
      %936 = vmatpush1.msra.mxu0 0.0
      %937 = vmatprep.subr.mxu0 0.0
      %938 = vmatpush1.msra.mxu0 0.0
      %939 = vmatprep.subr.mxu0 0.0
      %940 = vmatpush1.msra.mxu0 0.0
      %941 = vmatprep.subr.mxu0 0.0
      %942 = vmatpush1.msra.mxu0 0.0
      %943 = vmatprep.subr.mxu0 0.0
      %944 = vmatpush1.msra.mxu0 0.0
      %945 = vmatprep.subr.mxu0 0.0
      %946 = vmatpush1.msra.mxu0 0.0
      %947 = vmatprep.subr.mxu0 0.0
      %948 = vmatpush1.msra.mxu0 0.0
      %949 = vmatprep.subr.mxu0 0.0
      %950 = vmatpush1.msra.mxu0 0.0
      %951 = vmatprep.subr.mxu0 0.0
      %952 = vmatpush1.msra.mxu0 0.0
      %953 = vmatprep.subr.mxu0 0.0
      %954 = vmatpush1.msra.mxu0 0.0
      %955 = vmatprep.subr.mxu0 0.0
      %956 = vmatpush1.msra.mxu0 0.0
      %957 = vmatprep.subr.mxu0 0.0
      %958 = vmatpush1.msra.mxu0 0.0
      %959 = vmatprep.subr.mxu0 0.0
      %960 = vmatpush1.msra.mxu0 0.0
      %961 = vmatprep.subr.mxu0 0.0
      %962 = vmatpush1.msra.mxu0 0.0
      %963 = vmatprep.subr.mxu0 0.0
      %964 = vmatpush1.msra.mxu0 0.0
      %965 = vmatprep.subr.mxu0 0.0
      %966 = vmatpush1.msra.mxu0 0.0
      %967 = vmatprep.subr.mxu0 0.0
      %968 = vmatpush1.msra.mxu0 0.0
      %969 = vmatprep.subr.mxu0 0.0
      %970 = vmatpush1.msra.mxu0 0.0
      %971 = vmatprep.subr.mxu0 0.0
      %972 = vmatpush1.msra.mxu0 0.0
      %973 = vmatprep.subr.mxu0 0.0
      %974 = vmatpush1.msra.mxu0 0.0
      %975 = vmatprep.subr.mxu0 0.0
      %976 = vmatpush1.msra.mxu0 0.0
      %977 = vmatprep.subr.mxu0 0.0
      %978 = vmatpush1.msra.mxu0 0.0
      %979 = vmatprep.subr.mxu0 0.0
      %980 = vmatpush1.msra.mxu0 0.0
      %981 = vmatprep.mubr.f32.mxu0 0.0
      %v982 = vand.u32 %v404, 4294901760
      %983 = vmatmul.mubr.f32.gmra.mrb[0].mxu0 %v982
      %v984 = vpop.f32.mrb[0].mxu0
      %v985 = vadd.f32 %v859, %v984
      %v986 = vpop.f32.mrb[0].mxu0
      %v987 = vadd.f32 %v861, %v986
      %988 = vdwg.mxu0
      %v989 = vand.u32 %v239, 4294901760
      %990 = vmatprep.subr.mxu0 %v989
      %v991 = vand.u32 %v238, 4294901760
      %992 = vmatpush1.msra.mxu0 %v991
      %v993 = vand.u32 %v261, 4294901760
      %994 = vmatprep.subr.mxu0 %v993
      %v995 = vand.u32 %v260, 4294901760
      %996 = vmatpush1.msra.mxu0 %v995
      %v997 = vand.u32 %v280, 4294901760
      %998 = vmatprep.subr.mxu0 %v997
      %v999 = vand.u32 %v279, 4294901760
      %1000 = vmatpush1.msra.mxu0 %v999
      %v1001 = vand.u32 %v299, 4294901760
      %1002 = vmatprep.subr.mxu0 %v1001
      %v1003 = vand.u32 %v298, 4294901760
      %1004 = vmatpush1.msra.mxu0 %v1003
      %v1005 = vand.u32 %v318, 4294901760
      %1006 = vmatprep.subr.mxu0 %v1005
      %v1007 = vand.u32 %v317, 4294901760
      %1008 = vmatpush1.msra.mxu0 %v1007
      %v1009 = vand.u32 %v337, 4294901760
      %1010 = vmatprep.subr.mxu0 %v1009
      %v1011 = vand.u32 %v336, 4294901760
      %1012 = vmatpush1.msra.mxu0 %v1011
      %v1013 = vand.u32 %v356, 4294901760
      %1014 = vmatprep.subr.mxu0 %v1013
      %v1015 = vand.u32 %v355, 4294901760
      %1016 = vmatpush1.msra.mxu0 %v1015
      %v1017 = vand.u32 %v375, 4294901760
      %1018 = vmatprep.subr.mxu0 %v1017
      %v1019 = vand.u32 %v374, 4294901760
      %1020 = vmatpush1.msra.mxu0 %v1019
      %v1021 = vand.u32 %v394, 4294901760
      %1022 = vmatprep.subr.mxu0 %v1021
      %v1023 = vand.u32 %v393, 4294901760
      %1024 = vmatpush1.msra.mxu0 %v1023
      %1025 = vmatprep.subr.mxu0 0.0
      %1026 = vmatpush1.msra.mxu0 0.0
      %1027 = vmatprep.subr.mxu0 0.0
      %1028 = vmatpush1.msra.mxu0 0.0
      %1029 = vmatprep.subr.mxu0 0.0
      %1030 = vmatpush1.msra.mxu0 0.0
      %1031 = vmatprep.subr.mxu0 0.0
      %1032 = vmatpush1.msra.mxu0 0.0
      %1033 = vmatprep.subr.mxu0 0.0
      %1034 = vmatpush1.msra.mxu0 0.0
      %1035 = vmatprep.subr.mxu0 0.0
      %1036 = vmatpush1.msra.mxu0 0.0
      %1037 = vmatprep.subr.mxu0 0.0
      %1038 = vmatpush1.msra.mxu0 0.0
      %1039 = vmatprep.subr.mxu0 0.0
      %1040 = vmatpush1.msra.mxu0 0.0
      %1041 = vmatprep.subr.mxu0 0.0
      %1042 = vmatpush1.msra.mxu0 0.0
      %1043 = vmatprep.subr.mxu0 0.0
      %1044 = vmatpush1.msra.mxu0 0.0
      %1045 = vmatprep.subr.mxu0 0.0
      %1046 = vmatpush1.msra.mxu0 0.0
      %1047 = vmatprep.subr.mxu0 0.0
      %1048 = vmatpush1.msra.mxu0 0.0
      %1049 = vmatprep.subr.mxu0 0.0
      %1050 = vmatpush1.msra.mxu0 0.0
      %1051 = vmatprep.subr.mxu0 0.0
      %1052 = vmatpush1.msra.mxu0 0.0
      %1053 = vmatprep.subr.mxu0 0.0
      %1054 = vmatpush1.msra.mxu0 0.0
      %1055 = vmatprep.subr.mxu0 0.0
      %1056 = vmatpush1.msra.mxu0 0.0
      %1057 = vmatprep.subr.mxu0 0.0
      %1058 = vmatpush1.msra.mxu0 0.0
      %1059 = vmatprep.subr.mxu0 0.0
      %1060 = vmatpush1.msra.mxu0 0.0
      %1061 = vmatprep.subr.mxu0 0.0
      %1062 = vmatpush1.msra.mxu0 0.0
      %1063 = vmatprep.subr.mxu0 0.0
      %1064 = vmatpush1.msra.mxu0 0.0
      %1065 = vmatprep.subr.mxu0 0.0
      %1066 = vmatpush1.msra.mxu0 0.0
      %1067 = vmatprep.subr.mxu0 0.0
      %1068 = vmatpush1.msra.mxu0 0.0
      %1069 = vmatprep.subr.mxu0 0.0
      %1070 = vmatpush1.msra.mxu0 0.0
      %1071 = vmatprep.mubr.f32.mxu0 0.0
      %v1072 = vand.u32 %v404, 4294901760
      %1073 = vmatmul.mubr.f32.gmra.mrb[0].mxu0 %v1072
      %v1074 = vpop.f32.mrb[0].mxu0
      %v1075 = vadd.f32 %v985, %v1074
      %v1076 = vpop.f32.mrb[0].mxu0
      %v1077 = vadd.f32 %v987, %v1076
      %1078 = vdwg.mxu0
      %v1079 = vand.u32 %v241, 4294901760
      %1080 = vmatprep.subr.mxu0 %v1079
      %v1081 = vand.u32 %v240, 4294901760
      %1082 = vmatpush1.msra.mxu0 %v1081
      %v1083 = vand.u32 %v263, 4294901760
      %1084 = vmatprep.subr.mxu0 %v1083
      %v1085 = vand.u32 %v262, 4294901760
      %1086 = vmatpush1.msra.mxu0 %v1085
      %v1087 = vand.u32 %v282, 4294901760
      %1088 = vmatprep.subr.mxu0 %v1087
      %v1089 = vand.u32 %v281, 4294901760
      %1090 = vmatpush1.msra.mxu0 %v1089
      %v1091 = vand.u32 %v301, 4294901760
      %1092 = vmatprep.subr.mxu0 %v1091
      %v1093 = vand.u32 %v300, 4294901760
      %1094 = vmatpush1.msra.mxu0 %v1093
      %v1095 = vand.u32 %v320, 4294901760
      %1096 = vmatprep.subr.mxu0 %v1095
      %v1097 = vand.u32 %v319, 4294901760
      %1098 = vmatpush1.msra.mxu0 %v1097
      %v1099 = vand.u32 %v339, 4294901760
      %1100 = vmatprep.subr.mxu0 %v1099
      %v1101 = vand.u32 %v338, 4294901760
      %1102 = vmatpush1.msra.mxu0 %v1101
      %v1103 = vand.u32 %v358, 4294901760
      %1104 = vmatprep.subr.mxu0 %v1103
      %v1105 = vand.u32 %v357, 4294901760
      %1106 = vmatpush1.msra.mxu0 %v1105
      %v1107 = vand.u32 %v377, 4294901760
      %1108 = vmatprep.subr.mxu0 %v1107
      %v1109 = vand.u32 %v376, 4294901760
      %1110 = vmatpush1.msra.mxu0 %v1109
      %v1111 = vand.u32 %v396, 4294901760
      %1112 = vmatprep.subr.mxu0 %v1111
      %v1113 = vand.u32 %v395, 4294901760
      %1114 = vmatpush1.msra.mxu0 %v1113
      %1115 = vmatprep.subr.mxu0 0.0
      %1116 = vmatpush1.msra.mxu0 0.0
      %1117 = vmatprep.subr.mxu0 0.0
      %1118 = vmatpush1.msra.mxu0 0.0
      %1119 = vmatprep.subr.mxu0 0.0
      %1120 = vmatpush1.msra.mxu0 0.0
      %1121 = vmatprep.subr.mxu0 0.0
      %1122 = vmatpush1.msra.mxu0 0.0
      %1123 = vmatprep.subr.mxu0 0.0
      %1124 = vmatpush1.msra.mxu0 0.0
      %1125 = vmatprep.subr.mxu0 0.0
      %1126 = vmatpush1.msra.mxu0 0.0
      %1127 = vmatprep.subr.mxu0 0.0
      %1128 = vmatpush1.msra.mxu0 0.0
      %1129 = vmatprep.subr.mxu0 0.0
      %1130 = vmatpush1.msra.mxu0 0.0
      %1131 = vmatprep.subr.mxu0 0.0
      %1132 = vmatpush1.msra.mxu0 0.0
      %1133 = vmatprep.subr.mxu0 0.0
      %1134 = vmatpush1.msra.mxu0 0.0
      %1135 = vmatprep.subr.mxu0 0.0
      %1136 = vmatpush1.msra.mxu0 0.0
      %1137 = vmatprep.subr.mxu0 0.0
      %1138 = vmatpush1.msra.mxu0 0.0
      %1139 = vmatprep.subr.mxu0 0.0
      %1140 = vmatpush1.msra.mxu0 0.0
      %1141 = vmatprep.subr.mxu0 0.0
      %1142 = vmatpush1.msra.mxu0 0.0
      %1143 = vmatprep.subr.mxu0 0.0
      %1144 = vmatpush1.msra.mxu0 0.0
      %1145 = vmatprep.subr.mxu0 0.0
      %1146 = vmatpush1.msra.mxu0 0.0
      %1147 = vmatprep.subr.mxu0 0.0
      %1148 = vmatpush1.msra.mxu0 0.0
      %1149 = vmatprep.subr.mxu0 0.0
      %1150 = vmatpush1.msra.mxu0 0.0
      %1151 = vmatprep.subr.mxu0 0.0
      %1152 = vmatpush1.msra.mxu0 0.0
      %1153 = vmatprep.subr.mxu0 0.0
      %1154 = vmatpush1.msra.mxu0 0.0
      %1155 = vmatprep.subr.mxu0 0.0
      %1156 = vmatpush1.msra.mxu0 0.0
      %1157 = vmatprep.subr.mxu0 0.0
      %1158 = vmatpush1.msra.mxu0 0.0
      %1159 = vmatprep.subr.mxu0 0.0
      %1160 = vmatpush1.msra.mxu0 0.0
      %1161 = vmatprep.mubr.f32.mxu0 0.0
      %v1162 = vand.u32 %v404, 4294901760
      %v1163 = vsub.f32 %v404, %v1162
      %v1164 = vand.u32 %v1163, 4294901760
      %v1165 = vsub.f32 %v1163, %v1164
      %v1166 = vand.u32 %v1165, 4294901760
      %1167 = vmatmul.mubr.f32.gmra.mrb[0].mxu0 %v1166
      %v1168 = vpop.f32.mrb[0].mxu0
      %v1169 = vadd.f32 0.0, %v1168
      %v1170 = vpop.f32.mrb[0].mxu0
      %v1171 = vadd.f32 0.0, %v1170
      %1172 = vdwg.mxu0
      %v1173 = vand.u32 %v241, 4294901760
      %v1174 = vsub.f32 %v241, %v1173
      %v1175 = vand.u32 %v1174, 4294901760
      %v1176 = vsub.f32 %v1174, %v1175
      %v1177 = vand.u32 %v1176, 4294901760
      %1178 = vmatprep.subr.mxu0 %v1177
      %v1179 = vand.u32 %v240, 4294901760
      %v1180 = vsub.f32 %v240, %v1179
      %v1181 = vand.u32 %v1180, 4294901760
      %v1182 = vsub.f32 %v1180, %v1181
      %v1183 = vand.u32 %v1182, 4294901760
      %1184 = vmatpush1.msra.mxu0 %v1183
      %v1185 = vand.u32 %v263, 4294901760
      %v1186 = vsub.f32 %v263, %v1185
      %v1187 = vand.u32 %v1186, 4294901760
      %v1188 = vsub.f32 %v1186, %v1187
      %v1189 = vand.u32 %v1188, 4294901760
      %1190 = vmatprep.subr.mxu0 %v1189
      %v1191 = vand.u32 %v262, 4294901760
      %v1192 = vsub.f32 %v262, %v1191
      %v1193 = vand.u32 %v1192, 4294901760
      %v1194 = vsub.f32 %v1192, %v1193
      %v1195 = vand.u32 %v1194, 4294901760
      %1196 = vmatpush1.msra.mxu0 %v1195
      %v1197 = vand.u32 %v282, 4294901760
      %v1198 = vsub.f32 %v282, %v1197
      %v1199 = vand.u32 %v1198, 4294901760
      %v1200 = vsub.f32 %v1198, %v1199
      %v1201 = vand.u32 %v1200, 4294901760
      %1202 = vmatprep.subr.mxu0 %v1201
      %v1203 = vand.u32 %v281, 4294901760
      %v1204 = vsub.f32 %v281, %v1203
      %v1205 = vand.u32 %v1204, 4294901760
      %v1206 = vsub.f32 %v1204, %v1205
      %v1207 = vand.u32 %v1206, 4294901760
      %1208 = vmatpush1.msra.mxu0 %v1207
      %v1209 = vand.u32 %v301, 4294901760
      %v1210 = vsub.f32 %v301, %v1209
      %v1211 = vand.u32 %v1210, 4294901760
      %v1212 = vsub.f32 %v1210, %v1211
      %v1213 = vand.u32 %v1212, 4294901760
      %1214 = vmatprep.subr.mxu0 %v1213
      %v1215 = vand.u32 %v300, 4294901760
      %v1216 = vsub.f32 %v300, %v1215
      %v1217 = vand.u32 %v1216, 4294901760
      %v1218 = vsub.f32 %v1216, %v1217
      %v1219 = vand.u32 %v1218, 4294901760
      %1220 = vmatpush1.msra.mxu0 %v1219
      %v1221 = vand.u32 %v320, 4294901760
      %v1222 = vsub.f32 %v320, %v1221
      %v1223 = vand.u32 %v1222, 4294901760
      %v1224 = vsub.f32 %v1222, %v1223
      %v1225 = vand.u32 %v1224, 4294901760
      %1226 = vmatprep.subr.mxu0 %v1225
      %v1227 = vand.u32 %v319, 4294901760
      %v1228 = vsub.f32 %v319, %v1227
      %v1229 = vand.u32 %v1228, 4294901760
      %v1230 = vsub.f32 %v1228, %v1229
      %v1231 = vand.u32 %v1230, 4294901760
      %1232 = vmatpush1.msra.mxu0 %v1231
      %v1233 = vand.u32 %v339, 4294901760
      %v1234 = vsub.f32 %v339, %v1233
      %v1235 = vand.u32 %v1234, 4294901760
      %v1236 = vsub.f32 %v1234, %v1235
      %v1237 = vand.u32 %v1236, 4294901760
      %1238 = vmatprep.subr.mxu0 %v1237
      %v1239 = vand.u32 %v338, 4294901760
      %v1240 = vsub.f32 %v338, %v1239
      %v1241 = vand.u32 %v1240, 4294901760
      %v1242 = vsub.f32 %v1240, %v1241
      %v1243 = vand.u32 %v1242, 4294901760
      %1244 = vmatpush1.msra.mxu0 %v1243
      %v1245 = vand.u32 %v358, 4294901760
      %v1246 = vsub.f32 %v358, %v1245
      %v1247 = vand.u32 %v1246, 4294901760
      %v1248 = vsub.f32 %v1246, %v1247
      %v1249 = vand.u32 %v1248, 4294901760
      %1250 = vmatprep.subr.mxu0 %v1249
      %v1251 = vand.u32 %v357, 4294901760
      %v1252 = vsub.f32 %v357, %v1251
      %v1253 = vand.u32 %v1252, 4294901760
      %v1254 = vsub.f32 %v1252, %v1253
      %v1255 = vand.u32 %v1254, 4294901760
      %1256 = vmatpush1.msra.mxu0 %v1255
      %v1257 = vand.u32 %v377, 4294901760
      %v1258 = vsub.f32 %v377, %v1257
      %v1259 = vand.u32 %v1258, 4294901760
      %v1260 = vsub.f32 %v1258, %v1259
      %v1261 = vand.u32 %v1260, 4294901760
      %1262 = vmatprep.subr.mxu0 %v1261
      %v1263 = vand.u32 %v376, 4294901760
      %v1264 = vsub.f32 %v376, %v1263
      %v1265 = vand.u32 %v1264, 4294901760
      %v1266 = vsub.f32 %v1264, %v1265
      %v1267 = vand.u32 %v1266, 4294901760
      %1268 = vmatpush1.msra.mxu0 %v1267
      %v1269 = vand.u32 %v396, 4294901760
      %v1270 = vsub.f32 %v396, %v1269
      %v1271 = vand.u32 %v1270, 4294901760
      %v1272 = vsub.f32 %v1270, %v1271
      %v1273 = vand.u32 %v1272, 4294901760
      %1274 = vmatprep.subr.mxu0 %v1273
      %v1275 = vand.u32 %v395, 4294901760
      %v1276 = vsub.f32 %v395, %v1275
      %v1277 = vand.u32 %v1276, 4294901760
      %v1278 = vsub.f32 %v1276, %v1277
      %v1279 = vand.u32 %v1278, 4294901760
      %1280 = vmatpush1.msra.mxu0 %v1279
      %1281 = vmatprep.subr.mxu0 0.0
      %1282 = vmatpush1.msra.mxu0 0.0
      %1283 = vmatprep.subr.mxu0 0.0
      %1284 = vmatpush1.msra.mxu0 0.0
      %1285 = vmatprep.subr.mxu0 0.0
      %1286 = vmatpush1.msra.mxu0 0.0
      %1287 = vmatprep.subr.mxu0 0.0
      %1288 = vmatpush1.msra.mxu0 0.0
      %1289 = vmatprep.subr.mxu0 0.0
      %1290 = vmatpush1.msra.mxu0 0.0
      %1291 = vmatprep.subr.mxu0 0.0
      %1292 = vmatpush1.msra.mxu0 0.0
      %1293 = vmatprep.subr.mxu0 0.0
      %1294 = vmatpush1.msra.mxu0 0.0
      %1295 = vmatprep.subr.mxu0 0.0
      %1296 = vmatpush1.msra.mxu0 0.0
      %1297 = vmatprep.subr.mxu0 0.0
      %1298 = vmatpush1.msra.mxu0 0.0
      %1299 = vmatprep.subr.mxu0 0.0
      %1300 = vmatpush1.msra.mxu0 0.0
      %1301 = vmatprep.subr.mxu0 0.0
      %1302 = vmatpush1.msra.mxu0 0.0
      %1303 = vmatprep.subr.mxu0 0.0
      %1304 = vmatpush1.msra.mxu0 0.0
      %1305 = vmatprep.subr.mxu0 0.0
      %1306 = vmatpush1.msra.mxu0 0.0
      %1307 = vmatprep.subr.mxu0 0.0
      %1308 = vmatpush1.msra.mxu0 0.0
      %1309 = vmatprep.subr.mxu0 0.0
      %1310 = vmatpush1.msra.mxu0 0.0
      %1311 = vmatprep.subr.mxu0 0.0
      %1312 = vmatpush1.msra.mxu0 0.0
      %1313 = vmatprep.subr.mxu0 0.0
      %1314 = vmatpush1.msra.mxu0 0.0
      %1315 = vmatprep.subr.mxu0 0.0
      %1316 = vmatpush1.msra.mxu0 0.0
      %1317 = vmatprep.subr.mxu0 0.0
      %1318 = vmatpush1.msra.mxu0 0.0
      %1319 = vmatprep.subr.mxu0 0.0
      %1320 = vmatpush1.msra.mxu0 0.0
      %1321 = vmatprep.subr.mxu0 0.0
      %1322 = vmatpush1.msra.mxu0 0.0
      %1323 = vmatprep.subr.mxu0 0.0
      %1324 = vmatpush1.msra.mxu0 0.0
      %1325 = vmatprep.subr.mxu0 0.0
      %1326 = vmatpush1.msra.mxu0 0.0
      %1327 = vmatprep.mubr.f32.mxu0 0.0
      %v1328 = vand.u32 %v404, 4294901760
      %1329 = vmatmul.mubr.f32.gmra.mrb[0].mxu0 %v1328
      %v1330 = vpop.f32.mrb[0].mxu0
      %v1331 = vadd.f32 %v1169, %v1330
      %v1332 = vpop.f32.mrb[0].mxu0
      %v1333 = vadd.f32 %v1171, %v1332
      %1334 = vdwg.mxu0
      %v1335 = vand.u32 %v241, 4294901760
      %v1336 = vsub.f32 %v241, %v1335
      %1337 = vmatprep.subr.mxu0 %v1336
      %v1338 = vand.u32 %v240, 4294901760
      %v1339 = vsub.f32 %v240, %v1338
      %1340 = vmatpush1.msra.mxu0 %v1339
      %v1341 = vand.u32 %v263, 4294901760
      %v1342 = vsub.f32 %v263, %v1341
      %1343 = vmatprep.subr.mxu0 %v1342
      %v1344 = vand.u32 %v262, 4294901760
      %v1345 = vsub.f32 %v262, %v1344
      %1346 = vmatpush1.msra.mxu0 %v1345
      %v1347 = vand.u32 %v282, 4294901760
      %v1348 = vsub.f32 %v282, %v1347
      %1349 = vmatprep.subr.mxu0 %v1348
      %v1350 = vand.u32 %v281, 4294901760
      %v1351 = vsub.f32 %v281, %v1350
      %1352 = vmatpush1.msra.mxu0 %v1351
      %v1353 = vand.u32 %v301, 4294901760
      %v1354 = vsub.f32 %v301, %v1353
      %1355 = vmatprep.subr.mxu0 %v1354
      %v1356 = vand.u32 %v300, 4294901760
      %v1357 = vsub.f32 %v300, %v1356
      %1358 = vmatpush1.msra.mxu0 %v1357
      %v1359 = vand.u32 %v320, 4294901760
      %v1360 = vsub.f32 %v320, %v1359
      %1361 = vmatprep.subr.mxu0 %v1360
      %v1362 = vand.u32 %v319, 4294901760
      %v1363 = vsub.f32 %v319, %v1362
      %1364 = vmatpush1.msra.mxu0 %v1363
      %v1365 = vand.u32 %v339, 4294901760
      %v1366 = vsub.f32 %v339, %v1365
      %1367 = vmatprep.subr.mxu0 %v1366
      %v1368 = vand.u32 %v338, 4294901760
      %v1369 = vsub.f32 %v338, %v1368
      %1370 = vmatpush1.msra.mxu0 %v1369
      %v1371 = vand.u32 %v358, 4294901760
      %v1372 = vsub.f32 %v358, %v1371
      %1373 = vmatprep.subr.mxu0 %v1372
      %v1374 = vand.u32 %v357, 4294901760
      %v1375 = vsub.f32 %v357, %v1374
      %1376 = vmatpush1.msra.mxu0 %v1375
      %v1377 = vand.u32 %v377, 4294901760
      %v1378 = vsub.f32 %v377, %v1377
      %1379 = vmatprep.subr.mxu0 %v1378
      %v1380 = vand.u32 %v376, 4294901760
      %v1381 = vsub.f32 %v376, %v1380
      %1382 = vmatpush1.msra.mxu0 %v1381
      %v1383 = vand.u32 %v396, 4294901760
      %v1384 = vsub.f32 %v396, %v1383
      %1385 = vmatprep.subr.mxu0 %v1384
      %v1386 = vand.u32 %v395, 4294901760
      %v1387 = vsub.f32 %v395, %v1386
      %1388 = vmatpush1.msra.mxu0 %v1387
      %1389 = vmatprep.subr.mxu0 0.0
      %1390 = vmatpush1.msra.mxu0 0.0
      %1391 = vmatprep.subr.mxu0 0.0
      %1392 = vmatpush1.msra.mxu0 0.0
      %1393 = vmatprep.subr.mxu0 0.0
      %1394 = vmatpush1.msra.mxu0 0.0
      %1395 = vmatprep.subr.mxu0 0.0
      %1396 = vmatpush1.msra.mxu0 0.0
      %1397 = vmatprep.subr.mxu0 0.0
      %1398 = vmatpush1.msra.mxu0 0.0
      %1399 = vmatprep.subr.mxu0 0.0
      %1400 = vmatpush1.msra.mxu0 0.0
      %1401 = vmatprep.subr.mxu0 0.0
      %1402 = vmatpush1.msra.mxu0 0.0
      %1403 = vmatprep.subr.mxu0 0.0
      %1404 = vmatpush1.msra.mxu0 0.0
      %1405 = vmatprep.subr.mxu0 0.0
      %1406 = vmatpush1.msra.mxu0 0.0
      %1407 = vmatprep.subr.mxu0 0.0
      %1408 = vmatpush1.msra.mxu0 0.0
      %1409 = vmatprep.subr.mxu0 0.0
      %1410 = vmatpush1.msra.mxu0 0.0
      %1411 = vmatprep.subr.mxu0 0.0
      %1412 = vmatpush1.msra.mxu0 0.0
      %1413 = vmatprep.subr.mxu0 0.0
      %1414 = vmatpush1.msra.mxu0 0.0
      %1415 = vmatprep.subr.mxu0 0.0
      %1416 = vmatpush1.msra.mxu0 0.0
      %1417 = vmatprep.subr.mxu0 0.0
      %1418 = vmatpush1.msra.mxu0 0.0
      %1419 = vmatprep.subr.mxu0 0.0
      %1420 = vmatpush1.msra.mxu0 0.0
      %1421 = vmatprep.subr.mxu0 0.0
      %1422 = vmatpush1.msra.mxu0 0.0
      %1423 = vmatprep.subr.mxu0 0.0
      %1424 = vmatpush1.msra.mxu0 0.0
      %1425 = vmatprep.subr.mxu0 0.0
      %1426 = vmatpush1.msra.mxu0 0.0
      %1427 = vmatprep.subr.mxu0 0.0
      %1428 = vmatpush1.msra.mxu0 0.0
      %1429 = vmatprep.subr.mxu0 0.0
      %1430 = vmatpush1.msra.mxu0 0.0
      %1431 = vmatprep.subr.mxu0 0.0
      %1432 = vmatpush1.msra.mxu0 0.0
      %1433 = vmatprep.subr.mxu0 0.0
      %1434 = vmatpush1.msra.mxu0 0.0
      %1435 = vmatprep.mubr.f32.mxu0 0.0
      %v1436 = vand.u32 %v404, 4294901760
      %v1437 = vsub.f32 %v404, %v1436
      %1438 = vmatmul.mubr.f32.gmra.mrb[0].mxu0 %v1437
      %v1439 = vpop.f32.mrb[0].mxu0
      %v1440 = vadd.f32 %v1331, %v1439
      %v1441 = vpop.f32.mrb[0].mxu0
      %v1442 = vadd.f32 %v1333, %v1441
      %1443 = vdwg.mxu0
      %v1444 = vand.u32 %v241, 4294901760
      %1445 = vmatprep.subr.mxu0 %v1444
      %v1446 = vand.u32 %v240, 4294901760
      %1447 = vmatpush1.msra.mxu0 %v1446
      %v1448 = vand.u32 %v263, 4294901760
      %1449 = vmatprep.subr.mxu0 %v1448
      %v1450 = vand.u32 %v262, 4294901760
      %1451 = vmatpush1.msra.mxu0 %v1450
      %v1452 = vand.u32 %v282, 4294901760
      %1453 = vmatprep.subr.mxu0 %v1452
      %v1454 = vand.u32 %v281, 4294901760
      %1455 = vmatpush1.msra.mxu0 %v1454
      %v1456 = vand.u32 %v301, 4294901760
      %1457 = vmatprep.subr.mxu0 %v1456
      %v1458 = vand.u32 %v300, 4294901760
      %1459 = vmatpush1.msra.mxu0 %v1458
      %v1460 = vand.u32 %v320, 4294901760
      %1461 = vmatprep.subr.mxu0 %v1460
      %v1462 = vand.u32 %v319, 4294901760
      %1463 = vmatpush1.msra.mxu0 %v1462
      %v1464 = vand.u32 %v339, 4294901760
      %1465 = vmatprep.subr.mxu0 %v1464
      %v1466 = vand.u32 %v338, 4294901760
      %1467 = vmatpush1.msra.mxu0 %v1466
      %v1468 = vand.u32 %v358, 4294901760
      %1469 = vmatprep.subr.mxu0 %v1468
      %v1470 = vand.u32 %v357, 4294901760
      %1471 = vmatpush1.msra.mxu0 %v1470
      %v1472 = vand.u32 %v377, 4294901760
      %1473 = vmatprep.subr.mxu0 %v1472
      %v1474 = vand.u32 %v376, 4294901760
      %1475 = vmatpush1.msra.mxu0 %v1474
      %v1476 = vand.u32 %v396, 4294901760
      %1477 = vmatprep.subr.mxu0 %v1476
      %v1478 = vand.u32 %v395, 4294901760
      %1479 = vmatpush1.msra.mxu0 %v1478
      %1480 = vmatprep.subr.mxu0 0.0
      %1481 = vmatpush1.msra.mxu0 0.0
      %1482 = vmatprep.subr.mxu0 0.0
      %1483 = vmatpush1.msra.mxu0 0.0
      %1484 = vmatprep.subr.mxu0 0.0
      %1485 = vmatpush1.msra.mxu0 0.0
      %1486 = vmatprep.subr.mxu0 0.0
      %1487 = vmatpush1.msra.mxu0 0.0
      %1488 = vmatprep.subr.mxu0 0.0
      %1489 = vmatpush1.msra.mxu0 0.0
      %1490 = vmatprep.subr.mxu0 0.0
      %1491 = vmatpush1.msra.mxu0 0.0
      %1492 = vmatprep.subr.mxu0 0.0
      %1493 = vmatpush1.msra.mxu0 0.0
      %1494 = vmatprep.subr.mxu0 0.0
      %1495 = vmatpush1.msra.mxu0 0.0
      %1496 = vmatprep.subr.mxu0 0.0
      %1497 = vmatpush1.msra.mxu0 0.0
      %1498 = vmatprep.subr.mxu0 0.0
      %1499 = vmatpush1.msra.mxu0 0.0
      %1500 = vmatprep.subr.mxu0 0.0
      %1501 = vmatpush1.msra.mxu0 0.0
      %1502 = vmatprep.subr.mxu0 0.0
      %1503 = vmatpush1.msra.mxu0 0.0
      %1504 = vmatprep.subr.mxu0 0.0
      %1505 = vmatpush1.msra.mxu0 0.0
      %1506 = vmatprep.subr.mxu0 0.0
      %1507 = vmatpush1.msra.mxu0 0.0
      %1508 = vmatprep.subr.mxu0 0.0
      %1509 = vmatpush1.msra.mxu0 0.0
      %1510 = vmatprep.subr.mxu0 0.0
      %1511 = vmatpush1.msra.mxu0 0.0
      %1512 = vmatprep.subr.mxu0 0.0
      %1513 = vmatpush1.msra.mxu0 0.0
      %1514 = vmatprep.subr.mxu0 0.0
      %1515 = vmatpush1.msra.mxu0 0.0
      %1516 = vmatprep.subr.mxu0 0.0
      %1517 = vmatpush1.msra.mxu0 0.0
      %1518 = vmatprep.subr.mxu0 0.0
      %1519 = vmatpush1.msra.mxu0 0.0
      %1520 = vmatprep.subr.mxu0 0.0
      %1521 = vmatpush1.msra.mxu0 0.0
      %1522 = vmatprep.subr.mxu0 0.0
      %1523 = vmatpush1.msra.mxu0 0.0
      %1524 = vmatprep.subr.mxu0 0.0
      %1525 = vmatpush1.msra.mxu0 0.0
      %1526 = vmatprep.mubr.f32.mxu0 0.0
      %v1527 = vand.u32 %v404, 4294901760
      %v1528 = vsub.f32 %v404, %v1527
      %v1529 = vand.u32 %v1528, 4294901760
      %1530 = vmatmul.mubr.f32.gmra.mrb[0].mxu0 %v1529
      %v1531 = vpop.f32.mrb[0].mxu0
      %v1532 = vadd.f32 %v1440, %v1531
      %v1533 = vpop.f32.mrb[0].mxu0
      %v1534 = vadd.f32 %v1442, %v1533
      %1535 = vdwg.mxu0
      %v1536 = vand.u32 %v241, 4294901760
      %v1537 = vsub.f32 %v241, %v1536
      %v1538 = vand.u32 %v1537, 4294901760
      %1539 = vmatprep.subr.mxu0 %v1538
      %v1540 = vand.u32 %v240, 4294901760
      %v1541 = vsub.f32 %v240, %v1540
      %v1542 = vand.u32 %v1541, 4294901760
      %1543 = vmatpush1.msra.mxu0 %v1542
      %v1544 = vand.u32 %v263, 4294901760
      %v1545 = vsub.f32 %v263, %v1544
      %v1546 = vand.u32 %v1545, 4294901760
      %1547 = vmatprep.subr.mxu0 %v1546
      %v1548 = vand.u32 %v262, 4294901760
      %v1549 = vsub.f32 %v262, %v1548
      %v1550 = vand.u32 %v1549, 4294901760
      %1551 = vmatpush1.msra.mxu0 %v1550
      %v1552 = vand.u32 %v282, 4294901760
      %v1553 = vsub.f32 %v282, %v1552
      %v1554 = vand.u32 %v1553, 4294901760
      %1555 = vmatprep.subr.mxu0 %v1554
      %v1556 = vand.u32 %v281, 4294901760
      %v1557 = vsub.f32 %v281, %v1556
      %v1558 = vand.u32 %v1557, 4294901760
      %1559 = vmatpush1.msra.mxu0 %v1558
      %v1560 = vand.u32 %v301, 4294901760
      %v1561 = vsub.f32 %v301, %v1560
      %v1562 = vand.u32 %v1561, 4294901760
      %1563 = vmatprep.subr.mxu0 %v1562
      %v1564 = vand.u32 %v300, 4294901760
      %v1565 = vsub.f32 %v300, %v1564
      %v1566 = vand.u32 %v1565, 4294901760
      %1567 = vmatpush1.msra.mxu0 %v1566
      %v1568 = vand.u32 %v320, 4294901760
      %v1569 = vsub.f32 %v320, %v1568
      %v1570 = vand.u32 %v1569, 4294901760
      %1571 = vmatprep.subr.mxu0 %v1570
      %v1572 = vand.u32 %v319, 4294901760
      %v1573 = vsub.f32 %v319, %v1572
      %v1574 = vand.u32 %v1573, 4294901760
      %1575 = vmatpush1.msra.mxu0 %v1574
      %v1576 = vand.u32 %v339, 4294901760
      %v1577 = vsub.f32 %v339, %v1576
      %v1578 = vand.u32 %v1577, 4294901760
      %1579 = vmatprep.subr.mxu0 %v1578
      %v1580 = vand.u32 %v338, 4294901760
      %v1581 = vsub.f32 %v338, %v1580
      %v1582 = vand.u32 %v1581, 4294901760
      %1583 = vmatpush1.msra.mxu0 %v1582
      %v1584 = vand.u32 %v358, 4294901760
      %v1585 = vsub.f32 %v358, %v1584
      %v1586 = vand.u32 %v1585, 4294901760
      %1587 = vmatprep.subr.mxu0 %v1586
      %v1588 = vand.u32 %v357, 4294901760
      %v1589 = vsub.f32 %v357, %v1588
      %v1590 = vand.u32 %v1589, 4294901760
      %1591 = vmatpush1.msra.mxu0 %v1590
      %v1592 = vand.u32 %v377, 4294901760
      %v1593 = vsub.f32 %v377, %v1592
      %v1594 = vand.u32 %v1593, 4294901760
      %1595 = vmatprep.subr.mxu0 %v1594
      %v1596 = vand.u32 %v376, 4294901760
      %v1597 = vsub.f32 %v376, %v1596
      %v1598 = vand.u32 %v1597, 4294901760
      %1599 = vmatpush1.msra.mxu0 %v1598
      %v1600 = vand.u32 %v396, 4294901760
      %v1601 = vsub.f32 %v396, %v1600
      %v1602 = vand.u32 %v1601, 4294901760
      %1603 = vmatprep.subr.mxu0 %v1602
      %v1604 = vand.u32 %v395, 4294901760
      %v1605 = vsub.f32 %v395, %v1604
      %v1606 = vand.u32 %v1605, 4294901760
      %1607 = vmatpush1.msra.mxu0 %v1606
      %1608 = vmatprep.subr.mxu0 0.0
      %1609 = vmatpush1.msra.mxu0 0.0
      %1610 = vmatprep.subr.mxu0 0.0
      %1611 = vmatpush1.msra.mxu0 0.0
      %1612 = vmatprep.subr.mxu0 0.0
      %1613 = vmatpush1.msra.mxu0 0.0
      %1614 = vmatprep.subr.mxu0 0.0
      %1615 = vmatpush1.msra.mxu0 0.0
      %1616 = vmatprep.subr.mxu0 0.0
      %1617 = vmatpush1.msra.mxu0 0.0
      %1618 = vmatprep.subr.mxu0 0.0
      %1619 = vmatpush1.msra.mxu0 0.0
      %1620 = vmatprep.subr.mxu0 0.0
      %1621 = vmatpush1.msra.mxu0 0.0
      %1622 = vmatprep.subr.mxu0 0.0
      %1623 = vmatpush1.msra.mxu0 0.0
      %1624 = vmatprep.subr.mxu0 0.0
      %1625 = vmatpush1.msra.mxu0 0.0
      %1626 = vmatprep.subr.mxu0 0.0
      %1627 = vmatpush1.msra.mxu0 0.0
      %1628 = vmatprep.subr.mxu0 0.0
      %1629 = vmatpush1.msra.mxu0 0.0
      %1630 = vmatprep.subr.mxu0 0.0
      %1631 = vmatpush1.msra.mxu0 0.0
      %1632 = vmatprep.subr.mxu0 0.0
      %1633 = vmatpush1.msra.mxu0 0.0
      %1634 = vmatprep.subr.mxu0 0.0
      %1635 = vmatpush1.msra.mxu0 0.0
      %1636 = vmatprep.subr.mxu0 0.0
      %1637 = vmatpush1.msra.mxu0 0.0
      %1638 = vmatprep.subr.mxu0 0.0
      %1639 = vmatpush1.msra.mxu0 0.0
      %1640 = vmatprep.subr.mxu0 0.0
      %1641 = vmatpush1.msra.mxu0 0.0
      %1642 = vmatprep.subr.mxu0 0.0
      %1643 = vmatpush1.msra.mxu0 0.0
      %1644 = vmatprep.subr.mxu0 0.0
      %1645 = vmatpush1.msra.mxu0 0.0
      %1646 = vmatprep.subr.mxu0 0.0
      %1647 = vmatpush1.msra.mxu0 0.0
      %1648 = vmatprep.subr.mxu0 0.0
      %1649 = vmatpush1.msra.mxu0 0.0
      %1650 = vmatprep.subr.mxu0 0.0
      %1651 = vmatpush1.msra.mxu0 0.0
      %1652 = vmatprep.subr.mxu0 0.0
      %1653 = vmatpush1.msra.mxu0 0.0
      %1654 = vmatprep.mubr.f32.mxu0 0.0
      %v1655 = vand.u32 %v404, 4294901760
      %1656 = vmatmul.mubr.f32.gmra.mrb[0].mxu0 %v1655
      %v1657 = vpop.f32.mrb[0].mxu0
      %v1658 = vadd.f32 %v1532, %v1657
      %v1659 = vpop.f32.mrb[0].mxu0
      %v1660 = vadd.f32 %v1534, %v1659
      %1661 = vdwg.mxu0
      %v1662 = vand.u32 %v241, 4294901760
      %1663 = vmatprep.subr.mxu0 %v1662
      %v1664 = vand.u32 %v240, 4294901760
      %1665 = vmatpush1.msra.mxu0 %v1664
      %v1666 = vand.u32 %v263, 4294901760
      %1667 = vmatprep.subr.mxu0 %v1666
      %v1668 = vand.u32 %v262, 4294901760
      %1669 = vmatpush1.msra.mxu0 %v1668
      %v1670 = vand.u32 %v282, 4294901760
      %1671 = vmatprep.subr.mxu0 %v1670
      %v1672 = vand.u32 %v281, 4294901760
      %1673 = vmatpush1.msra.mxu0 %v1672
      %v1674 = vand.u32 %v301, 4294901760
      %1675 = vmatprep.subr.mxu0 %v1674
      %v1676 = vand.u32 %v300, 4294901760
      %1677 = vmatpush1.msra.mxu0 %v1676
      %v1678 = vand.u32 %v320, 4294901760
      %1679 = vmatprep.subr.mxu0 %v1678
      %v1680 = vand.u32 %v319, 4294901760
      %1681 = vmatpush1.msra.mxu0 %v1680
      %v1682 = vand.u32 %v339, 4294901760
      %1683 = vmatprep.subr.mxu0 %v1682
      %v1684 = vand.u32 %v338, 4294901760
      %1685 = vmatpush1.msra.mxu0 %v1684
      %v1686 = vand.u32 %v358, 4294901760
      %1687 = vmatprep.subr.mxu0 %v1686
      %v1688 = vand.u32 %v357, 4294901760
      %1689 = vmatpush1.msra.mxu0 %v1688
      %v1690 = vand.u32 %v377, 4294901760
      %1691 = vmatprep.subr.mxu0 %v1690
      %v1692 = vand.u32 %v376, 4294901760
      %1693 = vmatpush1.msra.mxu0 %v1692
      %v1694 = vand.u32 %v396, 4294901760
      %1695 = vmatprep.subr.mxu0 %v1694
      %v1696 = vand.u32 %v395, 4294901760
      %1697 = vmatpush1.msra.mxu0 %v1696
      %1698 = vmatprep.subr.mxu0 0.0
      %1699 = vmatpush1.msra.mxu0 0.0
      %1700 = vmatprep.subr.mxu0 0.0
      %1701 = vmatpush1.msra.mxu0 0.0
      %1702 = vmatprep.subr.mxu0 0.0
      %1703 = vmatpush1.msra.mxu0 0.0
      %1704 = vmatprep.subr.mxu0 0.0
      %1705 = vmatpush1.msra.mxu0 0.0
      %1706 = vmatprep.subr.mxu0 0.0
      %1707 = vmatpush1.msra.mxu0 0.0
      %1708 = vmatprep.subr.mxu0 0.0
      %1709 = vmatpush1.msra.mxu0 0.0
      %1710 = vmatprep.subr.mxu0 0.0
      %1711 = vmatpush1.msra.mxu0 0.0
      %1712 = vmatprep.subr.mxu0 0.0
      %1713 = vmatpush1.msra.mxu0 0.0
      %1714 = vmatprep.subr.mxu0 0.0
      %1715 = vmatpush1.msra.mxu0 0.0
      %1716 = vmatprep.subr.mxu0 0.0
      %1717 = vmatpush1.msra.mxu0 0.0
      %1718 = vmatprep.subr.mxu0 0.0
      %1719 = vmatpush1.msra.mxu0 0.0
      %1720 = vmatprep.subr.mxu0 0.0
      %1721 = vmatpush1.msra.mxu0 0.0
      %1722 = vmatprep.subr.mxu0 0.0
      %1723 = vmatpush1.msra.mxu0 0.0
      %1724 = vmatprep.subr.mxu0 0.0
      %1725 = vmatpush1.msra.mxu0 0.0
      %1726 = vmatprep.subr.mxu0 0.0
      %1727 = vmatpush1.msra.mxu0 0.0
      %1728 = vmatprep.subr.mxu0 0.0
      %1729 = vmatpush1.msra.mxu0 0.0
      %1730 = vmatprep.subr.mxu0 0.0
      %1731 = vmatpush1.msra.mxu0 0.0
      %1732 = vmatprep.subr.mxu0 0.0
      %1733 = vmatpush1.msra.mxu0 0.0
      %1734 = vmatprep.subr.mxu0 0.0
      %1735 = vmatpush1.msra.mxu0 0.0
      %1736 = vmatprep.subr.mxu0 0.0
      %1737 = vmatpush1.msra.mxu0 0.0
      %1738 = vmatprep.subr.mxu0 0.0
      %1739 = vmatpush1.msra.mxu0 0.0
      %1740 = vmatprep.subr.mxu0 0.0
      %1741 = vmatpush1.msra.mxu0 0.0
      %1742 = vmatprep.subr.mxu0 0.0
      %1743 = vmatpush1.msra.mxu0 0.0
      %1744 = vmatprep.mubr.f32.mxu0 0.0
      %v1745 = vand.u32 %v404, 4294901760
      %1746 = vmatmul.mubr.f32.gmra.mrb[0].mxu0 %v1745
      %v1747 = vpop.f32.mrb[0].mxu0
      %v1748 = vadd.f32 %v1658, %v1747
      %v1749 = vpop.f32.mrb[0].mxu0
      %v1750 = vadd.f32 %v1660, %v1749
      %1751 = vdwg.mxu0
      %v1752 = vmax.f32 %v1075, 0.0
      %v1753 = vmax.f32 %v1077, 0.0
      %v1754 = vmax.f32 %v1748, 0.0
      %v1755 = vmax.f32 %v1750, 0.0
      %v1757 = vlaneseq
      %v1758 = vshrl.u32 %v1757, 7
      %v1759 = vsub.s32 0, %v1758
      %v1760 = vrot.slane %v243, %v1759
      %v1761 = vlaneseq
      %v1762 = vshrl.u32 %v1761, 7
      %v1763 = vsub.s32 1, %v1762
      %v1764 = vrot.slane %v243, %v1763
      %v1765 = vlaneseq
      %v1766 = vshrl.u32 %v1765, 7
      %v1767 = vsub.s32 2, %v1766
      %v1768 = vrot.slane %v243, %v1767
      %v1769 = vlaneseq
      %v1770 = vshrl.u32 %v1769, 7
      %v1771 = vsub.s32 3, %v1770
      %v1772 = vrot.slane %v243, %v1771
      %v1777 = vmul.f32 %v1752, %v1760
      %v1778 = vmul.f32 %v1753, %v1764
      %v1779 = vmul.f32 %v1754, %v1768
      %v1780 = vmul.f32 %v1755, %v1772
      %1785 = vrot.lane.b32.xlu0 %v1777, 127
      %v1786 = vpop.permute.xlu0 %1785
      %1787 = vrot.lane.b32.xlu0 %v1778, 127
      %v1788 = vpop.permute.xlu0 %1787
      %1789 = vrot.lane.b32.xlu0 %v1779, 127
      %v1790 = vpop.permute.xlu0 %1789
      %1791 = vrot.lane.b32.xlu0 %v1780, 127
      %v1792 = vpop.permute.xlu0 %1791
      %v1793 = vsel %vm259, %v1786, %v1788
      %v1794 = vsel %vm259, %v1788, %v1790
      %v1795 = vsel %vm259, %v1790, %v1792
      %1796 = vrot.lane.b32.xlu0 %v1777, 126
      %v1797 = vpop.permute.xlu0 %1796
      %1798 = vrot.lane.b32.xlu0 %v1778, 126
      %v1799 = vpop.permute.xlu0 %1798
      %1800 = vrot.lane.b32.xlu0 %v1779, 126
      %v1801 = vpop.permute.xlu0 %1800
      %1802 = vrot.lane.b32.xlu0 %v1780, 126
      %v1803 = vpop.permute.xlu0 %1802
      %v1804 = vsel %vm278, %v1797, %v1799
      %v1805 = vsel %vm278, %v1799, %v1801
      %v1806 = vsel %vm278, %v1801, %v1803
      %1807 = vrot.lane.b32.xlu0 %v1777, 110
      %v1808 = vpop.permute.xlu0 %1807
      %1809 = vrot.lane.b32.xlu0 %v1778, 110
      %v1810 = vpop.permute.xlu0 %1809
      %1811 = vrot.lane.b32.xlu0 %v1779, 110
      %v1812 = vpop.permute.xlu0 %1811
      %1813 = vrot.lane.b32.xlu0 %v1780, 110
      %v1814 = vpop.permute.xlu0 %1813
      %v1815 = vsel %vm297, %v1808, %v1810
      %v1816 = vsel %vm297, %v1810, %v1812
      %v1817 = vsel %vm297, %v1812, %v1814
      %1818 = vrot.lane.b32.xlu0 %v1777, 109
      %v1819 = vpop.permute.xlu0 %1818
      %1820 = vrot.lane.b32.xlu0 %v1778, 109
      %v1821 = vpop.permute.xlu0 %1820
      %1822 = vrot.lane.b32.xlu0 %v1779, 109
      %v1823 = vpop.permute.xlu0 %1822
      %1824 = vrot.lane.b32.xlu0 %v1780, 109
      %v1825 = vpop.permute.xlu0 %1824
      %v1826 = vsel %vm316, %v1819, %v1821
      %v1827 = vsel %vm316, %v1821, %v1823
      %v1828 = vsel %vm316, %v1823, %v1825
      %1829 = vrot.lane.b32.xlu0 %v1777, 108
      %v1830 = vpop.permute.xlu0 %1829
      %1831 = vrot.lane.b32.xlu0 %v1778, 108
      %v1832 = vpop.permute.xlu0 %1831
      %1833 = vrot.lane.b32.xlu0 %v1779, 108
      %v1834 = vpop.permute.xlu0 %1833
      %1835 = vrot.lane.b32.xlu0 %v1780, 108
      %v1836 = vpop.permute.xlu0 %1835
      %v1837 = vsel %vm335, %v1830, %v1832
      %v1838 = vsel %vm335, %v1832, %v1834
      %v1839 = vsel %vm335, %v1834, %v1836
      %1840 = vrot.lane.b32.xlu0 %v1777, 92
      %v1841 = vpop.permute.xlu0 %1840
      %1842 = vrot.lane.b32.xlu0 %v1778, 92
      %v1843 = vpop.permute.xlu0 %1842
      %1844 = vrot.lane.b32.xlu0 %v1779, 92
      %v1845 = vpop.permute.xlu0 %1844
      %1846 = vrot.lane.b32.xlu0 %v1780, 92
      %v1847 = vpop.permute.xlu0 %1846
      %v1848 = vsel %vm354, %v1841, %v1843
      %v1849 = vsel %vm354, %v1843, %v1845
      %v1850 = vsel %vm354, %v1845, %v1847
      %1851 = vrot.lane.b32.xlu0 %v1777, 91
      %v1852 = vpop.permute.xlu0 %1851
      %1853 = vrot.lane.b32.xlu0 %v1778, 91
      %v1854 = vpop.permute.xlu0 %1853
      %1855 = vrot.lane.b32.xlu0 %v1779, 91
      %v1856 = vpop.permute.xlu0 %1855
      %1857 = vrot.lane.b32.xlu0 %v1780, 91
      %v1858 = vpop.permute.xlu0 %1857
      %v1859 = vsel %vm373, %v1852, %v1854
      %v1860 = vsel %vm373, %v1854, %v1856
      %v1861 = vsel %vm373, %v1856, %v1858
      %1862 = vrot.lane.b32.xlu0 %v1778, 90
      %v1863 = vpop.permute.xlu0 %1862
      %1864 = vrot.lane.b32.xlu0 %v1779, 90
      %v1865 = vpop.permute.xlu0 %1864
      %1866 = vrot.lane.b32.xlu0 %v1780, 90
      %v1867 = vpop.permute.xlu0 %1866
      %v1868 = vsel %vm392, %v1863, %v1865
      %v1869 = vsel %vm392, %v1865, %v1867
      %v1870 = vld [vmem:[%s2] sm:$0xff]
      %1871 = vrot.lane.b32.xlu0 %v1777, 38
      %v1872 = vpop.permute.xlu0 %1871
      %1873 = vrot.lane.b32.xlu0 %v1778, 38
      %v1874 = vpop.permute.xlu0 %1873
      %1875 = vrot.lane.b32.xlu0 %v1779, 38
      %v1876 = vpop.permute.xlu0 %1875
      %1877 = vrot.lane.b32.xlu0 %v1780, 38
      %v1878 = vpop.permute.xlu0 %1877
      %1879 = vrot.lane.b32.xlu0 %v1793, 38
      %v1880 = vpop.permute.xlu0 %1879
      %1881 = vrot.lane.b32.xlu0 %v1794, 38
      %v1882 = vpop.permute.xlu0 %1881
      %1883 = vrot.lane.b32.xlu0 %v1795, 38
      %v1884 = vpop.permute.xlu0 %1883
      %1885 = vrot.lane.b32.xlu0 %v1792, 38
      %v1886 = vpop.permute.xlu0 %1885
      %1887 = vrot.lane.b32.xlu0 %v1804, 38
      %v1888 = vpop.permute.xlu0 %1887
      %1889 = vrot.lane.b32.xlu0 %v1805, 38
      %v1890 = vpop.permute.xlu0 %1889
      %1891 = vrot.lane.b32.xlu0 %v1806, 38
      %v1892 = vpop.permute.xlu0 %1891
      %1893 = vrot.lane.b32.xlu0 %v1803, 38
      %v1894 = vpop.permute.xlu0 %1893
      %1895 = vrot.lane.b32.xlu0 %v1815, 38
      %v1896 = vpop.permute.xlu0 %1895
      %1897 = vrot.lane.b32.xlu0 %v1816, 38
      %v1898 = vpop.permute.xlu0 %1897
      %1899 = vrot.lane.b32.xlu0 %v1817, 38
      %v1900 = vpop.permute.xlu0 %1899
      %1901 = vrot.lane.b32.xlu0 %v1814, 38
      %v1902 = vpop.permute.xlu0 %1901
      %1903 = vrot.lane.b32.xlu0 %v1826, 38
      %v1904 = vpop.permute.xlu0 %1903
      %1905 = vrot.lane.b32.xlu0 %v1827, 38
      %v1906 = vpop.permute.xlu0 %1905
      %1907 = vrot.lane.b32.xlu0 %v1828, 38
      %v1908 = vpop.permute.xlu0 %1907
      %1909 = vrot.lane.b32.xlu0 %v1825, 38
      %v1910 = vpop.permute.xlu0 %1909
      %1911 = vrot.lane.b32.xlu0 %v1837, 38
      %v1912 = vpop.permute.xlu0 %1911
      %1913 = vrot.lane.b32.xlu0 %v1838, 38
      %v1914 = vpop.permute.xlu0 %1913
      %1915 = vrot.lane.b32.xlu0 %v1839, 38
      %v1916 = vpop.permute.xlu0 %1915
      %1917 = vrot.lane.b32.xlu0 %v1836, 38
      %v1918 = vpop.permute.xlu0 %1917
      %1919 = vrot.lane.b32.xlu0 %v1848, 38
      %v1920 = vpop.permute.xlu0 %1919
      %1921 = vrot.lane.b32.xlu0 %v1849, 38
      %v1922 = vpop.permute.xlu0 %1921
      %1923 = vrot.lane.b32.xlu0 %v1850, 38
      %v1924 = vpop.permute.xlu0 %1923
      %1925 = vrot.lane.b32.xlu0 %v1847, 38
      %v1926 = vpop.permute.xlu0 %1925
      %1927 = vrot.lane.b32.xlu0 %v1859, 38
      %v1928 = vpop.permute.xlu0 %1927
      %1929 = vrot.lane.b32.xlu0 %v1860, 38
      %v1930 = vpop.permute.xlu0 %1929
      %1931 = vrot.lane.b32.xlu0 %v1861, 38
      %v1932 = vpop.permute.xlu0 %1931
      %1933 = vrot.lane.b32.xlu0 %v1858, 38
      %v1934 = vpop.permute.xlu0 %1933
      %1935 = vrot.lane.b32.xlu0 %v1863, 38
      %v1936 = vpop.permute.xlu0 %1935
      %1937 = vrot.lane.b32.xlu0 %v1868, 38
      %v1938 = vpop.permute.xlu0 %1937
      %1939 = vrot.lane.b32.xlu0 %v1869, 38
      %v1940 = vpop.permute.xlu0 %1939
      %1941 = vrot.lane.b32.xlu0 %v1867, 38
      %v1942 = vpop.permute.xlu0 %1941
      %vm1943 = vcmask 310272
      %v1944 = vsel %vm1943, %v1872, %v1874
      %v1945 = vsel %vm1943, %v1874, %v1876
      %v1946 = vsel %vm1943, %v1876, %v1878
      %v1947 = vsel %vm1943, %v1880, %v1882
      %v1948 = vsel %vm1943, %v1882, %v1884
      %v1949 = vsel %vm1943, %v1884, %v1886
      %v1950 = vsel %vm1943, %v1888, %v1890
      %v1951 = vsel %vm1943, %v1890, %v1892
      %v1952 = vsel %vm1943, %v1892, %v1894
      %v1953 = vsel %vm1943, %v1896, %v1898
      %v1954 = vsel %vm1943, %v1898, %v1900
      %v1955 = vsel %vm1943, %v1900, %v1902
      %v1956 = vsel %vm1943, %v1904, %v1906
      %v1957 = vsel %vm1943, %v1906, %v1908
      %v1958 = vsel %vm1943, %v1908, %v1910
      %v1959 = vsel %vm1943, %v1912, %v1914
      %v1960 = vsel %vm1943, %v1914, %v1916
      %v1961 = vsel %vm1943, %v1916, %v1918
      %v1962 = vsel %vm1943, %v1920, %v1922
      %v1963 = vsel %vm1943, %v1922, %v1924
      %v1964 = vsel %vm1943, %v1924, %v1926
      %v1965 = vsel %vm1943, %v1928, %v1930
      %v1966 = vsel %vm1943, %v1930, %v1932
      %v1967 = vsel %vm1943, %v1932, %v1934
      %v1968 = vsel %vm1943, %v1936, %v1938
      %v1969 = vsel %vm1943, %v1938, %v1940
      %v1970 = vsel %vm1943, %v1940, %v1942
      %v1999 = vsel %vm402, %v1870, 0
      %v2001 = vand.u32 %v1945, 4294901760
      %2002 = vmatprep.subr.mxu0 %v2001
      %v2003 = vand.u32 %v1944, 4294901760
      %2004 = vmatpush1.msra.mxu0 %v2003
      %v2005 = vand.u32 %v1948, 4294901760
      %2006 = vmatprep.subr.mxu0 %v2005
      %v2007 = vand.u32 %v1947, 4294901760
      %2008 = vmatpush1.msra.mxu0 %v2007
      %v2009 = vand.u32 %v1951, 4294901760
      %2010 = vmatprep.subr.mxu0 %v2009
      %v2011 = vand.u32 %v1950, 4294901760
      %2012 = vmatpush1.msra.mxu0 %v2011
      %v2013 = vand.u32 %v1954, 4294901760
      %2014 = vmatprep.subr.mxu0 %v2013
      %v2015 = vand.u32 %v1953, 4294901760
      %2016 = vmatpush1.msra.mxu0 %v2015
      %v2017 = vand.u32 %v1957, 4294901760
      %2018 = vmatprep.subr.mxu0 %v2017
      %v2019 = vand.u32 %v1956, 4294901760
      %2020 = vmatpush1.msra.mxu0 %v2019
      %v2021 = vand.u32 %v1960, 4294901760
      %2022 = vmatprep.subr.mxu0 %v2021
      %v2023 = vand.u32 %v1959, 4294901760
      %2024 = vmatpush1.msra.mxu0 %v2023
      %v2025 = vand.u32 %v1963, 4294901760
      %2026 = vmatprep.subr.mxu0 %v2025
      %v2027 = vand.u32 %v1962, 4294901760
      %2028 = vmatpush1.msra.mxu0 %v2027
      %v2029 = vand.u32 %v1966, 4294901760
      %2030 = vmatprep.subr.mxu0 %v2029
      %v2031 = vand.u32 %v1965, 4294901760
      %2032 = vmatpush1.msra.mxu0 %v2031
      %v2033 = vand.u32 %v1969, 4294901760
      %2034 = vmatprep.subr.mxu0 %v2033
      %v2035 = vand.u32 %v1968, 4294901760
      %2036 = vmatpush1.msra.mxu0 %v2035
      %2037 = vmatprep.subr.mxu0 0.0
      %2038 = vmatpush1.msra.mxu0 0.0
      %2039 = vmatprep.subr.mxu0 0.0
      %2040 = vmatpush1.msra.mxu0 0.0
      %2041 = vmatprep.subr.mxu0 0.0
      %2042 = vmatpush1.msra.mxu0 0.0
      %2043 = vmatprep.subr.mxu0 0.0
      %2044 = vmatpush1.msra.mxu0 0.0
      %2045 = vmatprep.subr.mxu0 0.0
      %2046 = vmatpush1.msra.mxu0 0.0
      %2047 = vmatprep.subr.mxu0 0.0
      %2048 = vmatpush1.msra.mxu0 0.0
      %2049 = vmatprep.subr.mxu0 0.0
      %2050 = vmatpush1.msra.mxu0 0.0
      %2051 = vmatprep.subr.mxu0 0.0
      %2052 = vmatpush1.msra.mxu0 0.0
      %2053 = vmatprep.subr.mxu0 0.0
      %2054 = vmatpush1.msra.mxu0 0.0
      %2055 = vmatprep.subr.mxu0 0.0
      %2056 = vmatpush1.msra.mxu0 0.0
      %2057 = vmatprep.subr.mxu0 0.0
      %2058 = vmatpush1.msra.mxu0 0.0
      %2059 = vmatprep.subr.mxu0 0.0
      %2060 = vmatpush1.msra.mxu0 0.0
      %2061 = vmatprep.subr.mxu0 0.0
      %2062 = vmatpush1.msra.mxu0 0.0
      %2063 = vmatprep.subr.mxu0 0.0
      %2064 = vmatpush1.msra.mxu0 0.0
      %2065 = vmatprep.subr.mxu0 0.0
      %2066 = vmatpush1.msra.mxu0 0.0
      %2067 = vmatprep.subr.mxu0 0.0
      %2068 = vmatpush1.msra.mxu0 0.0
      %2069 = vmatprep.subr.mxu0 0.0
      %2070 = vmatpush1.msra.mxu0 0.0
      %2071 = vmatprep.subr.mxu0 0.0
      %2072 = vmatpush1.msra.mxu0 0.0
      %2073 = vmatprep.subr.mxu0 0.0
      %2074 = vmatpush1.msra.mxu0 0.0
      %2075 = vmatprep.subr.mxu0 0.0
      %2076 = vmatpush1.msra.mxu0 0.0
      %2077 = vmatprep.subr.mxu0 0.0
      %2078 = vmatpush1.msra.mxu0 0.0
      %2079 = vmatprep.subr.mxu0 0.0
      %2080 = vmatpush1.msra.mxu0 0.0
      %2081 = vmatprep.subr.mxu0 0.0
      %2082 = vmatpush1.msra.mxu0 0.0
      %2083 = vmatprep.mubr.f32.mxu0 0.0
      %v2084 = vand.u32 %v1999, 4294901760
      %v2085 = vsub.f32 %v1999, %v2084
      %v2086 = vand.u32 %v2085, 4294901760
      %v2087 = vsub.f32 %v2085, %v2086
      %v2088 = vand.u32 %v2087, 4294901760
      %2089 = vmatmul.mubr.f32.gmra.mrb[0].mxu0 %v2088
      %v2090 = vpop.f32.mrb[0].mxu0
      %v2091 = vadd.f32 0.0, %v2090
      %v2092 = vpop.f32.mrb[0].mxu0
      %v2093 = vadd.f32 0.0, %v2092
      %2094 = vdwg.mxu0
      %v2095 = vand.u32 %v1945, 4294901760
      %v2096 = vsub.f32 %v1945, %v2095
      %v2097 = vand.u32 %v2096, 4294901760
      %v2098 = vsub.f32 %v2096, %v2097
      %v2099 = vand.u32 %v2098, 4294901760
      %2100 = vmatprep.subr.mxu0 %v2099
      %v2101 = vand.u32 %v1944, 4294901760
      %v2102 = vsub.f32 %v1944, %v2101
      %v2103 = vand.u32 %v2102, 4294901760
      %v2104 = vsub.f32 %v2102, %v2103
      %v2105 = vand.u32 %v2104, 4294901760
      %2106 = vmatpush1.msra.mxu0 %v2105
      %v2107 = vand.u32 %v1948, 4294901760
      %v2108 = vsub.f32 %v1948, %v2107
      %v2109 = vand.u32 %v2108, 4294901760
      %v2110 = vsub.f32 %v2108, %v2109
      %v2111 = vand.u32 %v2110, 4294901760
      %2112 = vmatprep.subr.mxu0 %v2111
      %v2113 = vand.u32 %v1947, 4294901760
      %v2114 = vsub.f32 %v1947, %v2113
      %v2115 = vand.u32 %v2114, 4294901760
      %v2116 = vsub.f32 %v2114, %v2115
      %v2117 = vand.u32 %v2116, 4294901760
      %2118 = vmatpush1.msra.mxu0 %v2117
      %v2119 = vand.u32 %v1951, 4294901760
      %v2120 = vsub.f32 %v1951, %v2119
      %v2121 = vand.u32 %v2120, 4294901760
      %v2122 = vsub.f32 %v2120, %v2121
      %v2123 = vand.u32 %v2122, 4294901760
      %2124 = vmatprep.subr.mxu0 %v2123
      %v2125 = vand.u32 %v1950, 4294901760
      %v2126 = vsub.f32 %v1950, %v2125
      %v2127 = vand.u32 %v2126, 4294901760
      %v2128 = vsub.f32 %v2126, %v2127
      %v2129 = vand.u32 %v2128, 4294901760
      %2130 = vmatpush1.msra.mxu0 %v2129
      %v2131 = vand.u32 %v1954, 4294901760
      %v2132 = vsub.f32 %v1954, %v2131
      %v2133 = vand.u32 %v2132, 4294901760
      %v2134 = vsub.f32 %v2132, %v2133
      %v2135 = vand.u32 %v2134, 4294901760
      %2136 = vmatprep.subr.mxu0 %v2135
      %v2137 = vand.u32 %v1953, 4294901760
      %v2138 = vsub.f32 %v1953, %v2137
      %v2139 = vand.u32 %v2138, 4294901760
      %v2140 = vsub.f32 %v2138, %v2139
      %v2141 = vand.u32 %v2140, 4294901760
      %2142 = vmatpush1.msra.mxu0 %v2141
      %v2143 = vand.u32 %v1957, 4294901760
      %v2144 = vsub.f32 %v1957, %v2143
      %v2145 = vand.u32 %v2144, 4294901760
      %v2146 = vsub.f32 %v2144, %v2145
      %v2147 = vand.u32 %v2146, 4294901760
      %2148 = vmatprep.subr.mxu0 %v2147
      %v2149 = vand.u32 %v1956, 4294901760
      %v2150 = vsub.f32 %v1956, %v2149
      %v2151 = vand.u32 %v2150, 4294901760
      %v2152 = vsub.f32 %v2150, %v2151
      %v2153 = vand.u32 %v2152, 4294901760
      %2154 = vmatpush1.msra.mxu0 %v2153
      %v2155 = vand.u32 %v1960, 4294901760
      %v2156 = vsub.f32 %v1960, %v2155
      %v2157 = vand.u32 %v2156, 4294901760
      %v2158 = vsub.f32 %v2156, %v2157
      %v2159 = vand.u32 %v2158, 4294901760
      %2160 = vmatprep.subr.mxu0 %v2159
      %v2161 = vand.u32 %v1959, 4294901760
      %v2162 = vsub.f32 %v1959, %v2161
      %v2163 = vand.u32 %v2162, 4294901760
      %v2164 = vsub.f32 %v2162, %v2163
      %v2165 = vand.u32 %v2164, 4294901760
      %2166 = vmatpush1.msra.mxu0 %v2165
      %v2167 = vand.u32 %v1963, 4294901760
      %v2168 = vsub.f32 %v1963, %v2167
      %v2169 = vand.u32 %v2168, 4294901760
      %v2170 = vsub.f32 %v2168, %v2169
      %v2171 = vand.u32 %v2170, 4294901760
      %2172 = vmatprep.subr.mxu0 %v2171
      %v2173 = vand.u32 %v1962, 4294901760
      %v2174 = vsub.f32 %v1962, %v2173
      %v2175 = vand.u32 %v2174, 4294901760
      %v2176 = vsub.f32 %v2174, %v2175
      %v2177 = vand.u32 %v2176, 4294901760
      %2178 = vmatpush1.msra.mxu0 %v2177
      %v2179 = vand.u32 %v1966, 4294901760
      %v2180 = vsub.f32 %v1966, %v2179
      %v2181 = vand.u32 %v2180, 4294901760
      %v2182 = vsub.f32 %v2180, %v2181
      %v2183 = vand.u32 %v2182, 4294901760
      %2184 = vmatprep.subr.mxu0 %v2183
      %v2185 = vand.u32 %v1965, 4294901760
      %v2186 = vsub.f32 %v1965, %v2185
      %v2187 = vand.u32 %v2186, 4294901760
      %v2188 = vsub.f32 %v2186, %v2187
      %v2189 = vand.u32 %v2188, 4294901760
      %2190 = vmatpush1.msra.mxu0 %v2189
      %v2191 = vand.u32 %v1969, 4294901760
      %v2192 = vsub.f32 %v1969, %v2191
      %v2193 = vand.u32 %v2192, 4294901760
      %v2194 = vsub.f32 %v2192, %v2193
      %v2195 = vand.u32 %v2194, 4294901760
      %2196 = vmatprep.subr.mxu0 %v2195
      %v2197 = vand.u32 %v1968, 4294901760
      %v2198 = vsub.f32 %v1968, %v2197
      %v2199 = vand.u32 %v2198, 4294901760
      %v2200 = vsub.f32 %v2198, %v2199
      %v2201 = vand.u32 %v2200, 4294901760
      %2202 = vmatpush1.msra.mxu0 %v2201
      %2203 = vmatprep.subr.mxu0 0.0
      %2204 = vmatpush1.msra.mxu0 0.0
      %2205 = vmatprep.subr.mxu0 0.0
      %2206 = vmatpush1.msra.mxu0 0.0
      %2207 = vmatprep.subr.mxu0 0.0
      %2208 = vmatpush1.msra.mxu0 0.0
      %2209 = vmatprep.subr.mxu0 0.0
      %2210 = vmatpush1.msra.mxu0 0.0
      %2211 = vmatprep.subr.mxu0 0.0
      %2212 = vmatpush1.msra.mxu0 0.0
      %2213 = vmatprep.subr.mxu0 0.0
      %2214 = vmatpush1.msra.mxu0 0.0
      %2215 = vmatprep.subr.mxu0 0.0
      %2216 = vmatpush1.msra.mxu0 0.0
      %2217 = vmatprep.subr.mxu0 0.0
      %2218 = vmatpush1.msra.mxu0 0.0
      %2219 = vmatprep.subr.mxu0 0.0
      %2220 = vmatpush1.msra.mxu0 0.0
      %2221 = vmatprep.subr.mxu0 0.0
      %2222 = vmatpush1.msra.mxu0 0.0
      %2223 = vmatprep.subr.mxu0 0.0
      %2224 = vmatpush1.msra.mxu0 0.0
      %2225 = vmatprep.subr.mxu0 0.0
      %2226 = vmatpush1.msra.mxu0 0.0
      %2227 = vmatprep.subr.mxu0 0.0
      %2228 = vmatpush1.msra.mxu0 0.0
      %2229 = vmatprep.subr.mxu0 0.0
      %2230 = vmatpush1.msra.mxu0 0.0
      %2231 = vmatprep.subr.mxu0 0.0
      %2232 = vmatpush1.msra.mxu0 0.0
      %2233 = vmatprep.subr.mxu0 0.0
      %2234 = vmatpush1.msra.mxu0 0.0
      %2235 = vmatprep.subr.mxu0 0.0
      %2236 = vmatpush1.msra.mxu0 0.0
      %2237 = vmatprep.subr.mxu0 0.0
      %2238 = vmatpush1.msra.mxu0 0.0
      %2239 = vmatprep.subr.mxu0 0.0
      %2240 = vmatpush1.msra.mxu0 0.0
      %2241 = vmatprep.subr.mxu0 0.0
      %2242 = vmatpush1.msra.mxu0 0.0
      %2243 = vmatprep.subr.mxu0 0.0
      %2244 = vmatpush1.msra.mxu0 0.0
      %2245 = vmatprep.subr.mxu0 0.0
      %2246 = vmatpush1.msra.mxu0 0.0
      %2247 = vmatprep.subr.mxu0 0.0
      %2248 = vmatpush1.msra.mxu0 0.0
      %2249 = vmatprep.mubr.f32.mxu0 0.0
      %v2250 = vand.u32 %v1999, 4294901760
      %2251 = vmatmul.mubr.f32.gmra.mrb[0].mxu0 %v2250
      %v2252 = vpop.f32.mrb[0].mxu0
      %v2253 = vadd.f32 %v2091, %v2252
      %v2254 = vpop.f32.mrb[0].mxu0
      %v2255 = vadd.f32 %v2093, %v2254
      %2256 = vdwg.mxu0
      %v2257 = vand.u32 %v1945, 4294901760
      %v2258 = vsub.f32 %v1945, %v2257
      %2259 = vmatprep.subr.mxu0 %v2258
      %v2260 = vand.u32 %v1944, 4294901760
      %v2261 = vsub.f32 %v1944, %v2260
      %2262 = vmatpush1.msra.mxu0 %v2261
      %v2263 = vand.u32 %v1948, 4294901760
      %v2264 = vsub.f32 %v1948, %v2263
      %2265 = vmatprep.subr.mxu0 %v2264
      %v2266 = vand.u32 %v1947, 4294901760
      %v2267 = vsub.f32 %v1947, %v2266
      %2268 = vmatpush1.msra.mxu0 %v2267
      %v2269 = vand.u32 %v1951, 4294901760
      %v2270 = vsub.f32 %v1951, %v2269
      %2271 = vmatprep.subr.mxu0 %v2270
      %v2272 = vand.u32 %v1950, 4294901760
      %v2273 = vsub.f32 %v1950, %v2272
      %2274 = vmatpush1.msra.mxu0 %v2273
      %v2275 = vand.u32 %v1954, 4294901760
      %v2276 = vsub.f32 %v1954, %v2275
      %2277 = vmatprep.subr.mxu0 %v2276
      %v2278 = vand.u32 %v1953, 4294901760
      %v2279 = vsub.f32 %v1953, %v2278
      %2280 = vmatpush1.msra.mxu0 %v2279
      %v2281 = vand.u32 %v1957, 4294901760
      %v2282 = vsub.f32 %v1957, %v2281
      %2283 = vmatprep.subr.mxu0 %v2282
      %v2284 = vand.u32 %v1956, 4294901760
      %v2285 = vsub.f32 %v1956, %v2284
      %2286 = vmatpush1.msra.mxu0 %v2285
      %v2287 = vand.u32 %v1960, 4294901760
      %v2288 = vsub.f32 %v1960, %v2287
      %2289 = vmatprep.subr.mxu0 %v2288
      %v2290 = vand.u32 %v1959, 4294901760
      %v2291 = vsub.f32 %v1959, %v2290
      %2292 = vmatpush1.msra.mxu0 %v2291
      %v2293 = vand.u32 %v1963, 4294901760
      %v2294 = vsub.f32 %v1963, %v2293
      %2295 = vmatprep.subr.mxu0 %v2294
      %v2296 = vand.u32 %v1962, 4294901760
      %v2297 = vsub.f32 %v1962, %v2296
      %2298 = vmatpush1.msra.mxu0 %v2297
      %v2299 = vand.u32 %v1966, 4294901760
      %v2300 = vsub.f32 %v1966, %v2299
      %2301 = vmatprep.subr.mxu0 %v2300
      %v2302 = vand.u32 %v1965, 4294901760
      %v2303 = vsub.f32 %v1965, %v2302
      %2304 = vmatpush1.msra.mxu0 %v2303
      %v2305 = vand.u32 %v1969, 4294901760
      %v2306 = vsub.f32 %v1969, %v2305
      %2307 = vmatprep.subr.mxu0 %v2306
      %v2308 = vand.u32 %v1968, 4294901760
      %v2309 = vsub.f32 %v1968, %v2308
      %2310 = vmatpush1.msra.mxu0 %v2309
      %2311 = vmatprep.subr.mxu0 0.0
      %2312 = vmatpush1.msra.mxu0 0.0
      %2313 = vmatprep.subr.mxu0 0.0
      %2314 = vmatpush1.msra.mxu0 0.0
      %2315 = vmatprep.subr.mxu0 0.0
      %2316 = vmatpush1.msra.mxu0 0.0
      %2317 = vmatprep.subr.mxu0 0.0
      %2318 = vmatpush1.msra.mxu0 0.0
      %2319 = vmatprep.subr.mxu0 0.0
      %2320 = vmatpush1.msra.mxu0 0.0
      %2321 = vmatprep.subr.mxu0 0.0
      %2322 = vmatpush1.msra.mxu0 0.0
      %2323 = vmatprep.subr.mxu0 0.0
      %2324 = vmatpush1.msra.mxu0 0.0
      %2325 = vmatprep.subr.mxu0 0.0
      %2326 = vmatpush1.msra.mxu0 0.0
      %2327 = vmatprep.subr.mxu0 0.0
      %2328 = vmatpush1.msra.mxu0 0.0
      %2329 = vmatprep.subr.mxu0 0.0
      %2330 = vmatpush1.msra.mxu0 0.0
      %2331 = vmatprep.subr.mxu0 0.0
      %2332 = vmatpush1.msra.mxu0 0.0
      %2333 = vmatprep.subr.mxu0 0.0
      %2334 = vmatpush1.msra.mxu0 0.0
      %2335 = vmatprep.subr.mxu0 0.0
      %2336 = vmatpush1.msra.mxu0 0.0
      %2337 = vmatprep.subr.mxu0 0.0
      %2338 = vmatpush1.msra.mxu0 0.0
      %2339 = vmatprep.subr.mxu0 0.0
      %2340 = vmatpush1.msra.mxu0 0.0
      %2341 = vmatprep.subr.mxu0 0.0
      %2342 = vmatpush1.msra.mxu0 0.0
      %2343 = vmatprep.subr.mxu0 0.0
      %2344 = vmatpush1.msra.mxu0 0.0
      %2345 = vmatprep.subr.mxu0 0.0
      %2346 = vmatpush1.msra.mxu0 0.0
      %2347 = vmatprep.subr.mxu0 0.0
      %2348 = vmatpush1.msra.mxu0 0.0
      %2349 = vmatprep.subr.mxu0 0.0
      %2350 = vmatpush1.msra.mxu0 0.0
      %2351 = vmatprep.subr.mxu0 0.0
      %2352 = vmatpush1.msra.mxu0 0.0
      %2353 = vmatprep.subr.mxu0 0.0
      %2354 = vmatpush1.msra.mxu0 0.0
      %2355 = vmatprep.subr.mxu0 0.0
      %2356 = vmatpush1.msra.mxu0 0.0
      %2357 = vmatprep.mubr.f32.mxu0 0.0
      %v2358 = vand.u32 %v1999, 4294901760
      %v2359 = vsub.f32 %v1999, %v2358
      %2360 = vmatmul.mubr.f32.gmra.mrb[0].mxu0 %v2359
      %v2361 = vpop.f32.mrb[0].mxu0
      %v2362 = vadd.f32 %v2253, %v2361
      %v2363 = vpop.f32.mrb[0].mxu0
      %v2364 = vadd.f32 %v2255, %v2363
      %2365 = vdwg.mxu0
      %v2366 = vand.u32 %v1945, 4294901760
      %2367 = vmatprep.subr.mxu0 %v2366
      %v2368 = vand.u32 %v1944, 4294901760
      %2369 = vmatpush1.msra.mxu0 %v2368
      %v2370 = vand.u32 %v1948, 4294901760
      %2371 = vmatprep.subr.mxu0 %v2370
      %v2372 = vand.u32 %v1947, 4294901760
      %2373 = vmatpush1.msra.mxu0 %v2372
      %v2374 = vand.u32 %v1951, 4294901760
      %2375 = vmatprep.subr.mxu0 %v2374
      %v2376 = vand.u32 %v1950, 4294901760
      %2377 = vmatpush1.msra.mxu0 %v2376
      %v2378 = vand.u32 %v1954, 4294901760
      %2379 = vmatprep.subr.mxu0 %v2378
      %v2380 = vand.u32 %v1953, 4294901760
      %2381 = vmatpush1.msra.mxu0 %v2380
      %v2382 = vand.u32 %v1957, 4294901760
      %2383 = vmatprep.subr.mxu0 %v2382
      %v2384 = vand.u32 %v1956, 4294901760
      %2385 = vmatpush1.msra.mxu0 %v2384
      %v2386 = vand.u32 %v1960, 4294901760
      %2387 = vmatprep.subr.mxu0 %v2386
      %v2388 = vand.u32 %v1959, 4294901760
      %2389 = vmatpush1.msra.mxu0 %v2388
      %v2390 = vand.u32 %v1963, 4294901760
      %2391 = vmatprep.subr.mxu0 %v2390
      %v2392 = vand.u32 %v1962, 4294901760
      %2393 = vmatpush1.msra.mxu0 %v2392
      %v2394 = vand.u32 %v1966, 4294901760
      %2395 = vmatprep.subr.mxu0 %v2394
      %v2396 = vand.u32 %v1965, 4294901760
      %2397 = vmatpush1.msra.mxu0 %v2396
      %v2398 = vand.u32 %v1969, 4294901760
      %2399 = vmatprep.subr.mxu0 %v2398
      %v2400 = vand.u32 %v1968, 4294901760
      %2401 = vmatpush1.msra.mxu0 %v2400
      %2402 = vmatprep.subr.mxu0 0.0
      %2403 = vmatpush1.msra.mxu0 0.0
      %2404 = vmatprep.subr.mxu0 0.0
      %2405 = vmatpush1.msra.mxu0 0.0
      %2406 = vmatprep.subr.mxu0 0.0
      %2407 = vmatpush1.msra.mxu0 0.0
      %2408 = vmatprep.subr.mxu0 0.0
      %2409 = vmatpush1.msra.mxu0 0.0
      %2410 = vmatprep.subr.mxu0 0.0
      %2411 = vmatpush1.msra.mxu0 0.0
      %2412 = vmatprep.subr.mxu0 0.0
      %2413 = vmatpush1.msra.mxu0 0.0
      %2414 = vmatprep.subr.mxu0 0.0
      %2415 = vmatpush1.msra.mxu0 0.0
      %2416 = vmatprep.subr.mxu0 0.0
      %2417 = vmatpush1.msra.mxu0 0.0
      %2418 = vmatprep.subr.mxu0 0.0
      %2419 = vmatpush1.msra.mxu0 0.0
      %2420 = vmatprep.subr.mxu0 0.0
      %2421 = vmatpush1.msra.mxu0 0.0
      %2422 = vmatprep.subr.mxu0 0.0
      %2423 = vmatpush1.msra.mxu0 0.0
      %2424 = vmatprep.subr.mxu0 0.0
      %2425 = vmatpush1.msra.mxu0 0.0
      %2426 = vmatprep.subr.mxu0 0.0
      %2427 = vmatpush1.msra.mxu0 0.0
      %2428 = vmatprep.subr.mxu0 0.0
      %2429 = vmatpush1.msra.mxu0 0.0
      %2430 = vmatprep.subr.mxu0 0.0
      %2431 = vmatpush1.msra.mxu0 0.0
      %2432 = vmatprep.subr.mxu0 0.0
      %2433 = vmatpush1.msra.mxu0 0.0
      %2434 = vmatprep.subr.mxu0 0.0
      %2435 = vmatpush1.msra.mxu0 0.0
      %2436 = vmatprep.subr.mxu0 0.0
      %2437 = vmatpush1.msra.mxu0 0.0
      %2438 = vmatprep.subr.mxu0 0.0
      %2439 = vmatpush1.msra.mxu0 0.0
      %2440 = vmatprep.subr.mxu0 0.0
      %2441 = vmatpush1.msra.mxu0 0.0
      %2442 = vmatprep.subr.mxu0 0.0
      %2443 = vmatpush1.msra.mxu0 0.0
      %2444 = vmatprep.subr.mxu0 0.0
      %2445 = vmatpush1.msra.mxu0 0.0
      %2446 = vmatprep.subr.mxu0 0.0
      %2447 = vmatpush1.msra.mxu0 0.0
      %2448 = vmatprep.mubr.f32.mxu0 0.0
      %v2449 = vand.u32 %v1999, 4294901760
      %v2450 = vsub.f32 %v1999, %v2449
      %v2451 = vand.u32 %v2450, 4294901760
      %2452 = vmatmul.mubr.f32.gmra.mrb[0].mxu0 %v2451
      %v2453 = vpop.f32.mrb[0].mxu0
      %v2454 = vadd.f32 %v2362, %v2453
      %v2455 = vpop.f32.mrb[0].mxu0
      %v2456 = vadd.f32 %v2364, %v2455
      %2457 = vdwg.mxu0
      %v2458 = vand.u32 %v1945, 4294901760
      %v2459 = vsub.f32 %v1945, %v2458
      %v2460 = vand.u32 %v2459, 4294901760
      %2461 = vmatprep.subr.mxu0 %v2460
      %v2462 = vand.u32 %v1944, 4294901760
      %v2463 = vsub.f32 %v1944, %v2462
      %v2464 = vand.u32 %v2463, 4294901760
      %2465 = vmatpush1.msra.mxu0 %v2464
      %v2466 = vand.u32 %v1948, 4294901760
      %v2467 = vsub.f32 %v1948, %v2466
      %v2468 = vand.u32 %v2467, 4294901760
      %2469 = vmatprep.subr.mxu0 %v2468
      %v2470 = vand.u32 %v1947, 4294901760
      %v2471 = vsub.f32 %v1947, %v2470
      %v2472 = vand.u32 %v2471, 4294901760
      %2473 = vmatpush1.msra.mxu0 %v2472
      %v2474 = vand.u32 %v1951, 4294901760
      %v2475 = vsub.f32 %v1951, %v2474
      %v2476 = vand.u32 %v2475, 4294901760
      %2477 = vmatprep.subr.mxu0 %v2476
      %v2478 = vand.u32 %v1950, 4294901760
      %v2479 = vsub.f32 %v1950, %v2478
      %v2480 = vand.u32 %v2479, 4294901760
      %2481 = vmatpush1.msra.mxu0 %v2480
      %v2482 = vand.u32 %v1954, 4294901760
      %v2483 = vsub.f32 %v1954, %v2482
      %v2484 = vand.u32 %v2483, 4294901760
      %2485 = vmatprep.subr.mxu0 %v2484
      %v2486 = vand.u32 %v1953, 4294901760
      %v2487 = vsub.f32 %v1953, %v2486
      %v2488 = vand.u32 %v2487, 4294901760
      %2489 = vmatpush1.msra.mxu0 %v2488
      %v2490 = vand.u32 %v1957, 4294901760
      %v2491 = vsub.f32 %v1957, %v2490
      %v2492 = vand.u32 %v2491, 4294901760
      %2493 = vmatprep.subr.mxu0 %v2492
      %v2494 = vand.u32 %v1956, 4294901760
      %v2495 = vsub.f32 %v1956, %v2494
      %v2496 = vand.u32 %v2495, 4294901760
      %2497 = vmatpush1.msra.mxu0 %v2496
      %v2498 = vand.u32 %v1960, 4294901760
      %v2499 = vsub.f32 %v1960, %v2498
      %v2500 = vand.u32 %v2499, 4294901760
      %2501 = vmatprep.subr.mxu0 %v2500
      %v2502 = vand.u32 %v1959, 4294901760
      %v2503 = vsub.f32 %v1959, %v2502
      %v2504 = vand.u32 %v2503, 4294901760
      %2505 = vmatpush1.msra.mxu0 %v2504
      %v2506 = vand.u32 %v1963, 4294901760
      %v2507 = vsub.f32 %v1963, %v2506
      %v2508 = vand.u32 %v2507, 4294901760
      %2509 = vmatprep.subr.mxu0 %v2508
      %v2510 = vand.u32 %v1962, 4294901760
      %v2511 = vsub.f32 %v1962, %v2510
      %v2512 = vand.u32 %v2511, 4294901760
      %2513 = vmatpush1.msra.mxu0 %v2512
      %v2514 = vand.u32 %v1966, 4294901760
      %v2515 = vsub.f32 %v1966, %v2514
      %v2516 = vand.u32 %v2515, 4294901760
      %2517 = vmatprep.subr.mxu0 %v2516
      %v2518 = vand.u32 %v1965, 4294901760
      %v2519 = vsub.f32 %v1965, %v2518
      %v2520 = vand.u32 %v2519, 4294901760
      %2521 = vmatpush1.msra.mxu0 %v2520
      %v2522 = vand.u32 %v1969, 4294901760
      %v2523 = vsub.f32 %v1969, %v2522
      %v2524 = vand.u32 %v2523, 4294901760
      %2525 = vmatprep.subr.mxu0 %v2524
      %v2526 = vand.u32 %v1968, 4294901760
      %v2527 = vsub.f32 %v1968, %v2526
      %v2528 = vand.u32 %v2527, 4294901760
      %2529 = vmatpush1.msra.mxu0 %v2528
      %2530 = vmatprep.subr.mxu0 0.0
      %2531 = vmatpush1.msra.mxu0 0.0
      %2532 = vmatprep.subr.mxu0 0.0
      %2533 = vmatpush1.msra.mxu0 0.0
      %2534 = vmatprep.subr.mxu0 0.0
      %2535 = vmatpush1.msra.mxu0 0.0
      %2536 = vmatprep.subr.mxu0 0.0
      %2537 = vmatpush1.msra.mxu0 0.0
      %2538 = vmatprep.subr.mxu0 0.0
      %2539 = vmatpush1.msra.mxu0 0.0
      %2540 = vmatprep.subr.mxu0 0.0
      %2541 = vmatpush1.msra.mxu0 0.0
      %2542 = vmatprep.subr.mxu0 0.0
      %2543 = vmatpush1.msra.mxu0 0.0
      %2544 = vmatprep.subr.mxu0 0.0
      %2545 = vmatpush1.msra.mxu0 0.0
      %2546 = vmatprep.subr.mxu0 0.0
      %2547 = vmatpush1.msra.mxu0 0.0
      %2548 = vmatprep.subr.mxu0 0.0
      %2549 = vmatpush1.msra.mxu0 0.0
      %2550 = vmatprep.subr.mxu0 0.0
      %2551 = vmatpush1.msra.mxu0 0.0
      %2552 = vmatprep.subr.mxu0 0.0
      %2553 = vmatpush1.msra.mxu0 0.0
      %2554 = vmatprep.subr.mxu0 0.0
      %2555 = vmatpush1.msra.mxu0 0.0
      %2556 = vmatprep.subr.mxu0 0.0
      %2557 = vmatpush1.msra.mxu0 0.0
      %2558 = vmatprep.subr.mxu0 0.0
      %2559 = vmatpush1.msra.mxu0 0.0
      %2560 = vmatprep.subr.mxu0 0.0
      %2561 = vmatpush1.msra.mxu0 0.0
      %2562 = vmatprep.subr.mxu0 0.0
      %2563 = vmatpush1.msra.mxu0 0.0
      %2564 = vmatprep.subr.mxu0 0.0
      %2565 = vmatpush1.msra.mxu0 0.0
      %2566 = vmatprep.subr.mxu0 0.0
      %2567 = vmatpush1.msra.mxu0 0.0
      %2568 = vmatprep.subr.mxu0 0.0
      %2569 = vmatpush1.msra.mxu0 0.0
      %2570 = vmatprep.subr.mxu0 0.0
      %2571 = vmatpush1.msra.mxu0 0.0
      %2572 = vmatprep.subr.mxu0 0.0
      %2573 = vmatpush1.msra.mxu0 0.0
      %2574 = vmatprep.subr.mxu0 0.0
      %2575 = vmatpush1.msra.mxu0 0.0
      %2576 = vmatprep.mubr.f32.mxu0 0.0
      %v2577 = vand.u32 %v1999, 4294901760
      %2578 = vmatmul.mubr.f32.gmra.mrb[0].mxu0 %v2577
      %v2579 = vpop.f32.mrb[0].mxu0
      %v2580 = vadd.f32 %v2454, %v2579
      %v2581 = vpop.f32.mrb[0].mxu0
      %v2582 = vadd.f32 %v2456, %v2581
      %2583 = vdwg.mxu0
      %v2584 = vand.u32 %v1945, 4294901760
      %2585 = vmatprep.subr.mxu0 %v2584
      %v2586 = vand.u32 %v1944, 4294901760
      %2587 = vmatpush1.msra.mxu0 %v2586
      %v2588 = vand.u32 %v1948, 4294901760
      %2589 = vmatprep.subr.mxu0 %v2588
      %v2590 = vand.u32 %v1947, 4294901760
      %2591 = vmatpush1.msra.mxu0 %v2590
      %v2592 = vand.u32 %v1951, 4294901760
      %2593 = vmatprep.subr.mxu0 %v2592
      %v2594 = vand.u32 %v1950, 4294901760
      %2595 = vmatpush1.msra.mxu0 %v2594
      %v2596 = vand.u32 %v1954, 4294901760
      %2597 = vmatprep.subr.mxu0 %v2596
      %v2598 = vand.u32 %v1953, 4294901760
      %2599 = vmatpush1.msra.mxu0 %v2598
      %v2600 = vand.u32 %v1957, 4294901760
      %2601 = vmatprep.subr.mxu0 %v2600
      %v2602 = vand.u32 %v1956, 4294901760
      %2603 = vmatpush1.msra.mxu0 %v2602
      %v2604 = vand.u32 %v1960, 4294901760
      %2605 = vmatprep.subr.mxu0 %v2604
      %v2606 = vand.u32 %v1959, 4294901760
      %2607 = vmatpush1.msra.mxu0 %v2606
      %v2608 = vand.u32 %v1963, 4294901760
      %2609 = vmatprep.subr.mxu0 %v2608
      %v2610 = vand.u32 %v1962, 4294901760
      %2611 = vmatpush1.msra.mxu0 %v2610
      %v2612 = vand.u32 %v1966, 4294901760
      %2613 = vmatprep.subr.mxu0 %v2612
      %v2614 = vand.u32 %v1965, 4294901760
      %2615 = vmatpush1.msra.mxu0 %v2614
      %v2616 = vand.u32 %v1969, 4294901760
      %2617 = vmatprep.subr.mxu0 %v2616
      %v2618 = vand.u32 %v1968, 4294901760
      %2619 = vmatpush1.msra.mxu0 %v2618
      %2620 = vmatprep.subr.mxu0 0.0
      %2621 = vmatpush1.msra.mxu0 0.0
      %2622 = vmatprep.subr.mxu0 0.0
      %2623 = vmatpush1.msra.mxu0 0.0
      %2624 = vmatprep.subr.mxu0 0.0
      %2625 = vmatpush1.msra.mxu0 0.0
      %2626 = vmatprep.subr.mxu0 0.0
      %2627 = vmatpush1.msra.mxu0 0.0
      %2628 = vmatprep.subr.mxu0 0.0
      %2629 = vmatpush1.msra.mxu0 0.0
      %2630 = vmatprep.subr.mxu0 0.0
      %2631 = vmatpush1.msra.mxu0 0.0
      %2632 = vmatprep.subr.mxu0 0.0
      %2633 = vmatpush1.msra.mxu0 0.0
      %2634 = vmatprep.subr.mxu0 0.0
      %2635 = vmatpush1.msra.mxu0 0.0
      %2636 = vmatprep.subr.mxu0 0.0
      %2637 = vmatpush1.msra.mxu0 0.0
      %2638 = vmatprep.subr.mxu0 0.0
      %2639 = vmatpush1.msra.mxu0 0.0
      %2640 = vmatprep.subr.mxu0 0.0
      %2641 = vmatpush1.msra.mxu0 0.0
      %2642 = vmatprep.subr.mxu0 0.0
      %2643 = vmatpush1.msra.mxu0 0.0
      %2644 = vmatprep.subr.mxu0 0.0
      %2645 = vmatpush1.msra.mxu0 0.0
      %2646 = vmatprep.subr.mxu0 0.0
      %2647 = vmatpush1.msra.mxu0 0.0
      %2648 = vmatprep.subr.mxu0 0.0
      %2649 = vmatpush1.msra.mxu0 0.0
      %2650 = vmatprep.subr.mxu0 0.0
      %2651 = vmatpush1.msra.mxu0 0.0
      %2652 = vmatprep.subr.mxu0 0.0
      %2653 = vmatpush1.msra.mxu0 0.0
      %2654 = vmatprep.subr.mxu0 0.0
      %2655 = vmatpush1.msra.mxu0 0.0
      %2656 = vmatprep.subr.mxu0 0.0
      %2657 = vmatpush1.msra.mxu0 0.0
      %2658 = vmatprep.subr.mxu0 0.0
      %2659 = vmatpush1.msra.mxu0 0.0
      %2660 = vmatprep.subr.mxu0 0.0
      %2661 = vmatpush1.msra.mxu0 0.0
      %2662 = vmatprep.subr.mxu0 0.0
      %2663 = vmatpush1.msra.mxu0 0.0
      %2664 = vmatprep.subr.mxu0 0.0
      %2665 = vmatpush1.msra.mxu0 0.0
      %2666 = vmatprep.mubr.f32.mxu0 0.0
      %v2667 = vand.u32 %v1999, 4294901760
      %2668 = vmatmul.mubr.f32.gmra.mrb[0].mxu0 %v2667
      %v2669 = vpop.f32.mrb[0].mxu0
      %v2670 = vadd.f32 %v2580, %v2669
      %v2671 = vpop.f32.mrb[0].mxu0
      %v2672 = vadd.f32 %v2582, %v2671
      %2673 = vdwg.mxu0
      %2674 = vmatprep.subr.mxu0 0.0
      %v2675 = vand.u32 %v1946, 4294901760
      %2676 = vmatpush1.msra.mxu0 %v2675
      %2677 = vmatprep.subr.mxu0 0.0
      %v2678 = vand.u32 %v1949, 4294901760
      %2679 = vmatpush1.msra.mxu0 %v2678
      %2680 = vmatprep.subr.mxu0 0.0
      %v2681 = vand.u32 %v1952, 4294901760
      %2682 = vmatpush1.msra.mxu0 %v2681
      %2683 = vmatprep.subr.mxu0 0.0
      %v2684 = vand.u32 %v1955, 4294901760
      %2685 = vmatpush1.msra.mxu0 %v2684
      %2686 = vmatprep.subr.mxu0 0.0
      %v2687 = vand.u32 %v1958, 4294901760
      %2688 = vmatpush1.msra.mxu0 %v2687
      %2689 = vmatprep.subr.mxu0 0.0
      %v2690 = vand.u32 %v1961, 4294901760
      %2691 = vmatpush1.msra.mxu0 %v2690
      %2692 = vmatprep.subr.mxu0 0.0
      %v2693 = vand.u32 %v1964, 4294901760
      %2694 = vmatpush1.msra.mxu0 %v2693
      %2695 = vmatprep.subr.mxu0 0.0
      %v2696 = vand.u32 %v1967, 4294901760
      %2697 = vmatpush1.msra.mxu0 %v2696
      %2698 = vmatprep.subr.mxu0 0.0
      %v2699 = vand.u32 %v1970, 4294901760
      %2700 = vmatpush1.msra.mxu0 %v2699
      %2701 = vmatprep.subr.mxu0 0.0
      %2702 = vmatpush1.msra.mxu0 0.0
      %2703 = vmatprep.subr.mxu0 0.0
      %2704 = vmatpush1.msra.mxu0 0.0
      %2705 = vmatprep.subr.mxu0 0.0
      %2706 = vmatpush1.msra.mxu0 0.0
      %2707 = vmatprep.subr.mxu0 0.0
      %2708 = vmatpush1.msra.mxu0 0.0
      %2709 = vmatprep.subr.mxu0 0.0
      %2710 = vmatpush1.msra.mxu0 0.0
      %2711 = vmatprep.subr.mxu0 0.0
      %2712 = vmatpush1.msra.mxu0 0.0
      %2713 = vmatprep.subr.mxu0 0.0
      %2714 = vmatpush1.msra.mxu0 0.0
      %2715 = vmatprep.subr.mxu0 0.0
      %2716 = vmatpush1.msra.mxu0 0.0
      %2717 = vmatprep.subr.mxu0 0.0
      %2718 = vmatpush1.msra.mxu0 0.0
      %2719 = vmatprep.subr.mxu0 0.0
      %2720 = vmatpush1.msra.mxu0 0.0
      %2721 = vmatprep.subr.mxu0 0.0
      %2722 = vmatpush1.msra.mxu0 0.0
      %2723 = vmatprep.subr.mxu0 0.0
      %2724 = vmatpush1.msra.mxu0 0.0
      %2725 = vmatprep.subr.mxu0 0.0
      %2726 = vmatpush1.msra.mxu0 0.0
      %2727 = vmatprep.subr.mxu0 0.0
      %2728 = vmatpush1.msra.mxu0 0.0
      %2729 = vmatprep.subr.mxu0 0.0
      %2730 = vmatpush1.msra.mxu0 0.0
      %2731 = vmatprep.subr.mxu0 0.0
      %2732 = vmatpush1.msra.mxu0 0.0
      %2733 = vmatprep.subr.mxu0 0.0
      %2734 = vmatpush1.msra.mxu0 0.0
      %2735 = vmatprep.subr.mxu0 0.0
      %2736 = vmatpush1.msra.mxu0 0.0
      %2737 = vmatprep.subr.mxu0 0.0
      %2738 = vmatpush1.msra.mxu0 0.0
      %2739 = vmatprep.subr.mxu0 0.0
      %2740 = vmatpush1.msra.mxu0 0.0
      %2741 = vmatprep.subr.mxu0 0.0
      %2742 = vmatpush1.msra.mxu0 0.0
      %2743 = vmatprep.subr.mxu0 0.0
      %2744 = vmatpush1.msra.mxu0 0.0
      %2745 = vmatprep.subr.mxu0 0.0
      %2746 = vmatpush1.msra.mxu0 0.0
      %2747 = vmatprep.mubr.f32.mxu0 0.0
      %v2748 = vand.u32 %v1999, 4294901760
      %v2749 = vsub.f32 %v1999, %v2748
      %v2750 = vand.u32 %v2749, 4294901760
      %v2751 = vsub.f32 %v2749, %v2750
      %v2752 = vand.u32 %v2751, 4294901760
      %2753 = vmatmul.mubr.f32.gmra.mrb[0].mxu0 %v2752
      %v2754 = vpop.f32.mrb[0].mxu0
      %v2755 = vadd.f32 0.0, %v2754
      %v2756 = vpop.f32.mrb[0].mxu0
      %2757 = vdwg.mxu0
      %2758 = vmatprep.subr.mxu0 0.0
      %v2759 = vand.u32 %v1946, 4294901760
      %v2760 = vsub.f32 %v1946, %v2759
      %v2761 = vand.u32 %v2760, 4294901760
      %v2762 = vsub.f32 %v2760, %v2761
      %v2763 = vand.u32 %v2762, 4294901760
      %2764 = vmatpush1.msra.mxu0 %v2763
      %2765 = vmatprep.subr.mxu0 0.0
      %v2766 = vand.u32 %v1949, 4294901760
      %v2767 = vsub.f32 %v1949, %v2766
      %v2768 = vand.u32 %v2767, 4294901760
      %v2769 = vsub.f32 %v2767, %v2768
      %v2770 = vand.u32 %v2769, 4294901760
      %2771 = vmatpush1.msra.mxu0 %v2770
      %2772 = vmatprep.subr.mxu0 0.0
      %v2773 = vand.u32 %v1952, 4294901760
      %v2774 = vsub.f32 %v1952, %v2773
      %v2775 = vand.u32 %v2774, 4294901760
      %v2776 = vsub.f32 %v2774, %v2775
      %v2777 = vand.u32 %v2776, 4294901760
      %2778 = vmatpush1.msra.mxu0 %v2777
      %2779 = vmatprep.subr.mxu0 0.0
      %v2780 = vand.u32 %v1955, 4294901760
      %v2781 = vsub.f32 %v1955, %v2780
      %v2782 = vand.u32 %v2781, 4294901760
      %v2783 = vsub.f32 %v2781, %v2782
      %v2784 = vand.u32 %v2783, 4294901760
      %2785 = vmatpush1.msra.mxu0 %v2784
      %2786 = vmatprep.subr.mxu0 0.0
      %v2787 = vand.u32 %v1958, 4294901760
      %v2788 = vsub.f32 %v1958, %v2787
      %v2789 = vand.u32 %v2788, 4294901760
      %v2790 = vsub.f32 %v2788, %v2789
      %v2791 = vand.u32 %v2790, 4294901760
      %2792 = vmatpush1.msra.mxu0 %v2791
      %2793 = vmatprep.subr.mxu0 0.0
      %v2794 = vand.u32 %v1961, 4294901760
      %v2795 = vsub.f32 %v1961, %v2794
      %v2796 = vand.u32 %v2795, 4294901760
      %v2797 = vsub.f32 %v2795, %v2796
      %v2798 = vand.u32 %v2797, 4294901760
      %2799 = vmatpush1.msra.mxu0 %v2798
      %2800 = vmatprep.subr.mxu0 0.0
      %v2801 = vand.u32 %v1964, 4294901760
      %v2802 = vsub.f32 %v1964, %v2801
      %v2803 = vand.u32 %v2802, 4294901760
      %v2804 = vsub.f32 %v2802, %v2803
      %v2805 = vand.u32 %v2804, 4294901760
      %2806 = vmatpush1.msra.mxu0 %v2805
      %2807 = vmatprep.subr.mxu0 0.0
      %v2808 = vand.u32 %v1967, 4294901760
      %v2809 = vsub.f32 %v1967, %v2808
      %v2810 = vand.u32 %v2809, 4294901760
      %v2811 = vsub.f32 %v2809, %v2810
      %v2812 = vand.u32 %v2811, 4294901760
      %2813 = vmatpush1.msra.mxu0 %v2812
      %2814 = vmatprep.subr.mxu0 0.0
      %v2815 = vand.u32 %v1970, 4294901760
      %v2816 = vsub.f32 %v1970, %v2815
      %v2817 = vand.u32 %v2816, 4294901760
      %v2818 = vsub.f32 %v2816, %v2817
      %v2819 = vand.u32 %v2818, 4294901760
      %2820 = vmatpush1.msra.mxu0 %v2819
      %2821 = vmatprep.subr.mxu0 0.0
      %2822 = vmatpush1.msra.mxu0 0.0
      %2823 = vmatprep.subr.mxu0 0.0
      %2824 = vmatpush1.msra.mxu0 0.0
      %2825 = vmatprep.subr.mxu0 0.0
      %2826 = vmatpush1.msra.mxu0 0.0
      %2827 = vmatprep.subr.mxu0 0.0
      %2828 = vmatpush1.msra.mxu0 0.0
      %2829 = vmatprep.subr.mxu0 0.0
      %2830 = vmatpush1.msra.mxu0 0.0
      %2831 = vmatprep.subr.mxu0 0.0
      %2832 = vmatpush1.msra.mxu0 0.0
      %2833 = vmatprep.subr.mxu0 0.0
      %2834 = vmatpush1.msra.mxu0 0.0
      %2835 = vmatprep.subr.mxu0 0.0
      %2836 = vmatpush1.msra.mxu0 0.0
      %2837 = vmatprep.subr.mxu0 0.0
      %2838 = vmatpush1.msra.mxu0 0.0
      %2839 = vmatprep.subr.mxu0 0.0
      %2840 = vmatpush1.msra.mxu0 0.0
      %2841 = vmatprep.subr.mxu0 0.0
      %2842 = vmatpush1.msra.mxu0 0.0
      %2843 = vmatprep.subr.mxu0 0.0
      %2844 = vmatpush1.msra.mxu0 0.0
      %2845 = vmatprep.subr.mxu0 0.0
      %2846 = vmatpush1.msra.mxu0 0.0
      %2847 = vmatprep.subr.mxu0 0.0
      %2848 = vmatpush1.msra.mxu0 0.0
      %2849 = vmatprep.subr.mxu0 0.0
      %2850 = vmatpush1.msra.mxu0 0.0
      %2851 = vmatprep.subr.mxu0 0.0
      %2852 = vmatpush1.msra.mxu0 0.0
      %2853 = vmatprep.subr.mxu0 0.0
      %2854 = vmatpush1.msra.mxu0 0.0
      %2855 = vmatprep.subr.mxu0 0.0
      %2856 = vmatpush1.msra.mxu0 0.0
      %2857 = vmatprep.subr.mxu0 0.0
      %2858 = vmatpush1.msra.mxu0 0.0
      %2859 = vmatprep.subr.mxu0 0.0
      %2860 = vmatpush1.msra.mxu0 0.0
      %2861 = vmatprep.subr.mxu0 0.0
      %2862 = vmatpush1.msra.mxu0 0.0
      %2863 = vmatprep.subr.mxu0 0.0
      %2864 = vmatpush1.msra.mxu0 0.0
      %2865 = vmatprep.subr.mxu0 0.0
      %2866 = vmatpush1.msra.mxu0 0.0
      %2867 = vmatprep.mubr.f32.mxu0 0.0
      %v2868 = vand.u32 %v1999, 4294901760
      %2869 = vmatmul.mubr.f32.gmra.mrb[0].mxu0 %v2868
      %v2870 = vpop.f32.mrb[0].mxu0
      %v2871 = vadd.f32 %v2755, %v2870
      %v2872 = vpop.f32.mrb[0].mxu0
      %2873 = vdwg.mxu0
      %2874 = vmatprep.subr.mxu0 0.0
      %v2875 = vand.u32 %v1946, 4294901760
      %v2876 = vsub.f32 %v1946, %v2875
      %2877 = vmatpush1.msra.mxu0 %v2876
      %2878 = vmatprep.subr.mxu0 0.0
      %v2879 = vand.u32 %v1949, 4294901760
      %v2880 = vsub.f32 %v1949, %v2879
      %2881 = vmatpush1.msra.mxu0 %v2880
      %2882 = vmatprep.subr.mxu0 0.0
      %v2883 = vand.u32 %v1952, 4294901760
      %v2884 = vsub.f32 %v1952, %v2883
      %2885 = vmatpush1.msra.mxu0 %v2884
      %2886 = vmatprep.subr.mxu0 0.0
      %v2887 = vand.u32 %v1955, 4294901760
      %v2888 = vsub.f32 %v1955, %v2887
      %2889 = vmatpush1.msra.mxu0 %v2888
      %2890 = vmatprep.subr.mxu0 0.0
      %v2891 = vand.u32 %v1958, 4294901760
      %v2892 = vsub.f32 %v1958, %v2891
      %2893 = vmatpush1.msra.mxu0 %v2892
      %2894 = vmatprep.subr.mxu0 0.0
      %v2895 = vand.u32 %v1961, 4294901760
      %v2896 = vsub.f32 %v1961, %v2895
      %2897 = vmatpush1.msra.mxu0 %v2896
      %2898 = vmatprep.subr.mxu0 0.0
      %v2899 = vand.u32 %v1964, 4294901760
      %v2900 = vsub.f32 %v1964, %v2899
      %2901 = vmatpush1.msra.mxu0 %v2900
      %2902 = vmatprep.subr.mxu0 0.0
      %v2903 = vand.u32 %v1967, 4294901760
      %v2904 = vsub.f32 %v1967, %v2903
      %2905 = vmatpush1.msra.mxu0 %v2904
      %2906 = vmatprep.subr.mxu0 0.0
      %v2907 = vand.u32 %v1970, 4294901760
      %v2908 = vsub.f32 %v1970, %v2907
      %2909 = vmatpush1.msra.mxu0 %v2908
      %2910 = vmatprep.subr.mxu0 0.0
      %2911 = vmatpush1.msra.mxu0 0.0
      %2912 = vmatprep.subr.mxu0 0.0
      %2913 = vmatpush1.msra.mxu0 0.0
      %2914 = vmatprep.subr.mxu0 0.0
      %2915 = vmatpush1.msra.mxu0 0.0
      %2916 = vmatprep.subr.mxu0 0.0
      %2917 = vmatpush1.msra.mxu0 0.0
      %2918 = vmatprep.subr.mxu0 0.0
      %2919 = vmatpush1.msra.mxu0 0.0
      %2920 = vmatprep.subr.mxu0 0.0
      %2921 = vmatpush1.msra.mxu0 0.0
      %2922 = vmatprep.subr.mxu0 0.0
      %2923 = vmatpush1.msra.mxu0 0.0
      %2924 = vmatprep.subr.mxu0 0.0
      %2925 = vmatpush1.msra.mxu0 0.0
      %2926 = vmatprep.subr.mxu0 0.0
      %2927 = vmatpush1.msra.mxu0 0.0
      %2928 = vmatprep.subr.mxu0 0.0
      %2929 = vmatpush1.msra.mxu0 0.0
      %2930 = vmatprep.subr.mxu0 0.0
      %2931 = vmatpush1.msra.mxu0 0.0
      %2932 = vmatprep.subr.mxu0 0.0
      %2933 = vmatpush1.msra.mxu0 0.0
      %2934 = vmatprep.subr.mxu0 0.0
      %2935 = vmatpush1.msra.mxu0 0.0
      %2936 = vmatprep.subr.mxu0 0.0
      %2937 = vmatpush1.msra.mxu0 0.0
      %2938 = vmatprep.subr.mxu0 0.0
      %2939 = vmatpush1.msra.mxu0 0.0
      %2940 = vmatprep.subr.mxu0 0.0
      %2941 = vmatpush1.msra.mxu0 0.0
      %2942 = vmatprep.subr.mxu0 0.0
      %2943 = vmatpush1.msra.mxu0 0.0
      %2944 = vmatprep.subr.mxu0 0.0
      %2945 = vmatpush1.msra.mxu0 0.0
      %2946 = vmatprep.subr.mxu0 0.0
      %2947 = vmatpush1.msra.mxu0 0.0
      %2948 = vmatprep.subr.mxu0 0.0
      %2949 = vmatpush1.msra.mxu0 0.0
      %2950 = vmatprep.subr.mxu0 0.0
      %2951 = vmatpush1.msra.mxu0 0.0
      %2952 = vmatprep.subr.mxu0 0.0
      %2953 = vmatpush1.msra.mxu0 0.0
      %2954 = vmatprep.subr.mxu0 0.0
      %2955 = vmatpush1.msra.mxu0 0.0
      %2956 = vmatprep.mubr.f32.mxu0 0.0
      %v2957 = vand.u32 %v1999, 4294901760
      %v2958 = vsub.f32 %v1999, %v2957
      %2959 = vmatmul.mubr.f32.gmra.mrb[0].mxu0 %v2958
      %v2960 = vpop.f32.mrb[0].mxu0
      %v2961 = vadd.f32 %v2871, %v2960
      %v2962 = vpop.f32.mrb[0].mxu0
      %2963 = vdwg.mxu0
      %2964 = vmatprep.subr.mxu0 0.0
      %v2965 = vand.u32 %v1946, 4294901760
      %2966 = vmatpush1.msra.mxu0 %v2965
      %2967 = vmatprep.subr.mxu0 0.0
      %v2968 = vand.u32 %v1949, 4294901760
      %2969 = vmatpush1.msra.mxu0 %v2968
      %2970 = vmatprep.subr.mxu0 0.0
      %v2971 = vand.u32 %v1952, 4294901760
      %2972 = vmatpush1.msra.mxu0 %v2971
      %2973 = vmatprep.subr.mxu0 0.0
      %v2974 = vand.u32 %v1955, 4294901760
      %2975 = vmatpush1.msra.mxu0 %v2974
      %2976 = vmatprep.subr.mxu0 0.0
      %v2977 = vand.u32 %v1958, 4294901760
      %2978 = vmatpush1.msra.mxu0 %v2977
      %2979 = vmatprep.subr.mxu0 0.0
      %v2980 = vand.u32 %v1961, 4294901760
      %2981 = vmatpush1.msra.mxu0 %v2980
      %2982 = vmatprep.subr.mxu0 0.0
      %v2983 = vand.u32 %v1964, 4294901760
      %2984 = vmatpush1.msra.mxu0 %v2983
      %2985 = vmatprep.subr.mxu0 0.0
      %v2986 = vand.u32 %v1967, 4294901760
      %2987 = vmatpush1.msra.mxu0 %v2986
      %2988 = vmatprep.subr.mxu0 0.0
      %v2989 = vand.u32 %v1970, 4294901760
      %2990 = vmatpush1.msra.mxu0 %v2989
      %2991 = vmatprep.subr.mxu0 0.0
      %2992 = vmatpush1.msra.mxu0 0.0
      %2993 = vmatprep.subr.mxu0 0.0
      %2994 = vmatpush1.msra.mxu0 0.0
      %2995 = vmatprep.subr.mxu0 0.0
      %2996 = vmatpush1.msra.mxu0 0.0
      %2997 = vmatprep.subr.mxu0 0.0
      %2998 = vmatpush1.msra.mxu0 0.0
      %2999 = vmatprep.subr.mxu0 0.0
      %3000 = vmatpush1.msra.mxu0 0.0
      %3001 = vmatprep.subr.mxu0 0.0
      %3002 = vmatpush1.msra.mxu0 0.0
      %3003 = vmatprep.subr.mxu0 0.0
      %3004 = vmatpush1.msra.mxu0 0.0
      %3005 = vmatprep.subr.mxu0 0.0
      %3006 = vmatpush1.msra.mxu0 0.0
      %3007 = vmatprep.subr.mxu0 0.0
      %3008 = vmatpush1.msra.mxu0 0.0
      %3009 = vmatprep.subr.mxu0 0.0
      %3010 = vmatpush1.msra.mxu0 0.0
      %3011 = vmatprep.subr.mxu0 0.0
      %3012 = vmatpush1.msra.mxu0 0.0
      %3013 = vmatprep.subr.mxu0 0.0
      %3014 = vmatpush1.msra.mxu0 0.0
      %3015 = vmatprep.subr.mxu0 0.0
      %3016 = vmatpush1.msra.mxu0 0.0
      %3017 = vmatprep.subr.mxu0 0.0
      %3018 = vmatpush1.msra.mxu0 0.0
      %3019 = vmatprep.subr.mxu0 0.0
      %3020 = vmatpush1.msra.mxu0 0.0
      %3021 = vmatprep.subr.mxu0 0.0
      %3022 = vmatpush1.msra.mxu0 0.0
      %3023 = vmatprep.subr.mxu0 0.0
      %3024 = vmatpush1.msra.mxu0 0.0
      %3025 = vmatprep.subr.mxu0 0.0
      %3026 = vmatpush1.msra.mxu0 0.0
      %3027 = vmatprep.subr.mxu0 0.0
      %3028 = vmatpush1.msra.mxu0 0.0
      %3029 = vmatprep.subr.mxu0 0.0
      %3030 = vmatpush1.msra.mxu0 0.0
      %3031 = vmatprep.subr.mxu0 0.0
      %3032 = vmatpush1.msra.mxu0 0.0
      %3033 = vmatprep.subr.mxu0 0.0
      %3034 = vmatpush1.msra.mxu0 0.0
      %3035 = vmatprep.subr.mxu0 0.0
      %3036 = vmatpush1.msra.mxu0 0.0
      %3037 = vmatprep.mubr.f32.mxu0 0.0
      %v3038 = vand.u32 %v1999, 4294901760
      %v3039 = vsub.f32 %v1999, %v3038
      %v3040 = vand.u32 %v3039, 4294901760
      %3041 = vmatmul.mubr.f32.gmra.mrb[0].mxu0 %v3040
      %v3042 = vpop.f32.mrb[0].mxu0
      %v3043 = vadd.f32 %v2961, %v3042
      %v3044 = vpop.f32.mrb[0].mxu0
      %3045 = vdwg.mxu0
      %3046 = vmatprep.subr.mxu0 0.0
      %v3047 = vand.u32 %v1946, 4294901760
      %v3048 = vsub.f32 %v1946, %v3047
      %v3049 = vand.u32 %v3048, 4294901760
      %3050 = vmatpush1.msra.mxu0 %v3049
      %3051 = vmatprep.subr.mxu0 0.0
      %v3052 = vand.u32 %v1949, 4294901760
      %v3053 = vsub.f32 %v1949, %v3052
      %v3054 = vand.u32 %v3053, 4294901760
      %3055 = vmatpush1.msra.mxu0 %v3054
      %3056 = vmatprep.subr.mxu0 0.0
      %v3057 = vand.u32 %v1952, 4294901760
      %v3058 = vsub.f32 %v1952, %v3057
      %v3059 = vand.u32 %v3058, 4294901760
      %3060 = vmatpush1.msra.mxu0 %v3059
      %3061 = vmatprep.subr.mxu0 0.0
      %v3062 = vand.u32 %v1955, 4294901760
      %v3063 = vsub.f32 %v1955, %v3062
      %v3064 = vand.u32 %v3063, 4294901760
      %3065 = vmatpush1.msra.mxu0 %v3064
      %3066 = vmatprep.subr.mxu0 0.0
      %v3067 = vand.u32 %v1958, 4294901760
      %v3068 = vsub.f32 %v1958, %v3067
      %v3069 = vand.u32 %v3068, 4294901760
      %3070 = vmatpush1.msra.mxu0 %v3069
      %3071 = vmatprep.subr.mxu0 0.0
      %v3072 = vand.u32 %v1961, 4294901760
      %v3073 = vsub.f32 %v1961, %v3072
      %v3074 = vand.u32 %v3073, 4294901760
      %3075 = vmatpush1.msra.mxu0 %v3074
      %3076 = vmatprep.subr.mxu0 0.0
      %v3077 = vand.u32 %v1964, 4294901760
      %v3078 = vsub.f32 %v1964, %v3077
      %v3079 = vand.u32 %v3078, 4294901760
      %3080 = vmatpush1.msra.mxu0 %v3079
      %3081 = vmatprep.subr.mxu0 0.0
      %v3082 = vand.u32 %v1967, 4294901760
      %v3083 = vsub.f32 %v1967, %v3082
      %v3084 = vand.u32 %v3083, 4294901760
      %3085 = vmatpush1.msra.mxu0 %v3084
      %3086 = vmatprep.subr.mxu0 0.0
      %v3087 = vand.u32 %v1970, 4294901760
      %v3088 = vsub.f32 %v1970, %v3087
      %v3089 = vand.u32 %v3088, 4294901760
      %3090 = vmatpush1.msra.mxu0 %v3089
      %3091 = vmatprep.subr.mxu0 0.0
      %3092 = vmatpush1.msra.mxu0 0.0
      %3093 = vmatprep.subr.mxu0 0.0
      %3094 = vmatpush1.msra.mxu0 0.0
      %3095 = vmatprep.subr.mxu0 0.0
      %3096 = vmatpush1.msra.mxu0 0.0
      %3097 = vmatprep.subr.mxu0 0.0
      %3098 = vmatpush1.msra.mxu0 0.0
      %3099 = vmatprep.subr.mxu0 0.0
      %3100 = vmatpush1.msra.mxu0 0.0
      %3101 = vmatprep.subr.mxu0 0.0
      %3102 = vmatpush1.msra.mxu0 0.0
      %3103 = vmatprep.subr.mxu0 0.0
      %3104 = vmatpush1.msra.mxu0 0.0
      %3105 = vmatprep.subr.mxu0 0.0
      %3106 = vmatpush1.msra.mxu0 0.0
      %3107 = vmatprep.subr.mxu0 0.0
      %3108 = vmatpush1.msra.mxu0 0.0
      %3109 = vmatprep.subr.mxu0 0.0
      %3110 = vmatpush1.msra.mxu0 0.0
      %3111 = vmatprep.subr.mxu0 0.0
      %3112 = vmatpush1.msra.mxu0 0.0
      %3113 = vmatprep.subr.mxu0 0.0
      %3114 = vmatpush1.msra.mxu0 0.0
      %3115 = vmatprep.subr.mxu0 0.0
      %3116 = vmatpush1.msra.mxu0 0.0
      %3117 = vmatprep.subr.mxu0 0.0
      %3118 = vmatpush1.msra.mxu0 0.0
      %3119 = vmatprep.subr.mxu0 0.0
      %3120 = vmatpush1.msra.mxu0 0.0
      %3121 = vmatprep.subr.mxu0 0.0
      %3122 = vmatpush1.msra.mxu0 0.0
      %3123 = vmatprep.subr.mxu0 0.0
      %3124 = vmatpush1.msra.mxu0 0.0
      %3125 = vmatprep.subr.mxu0 0.0
      %3126 = vmatpush1.msra.mxu0 0.0
      %3127 = vmatprep.subr.mxu0 0.0
      %3128 = vmatpush1.msra.mxu0 0.0
      %3129 = vmatprep.subr.mxu0 0.0
      %3130 = vmatpush1.msra.mxu0 0.0
      %3131 = vmatprep.subr.mxu0 0.0
      %3132 = vmatpush1.msra.mxu0 0.0
      %3133 = vmatprep.subr.mxu0 0.0
      %3134 = vmatpush1.msra.mxu0 0.0
      %3135 = vmatprep.subr.mxu0 0.0
      %3136 = vmatpush1.msra.mxu0 0.0
      %3137 = vmatprep.mubr.f32.mxu0 0.0
      %v3138 = vand.u32 %v1999, 4294901760
      %3139 = vmatmul.mubr.f32.gmra.mrb[0].mxu0 %v3138
      %v3140 = vpop.f32.mrb[0].mxu0
      %v3141 = vadd.f32 %v3043, %v3140
      %v3142 = vpop.f32.mrb[0].mxu0
      %3143 = vdwg.mxu0
      %3144 = vmatprep.subr.mxu0 0.0
      %v3145 = vand.u32 %v1946, 4294901760
      %3146 = vmatpush1.msra.mxu0 %v3145
      %3147 = vmatprep.subr.mxu0 0.0
      %v3148 = vand.u32 %v1949, 4294901760
      %3149 = vmatpush1.msra.mxu0 %v3148
      %3150 = vmatprep.subr.mxu0 0.0
      %v3151 = vand.u32 %v1952, 4294901760
      %3152 = vmatpush1.msra.mxu0 %v3151
      %3153 = vmatprep.subr.mxu0 0.0
      %v3154 = vand.u32 %v1955, 4294901760
      %3155 = vmatpush1.msra.mxu0 %v3154
      %3156 = vmatprep.subr.mxu0 0.0
      %v3157 = vand.u32 %v1958, 4294901760
      %3158 = vmatpush1.msra.mxu0 %v3157
      %3159 = vmatprep.subr.mxu0 0.0
      %v3160 = vand.u32 %v1961, 4294901760
      %3161 = vmatpush1.msra.mxu0 %v3160
      %3162 = vmatprep.subr.mxu0 0.0
      %v3163 = vand.u32 %v1964, 4294901760
      %3164 = vmatpush1.msra.mxu0 %v3163
      %3165 = vmatprep.subr.mxu0 0.0
      %v3166 = vand.u32 %v1967, 4294901760
      %3167 = vmatpush1.msra.mxu0 %v3166
      %3168 = vmatprep.subr.mxu0 0.0
      %v3169 = vand.u32 %v1970, 4294901760
      %3170 = vmatpush1.msra.mxu0 %v3169
      %3171 = vmatprep.subr.mxu0 0.0
      %3172 = vmatpush1.msra.mxu0 0.0
      %3173 = vmatprep.subr.mxu0 0.0
      %3174 = vmatpush1.msra.mxu0 0.0
      %3175 = vmatprep.subr.mxu0 0.0
      %3176 = vmatpush1.msra.mxu0 0.0
      %3177 = vmatprep.subr.mxu0 0.0
      %3178 = vmatpush1.msra.mxu0 0.0
      %3179 = vmatprep.subr.mxu0 0.0
      %3180 = vmatpush1.msra.mxu0 0.0
      %3181 = vmatprep.subr.mxu0 0.0
      %3182 = vmatpush1.msra.mxu0 0.0
      %3183 = vmatprep.subr.mxu0 0.0
      %3184 = vmatpush1.msra.mxu0 0.0
      %3185 = vmatprep.subr.mxu0 0.0
      %3186 = vmatpush1.msra.mxu0 0.0
      %3187 = vmatprep.subr.mxu0 0.0
      %3188 = vmatpush1.msra.mxu0 0.0
      %3189 = vmatprep.subr.mxu0 0.0
      %3190 = vmatpush1.msra.mxu0 0.0
      %3191 = vmatprep.subr.mxu0 0.0
      %3192 = vmatpush1.msra.mxu0 0.0
      %3193 = vmatprep.subr.mxu0 0.0
      %3194 = vmatpush1.msra.mxu0 0.0
      %3195 = vmatprep.subr.mxu0 0.0
      %3196 = vmatpush1.msra.mxu0 0.0
      %3197 = vmatprep.subr.mxu0 0.0
      %3198 = vmatpush1.msra.mxu0 0.0
      %3199 = vmatprep.subr.mxu0 0.0
      %3200 = vmatpush1.msra.mxu0 0.0
      %3201 = vmatprep.subr.mxu0 0.0
      %3202 = vmatpush1.msra.mxu0 0.0
      %3203 = vmatprep.subr.mxu0 0.0
      %3204 = vmatpush1.msra.mxu0 0.0
      %3205 = vmatprep.subr.mxu0 0.0
      %3206 = vmatpush1.msra.mxu0 0.0
      %3207 = vmatprep.subr.mxu0 0.0
      %3208 = vmatpush1.msra.mxu0 0.0
      %3209 = vmatprep.subr.mxu0 0.0
      %3210 = vmatpush1.msra.mxu0 0.0
      %3211 = vmatprep.subr.mxu0 0.0
      %3212 = vmatpush1.msra.mxu0 0.0
      %3213 = vmatprep.subr.mxu0 0.0
      %3214 = vmatpush1.msra.mxu0 0.0
      %3215 = vmatprep.subr.mxu0 0.0
      %3216 = vmatpush1.msra.mxu0 0.0
      %3217 = vmatprep.mubr.f32.mxu0 0.0
      %v3218 = vand.u32 %v1999, 4294901760
      %3219 = vmatmul.mubr.f32.gmra.mrb[0].mxu0 %v3218
      %v3220 = vpop.f32.mrb[0].mxu0
      %v3221 = vadd.f32 %v3141, %v3220
      %v3222 = vpop.f32.mrb[0].mxu0
      %3223 = vdwg.mxu0
      %v3224 = vadd.f32 %v239, %v2670
      %v3225 = vadd.f32 %v240, %v2672
      %v3226 = vadd.f32 %v241, %v3221
      %v3227 = vmax.f32 %v3224, 0.0
      %v3228 = vmax.f32 %v3225, 0.0
      %v3229 = vmax.f32 %v3226, 0.0
      %3230 = vst [vmem:[%s232] sm:$0xff] %v3227
      %3231 = vst [vmem:[%s232 + $0x8] sm:$0xff] %v3228
      %3232 = vst [vmem:[%s232 + $0x10] sm:$0xff] %v3229
      %3233 = vst [vmem:[%s237] sm:$0xff] %v2670
      %3234 = vst [vmem:[%s237 + $0x8] sm:$0xff] %v2672
      %3235 = vst [vmem:[%s237 + $0x10] sm:$0xff] %v3221
      %p3236 = scmp.lt.s32.totalorder %s17, 1
      %s3237 = scalar_select %p3236, %s17, 1
      %s3238 = smul.addr %s3237, 3
      %s3239 = smul.addr %s3238, 8
      %s3240 = scalar_lea.vmem %s4, %s3239
      %p3241 = scmp.lt.s32.totalorder %s17, 1
      %s3242 = scalar_select %p3241, %s17, 1
      %s3243 = smul.addr %s3242, 3
      %s3244 = smul.addr %s3243, 8
      %s3245 = scalar_lea.vmem %s5, %s3244
      // Predicated region
      $region37: #{flow_block_2d.1} parent=35 // pred_check
        %p3246 = pneg %p124
      $region38: #{flow_block_2d.1} parent=35 // pred_check_branch
        %3248 = sbr.rel (%p3246) target = $region40
      $region39: #{flow_block_2d.1} parent=35 // pred_region
        _
      $region40: #{flow_block_2d.1} parent=35 // pred_fallthru
        _
      // Predicated region
      $region41: #{flow_block_2d.1} parent=35 // pred_check
        %p3249 = pneg %p150
      $region42: #{flow_block_2d.1} parent=35 // pred_check_branch
        %3251 = sbr.rel (%p3249) target = $region44
      $region43: #{flow_block_2d.1} parent=35 // pred_region
        _
      $region44: #{flow_block_2d.1} parent=35 // pred_fallthru
        _
    $region36: #{flow_block_2d.1} parent=5 // pred_fallthru
      _
    %p3252 = scmp.le.s32.totalorder 2, %s12
    // Predicated region
    $region45: #{flow_block_2d.1} parent=5 // pred_check
      %p3253 = pneg %p3252
    $region46: #{flow_block_2d.1} parent=5 // pred_check_branch
      %3255 = sbr.rel (%p3253) target = $region48
    $region47: #{flow_block_2d.1} parent=5 // pred_region
      %s3256 = ssub.s32 %s12, 2
      // Predicated region
      $region49: #{flow_block_2d.1} parent=47 // pred_check
        %p3257 = pneg %p130
      $region50: #{flow_block_2d.1} parent=47 // pred_check_branch
        %3259 = sbr.rel (%p3257) target = $region52
      $region51: #{flow_block_2d.1} parent=47 // pred_region
        %p3260 = scmp.lt.s32.totalorder %s18, 1
        %s3261 = scalar_select %p3260, %s18, 1
        %s3262 = smul.addr %s3261, 3
        %s3263 = smul.addr %s3262, 8
        %s3264 = scalar_lea.vmem %s4, %s3263
      $region52: #{flow_block_2d.1} parent=47 // pred_fallthru
        _
      // Predicated region
      $region53: #{flow_block_2d.1} parent=47 // pred_check
        %p3265 = pneg %p156
      $region54: #{flow_block_2d.1} parent=47 // pred_check_branch
        %3267 = sbr.rel (%p3265) target = $region56
      $region55: #{flow_block_2d.1} parent=47 // pred_region
        %p3268 = scmp.lt.s32.totalorder %s18, 1
        %s3269 = scalar_select %p3268, %s18, 1
        %s3270 = smul.addr %s3269, 3
        %s3271 = smul.addr %s3270, 8
        %s3272 = scalar_lea.vmem %s5, %s3271
      $region56: #{flow_block_2d.1} parent=47 // pred_fallthru
        _
    $region48: #{flow_block_2d.1} parent=5 // pred_fallthru
      _
  $region6: #{flow_block_2d.1} parent=0 // loop_footer
    %s16 = sadd.s32 1, %s12
  $region7: #{flow_block_2d.1} parent=0 // loop_footer_branch
    %11 = sbr.rel target = $region3
  $region8: #{flow_block_2d.1} parent=0 // loop_exit
    _

</llo_original>
